<compile_context>
chip_gen: v7x
topology: tpu7x:2x2x1
jax: 0.10.0
libtpu: 0.0.40
codegen_flags: <defaults>
</compile_context>

<pallas_src>
import functools

import jax
import jax.numpy as jnp
from jax import lax
from jax.experimental import pallas as pl
from jax.experimental.pallas import tpu as pltpu


def _sigmoid(v):
    # sigmoid(v) = 0.5 * (1 + tanh(v/2)): tanh runs on the EUP slot, no divide.
    return 0.5 * (jnp.tanh(0.5 * v) + 1.0)


def _fill_reflect_borders(ref, H, W):
    """Fill the 3-wide reflect borders of a (H+6, W+6, lanes) scratch ref whose
    interior [3:H+3, 3:W+3, :] has already been written (PyTorch 'reflect').

    The W-axis (sublane) fill only touches interior rows; the H-axis (leading)
    fill then copies full-width rows, so corners are correct and no stale VMEM
    from a previous grid step is ever read."""
    inter = slice(3, H + 3)
    # W axis: cols [0,1,2] <- [6,5,4]; cols [W+3,W+4,W+5] <- [W+1,W,W-1]
    left = jnp.concatenate(
        [ref[inter, 6:7, :], ref[inter, 5:6, :], ref[inter, 4:5, :]], axis=1)
    ref[inter, 0:3, :] = left
    right = jnp.concatenate(
        [ref[inter, W + 1:W + 2, :], ref[inter, W:W + 1, :], ref[inter, W - 1:W, :]], axis=1)
    ref[inter, W + 3:W + 6, :] = right
    # H axis: rows [0,1,2] <- [6,5,4]; rows [H+3,H+4,H+5] <- [H+1,H,H-1]
    top = jnp.concatenate([ref[6:7, :, :], ref[5:6, :, :], ref[4:5, :, :]], axis=0)
    ref[0:3, :, :] = top
    bot = jnp.concatenate(
        [ref[H + 1:H + 2, :, :], ref[H:H + 1, :, :], ref[H - 1:H, :, :]], axis=0)
    ref[H + 3:H + 6, :, :] = bot


def _cga_fusion_kernel(x_ref, y_ref,
                       w1_ref, b1_ref, w2_ref, b2_ref,
                       wtap1_ref, wtap2_ref, bpa_ref,
                       wc_ref, bc_ref,
                       o_ref,
                       pad_a_ref, pad_p_ref, acc_ref,
                       *, H, W, C, Bt, hs):
    f32 = jnp.float32
    HW = H * W
    L = Bt * C                       # packed channel lanes (image-major: b*C + c)
    LA = L + 2 * Bt                  # + per-image avg / max planes

    x = x_ref[...].astype(f32)       # (Bt, C, HW), pixels on lanes
    y = y_ref[...].astype(f32)
    initial = x + y                  # (Bt, C, HW)

    # ---- channel attention (per image): GAP -> 1x1 -> ReLU -> 1x1 -> sigmoid
    gap = jnp.mean(initial, axis=2)                                     # (Bt, C)
    z = jnp.dot(gap, w1_ref[...], preferred_element_type=f32) + b1_ref[...]
    z = jnp.maximum(z, 0.0)                                             # (Bt, Cr)
    cattn = _sigmoid(
        jnp.dot(z, w2_ref[...], preferred_element_type=f32) + b2_ref[...])  # (Bt, C)

    # ---- spatial attention input planes (channel mean / max), channels-first
    s_avg = jnp.mean(initial, axis=1)                                   # (Bt, HW)
    s_max = jnp.max(initial, axis=1)                                    # (Bt, HW)

    # ---- reflect-padded channels-last buffer: lanes = [Bt*C init | Bt avg | Bt max]
    init_cl = jnp.transpose(initial.reshape(L, HW)).reshape(H, W, L)
    am_cl = jnp.transpose(
        jnp.concatenate([s_avg, s_max], axis=0)).reshape(H, W, 2 * Bt)
    pad_a_ref[3:H + 3, 3:W + 3, 0:L] = init_cl
    pad_a_ref[3:H + 3, 3:W + 3, L:LA] = am_cl
    _fill_reflect_borders(pad_a_ref, H, W)

    # ---- phase A (strip-mined over H): fused tap loop producing
    #      * the PA "initial" contribution on lanes [0:L]          -> acc_ref
    #      * the SA conv on lanes [L:L+2Bt]  -> sattn -> pattn1    -> pad_p_ref
    for h0 in range(0, H, hs):
        hc = min(hs, H - h0)
        acc1 = jnp.zeros((hc, W, LA), f32)
        for dy in range(7):
            slab = pad_a_ref[h0 + dy:h0 + dy + hc, :, :]        # (hc, W+6, LA)
            for dx in range(7):
                acc1 = acc1 + wtap1_ref[dy * 7 + dx] * slab[:, dx:dx + W, :]
        acc_ref[h0:h0 + hc, :, :] = acc1[:, :, 0:L]
        sattn = acc1[:, :, L:L + Bt] + acc1[:, :, L + Bt:LA]    # (hc, W, Bt)
        parts = [sattn[:, :, b:b + 1] + cattn[b:b + 1, :].reshape(1, 1, C)
                 for b in range(Bt)]
        pattn1 = parts[0] if Bt == 1 else jnp.concatenate(parts, axis=2)
        pad_p_ref[h0 + 3:h0 + 3 + hc, 3:W + 3, :] = pattn1

    _fill_reflect_borders(pad_p_ref, H, W)

    # ---- phase B (strip-mined): PA contribution from pattn1, then double
    #      sigmoid (matches PyTorch: sigmoid inside PixelAttention + outer one)
    for h0 in range(0, H, hs):
        hc = min(hs, H - h0)
        acc2 = jnp.zeros((hc, W, L), f32)
        for dy in range(7):
            slab = pad_p_ref[h0 + dy:h0 + dy + hc, :, :]        # (hc, W+6, L)
            for dx in range(7):
                acc2 = acc2 + wtap2_ref[dy * 7 + dx] * slab[:, dx:dx + W, :]
        pacc = acc_ref[h0:h0 + hc, :, :] + acc2 + bpa_ref[...]
        acc_ref[h0:h0 + hc, :, :] = _sigmoid(_sigmoid(pacc))    # pattn2 (reuse)

    # ---- gating + 1x1 conv, back to channels-first (pixels on lanes)
    pattn2_cf = jnp.transpose(acc_ref[...].reshape(HW, L))      # (L, HW)
    for b in range(Bt):
        xb = x_ref[b].astype(f32)                               # (C, HW)
        yb = y_ref[b].astype(f32)
        pb = pattn2_cf[b * C:(b + 1) * C, :]                    # (C, HW)
        resb = (xb + yb) + pb * xb + (1.0 - pb) * yb
        outb = jnp.dot(wc_ref[...], resb, preferred_element_type=f32) + bc_ref[...]
        o_ref[b] = outb.astype(o_ref.dtype)                     # (O, HW)


def _pick_batch_tile(B, C):
    """Largest batch tile Bt that (a) divides B, (b) keeps Bt*C <= ~128 lanes,
    and (c) leaves >= 2 grid steps when possible (two TensorCores on v7x)."""
    max_by_lanes = max(1, 128 // max(C, 1))
    divs = [d for d in range(1, B + 1) if B % d == 0 and d <= max_by_lanes]
    pref = [d for d in divs if B // d >= 2]
    return max(pref) if pref else max(divs)


@jax.jit
def cga_fusion(x, y, params):
    """CGAFusion forward. x, y: (B, C, H, W). Returns (B, out_channels, H, W)."""
    B, C, H, W = x.shape
    HW = H * W
    O = params["conv_w"].shape[0]
    Cr = params["ca_w1"].shape[0]
    f32 = jnp.float32

    Bt = _pick_batch_tile(B, C)
    L = Bt * C
    LA = L + 2 * Bt
    hs = min(8, H)                       # strip height for the tap loops

    # ---- repack / fold parameters (tiny, one-off) ----
    w1 = params["ca_w1"][:, :, 0, 0].T.astype(f32)                 # (C, Cr)
    b1 = params["ca_b1"].reshape(1, Cr).astype(f32)
    w2 = params["ca_w2"][:, :, 0, 0].T.astype(f32)                 # (Cr, C)
    b2 = params["ca_b2"].reshape(1, C).astype(f32)

    wpa = params["pa_w"].astype(f32)                               # (C, 2, 7, 7)
    wpa_i = jnp.tile(wpa[:, 0].reshape(C, 49).T, (1, Bt))          # (49, L), lane=b*C+c
    wpa_p = jnp.tile(wpa[:, 1].reshape(C, 49).T, (1, Bt))          # (49, L)
    sa_w = params["sa_w"].astype(f32)                              # (1, 2, 7, 7)
    sa_avg = jnp.tile(sa_w[0, 0].reshape(49, 1), (1, Bt))          # (49, Bt)
    sa_max = jnp.tile(sa_w[0, 1].reshape(49, 1), (1, Bt))          # (49, Bt)
    wtap1 = jnp.concatenate([wpa_i, sa_avg, sa_max], axis=1).reshape(49, 1, LA)
    wtap2 = wpa_p.reshape(49, 1, L)

    # Fold the spatial-attention bias into the pixel-attention bias:
    #   conv_c(pattn1 + b_sa) = conv_c(pattn1) + b_sa * sum(W_pattn1[c])
    bpa = params["pa_b"] + params["sa_b"][0] * jnp.sum(wpa[:, 1], axis=(1, 2))
    bpa = jnp.tile(bpa.reshape(1, C), (1, Bt)).astype(f32)         # (1, L)

    wc = params["conv_w"][:, :, 0, 0].astype(f32)                  # (O, C)
    bc = params["conv_b"].reshape(O, 1).astype(f32)

    # NCHW is already (B, C, H*W) row-major: free reshape, no transpose.
    x2 = x.reshape(B, C, HW)
    y2 = y.reshape(B, C, HW)

    kernel = functools.partial(_cga_fusion_kernel, H=H, W=W, C=C, Bt=Bt, hs=hs)

    pix_spec = pl.BlockSpec((Bt, C, HW), lambda g: (g, 0, 0))
    c2 = lambda s: pl.BlockSpec(s, lambda g: (0, 0))
    c3 = lambda s: pl.BlockSpec(s, lambda g: (0, 0, 0))

    # ---- generation-aware VMEM budget ----
    p8 = lambda n: -(-n // 8) * 8
    p128 = lambda n: -(-n // 128) * 128
    scratch_bytes = 4 * ((H + 6) * p8(W + 6) * p128(LA)
                         + (H + 6) * p8(W + 6) * p128(L)
                         + H * p8(W) * p128(L))
    io_bytes = 4 * 2 * (2 * Bt * C * HW + Bt * O * HW)    # double-buffered blocks
    need = scratch_bytes + io_bytes + (2 << 20)
    try:
        cap = int(pltpu.get_tpu_info().vmem_capacity_bytes)
    except Exception:
        cap = 64 * 1024 * 1024                            # conservative (v7x)
    vmem_limit = int(min(max(32 << 20, 2 * need), (cap * 3) // 4))

    flops = int(B * HW * (4 * 49 * C + 2 * C * O + 10 * C) + B * HW * 49 * 4)
    transcendentals = int(B * HW * 2 * C + 2 * B * C)
    bytes_accessed = int(4 * (2 * B * C * HW + B * O * HW))

    out2 = pl.pallas_call(
        kernel,
        out_shape=jax.ShapeDtypeStruct((B, O, HW), x.dtype),
        grid_spec=pltpu.PrefetchScalarGridSpec(
            num_scalar_prefetch=0,
            grid=(B // Bt,),
            in_specs=[
                pix_spec, pix_spec,
                c2((C, Cr)), c2((1, Cr)),
                c2((Cr, C)), c2((1, C)),
                c3((49, 1, LA)), c3((49, 1, L)),
                c2((1, L)),
                c2((O, C)), c2((O, 1)),
            ],
            out_specs=pl.BlockSpec((Bt, O, HW), lambda g: (g, 0, 0)),
            scratch_shapes=[
                pltpu.VMEM((H + 6, W + 6, LA), jnp.float32),  # [init | avg | max] padded
                pltpu.VMEM((H + 6, W + 6, L), jnp.float32),   # pattn1 padded
                pltpu.VMEM((H, W, L), jnp.float32),           # PA-initial acc / pattn2
            ],
        ),
        compiler_params=pltpu.CompilerParams(
            dimension_semantics=("parallel",),
            vmem_limit_bytes=vmem_limit,
        ),
        cost_estimate=pl.CostEstimate(
            flops=flops,
            transcendentals=transcendentals,
            bytes_accessed=bytes_accessed,
        ),
    )(x2, y2, w1, b1, w2, b2, wtap1, wtap2, bpa, wc, bc)

    return out2.reshape(B, O, H, W)


def _reference(x, y, p):
    """Pure-JAX/XLA reference matching the PyTorch CGAFusion forward exactly."""
    prec = lax.Precision.HIGHEST
    B, C, H, W = x.shape
    initial = x + y

    # ChannelAttention
    gap = jnp.mean(initial, axis=(2, 3), keepdims=True)
    z = jnp.einsum("rc,bcij->brij", p["ca_w1"][:, :, 0, 0], gap, precision=prec)
    z = jnp.maximum(z + p["ca_b1"][None, :, None, None], 0.0)
    cattn = jnp.einsum("cr,brij->bcij", p["ca_w2"][:, :, 0, 0], z, precision=prec)
    cattn = jax.nn.sigmoid(cattn + p["ca_b2"][None, :, None, None])        # (B,C,1,1)

    # SpatialAttention
    s_in = jnp.concatenate([jnp.mean(initial, axis=1, keepdims=True),
                            jnp.max(initial, axis=1, keepdims=True)], axis=1)
    s_pad = jnp.pad(s_in, ((0, 0), (0, 0), (3, 3), (3, 3)), mode="reflect")
    sattn = lax.conv_general_dilated(
        s_pad, p["sa_w"], (1, 1), "VALID",
        dimension_numbers=("NCHW", "OIHW", "NCHW"), precision=prec)
    sattn = sattn + p["sa_b"][None, :, None, None]                         # (B,1,H,W)

    pattn1 = sattn + cattn                                                 # (B,C,H,W)

    # PixelAttention (grouped 7x7 over interleaved [initial_c, pattn1_c])
    x2 = jnp.stack([initial, pattn1], axis=2).reshape(B, 2 * C, H, W)
    x2_pad = jnp.pad(x2, ((0, 0), (0, 0), (3, 3), (3, 3)), mode="reflect")
    pa = lax.conv_general_dilated(
        x2_pad, p["pa_w"], (1, 1), "VALID",
        dimension_numbers=("NCHW", "OIHW", "NCHW"),
        feature_group_count=C, precision=prec)
    pattn2 = jax.nn.sigmoid(jax.nn.sigmoid(pa + p["pa_b"][None, :, None, None]))

    result = initial + pattn2 * x + (1.0 - pattn2) * y
    out = jnp.einsum("oc,bchw->bohw", p["conv_w"][:, :, 0, 0], result, precision=prec)
    return out + p["conv_b"][None, :, None, None]


if __name__ == "__main__":
    key = jax.random.PRNGKey(0)
    B, C, H, W = 8, 32, 16, 16          # dim=32 so dim // reduction(=8) = 4
    reduction = 8
    Cr = C // reduction
    O = C                               # out_channels defaults to dim

    ks = jax.random.split(key, 12)
    x = jax.random.normal(ks[0], (B, C, H, W), jnp.float32)
    y = jax.random.normal(ks[1], (B, C, H, W), jnp.float32)

    params = {
        "ca_w1": jax.random.normal(ks[2], (Cr, C, 1, 1), jnp.float32) * (C ** -0.5),
        "ca_b1": 0.1 * jax.random.normal(ks[3], (Cr,), jnp.float32),
        "ca_w2": jax.random.normal(ks[4], (C, Cr, 1, 1), jnp.float32) * (Cr ** -0.5),
        "ca_b2": 0.1 * jax.random.normal(ks[5], (C,), jnp.float32),
        "sa_w": jax.random.normal(ks[6], (1, 2, 7, 7), jnp.float32) * 0.1,
        "sa_b": 0.1 * jax.random.normal(ks[7], (1,), jnp.float32),
        "pa_w": jax.random.normal(ks[8], (C, 2, 7, 7), jnp.float32) * 0.1,
        "pa_b": 0.1 * jax.random.normal(ks[9], (C,), jnp.float32),
        "conv_w": jax.random.normal(ks[10], (O, C, 1, 1), jnp.float32) * (C ** -0.5),
        "conv_b": 0.1 * jax.random.normal(ks[11], (O,), jnp.float32),
    }

    out = cga_fusion(x, y, params)
    out = jax.block_until_ready(out)

    ref = _reference(x, y, params)
    assert out.shape == (B, O, H, W)
    max_err = float(jnp.max(jnp.abs(out - ref)))
    assert max_err < 5e-3, f"max abs error vs reference: {max_err}"
    print("KERNEL_OK")
</pallas_src>

<mosaic_0001>
module attributes {stable_mosaic.version = 11 : i64} {
  func.func @_cga_fusion_kernel(%arg0: i32, %arg1: memref<4x32x256xf32, #tpu.memory_space<vmem>>, %arg2: memref<4x32x256xf32, #tpu.memory_space<vmem>>, %arg3: memref<32x4xf32, #tpu.memory_space<vmem>>, %arg4: memref<1x4xf32, #tpu.memory_space<vmem>>, %arg5: memref<4x32xf32, #tpu.memory_space<vmem>>, %arg6: memref<1x32xf32, #tpu.memory_space<vmem>>, %arg7: memref<49x1x136xf32, #tpu.memory_space<vmem>>, %arg8: memref<49x1x128xf32, #tpu.memory_space<vmem>>, %arg9: memref<1x128xf32, #tpu.memory_space<vmem>>, %arg10: memref<32x32xf32, #tpu.memory_space<vmem>>, %arg11: memref<32x1xf32, #tpu.memory_space<vmem>>, %arg12: memref<4x32x256xf32, #tpu.memory_space<vmem>>, %arg13: memref<22x22x136xf32, #tpu.memory_space<vmem>>, %arg14: memref<22x22x128xf32, #tpu.memory_space<vmem>>, %arg15: memref<16x16x128xf32, #tpu.memory_space<vmem>>) attributes {dimension_semantics = [#tpu.dimension_semantics<parallel>], iteration_bounds = array<i64: 2>, scalar_prefetch = 0 : i64, scratch_operands = 3 : i64, tpu.core_type = #tpu.core_type<tc>, window_params = [{transform_indices = @transform_0, window_bounds = array<i64: 4, 32, 256>}, {transform_indices = @transform_1, window_bounds = array<i64: 4, 32, 256>}, {pipeline_mode = #tpu.pipeline_mode<synchronous>, transform_indices = @transform_2, window_bounds = array<i64: 32, 4>}, {pipeline_mode = #tpu.pipeline_mode<synchronous>, transform_indices = @transform_3, window_bounds = array<i64: 1, 4>}, {pipeline_mode = #tpu.pipeline_mode<synchronous>, transform_indices = @transform_4, window_bounds = array<i64: 4, 32>}, {pipeline_mode = #tpu.pipeline_mode<synchronous>, transform_indices = @transform_5, window_bounds = array<i64: 1, 32>}, {pipeline_mode = #tpu.pipeline_mode<synchronous>, transform_indices = @transform_6, window_bounds = array<i64: 49, 1, 136>}, {pipeline_mode = #tpu.pipeline_mode<synchronous>, transform_indices = @transform_7, window_bounds = array<i64: 49, 1, 128>}, {pipeline_mode = #tpu.pipeline_mode<synchronous>, transform_indices = @transform_8, window_bounds = array<i64: 1, 128>}, {pipeline_mode = #tpu.pipeline_mode<synchronous>, transform_indices = @transform_9, window_bounds = array<i64: 32, 32>}, {pipeline_mode = #tpu.pipeline_mode<synchronous>, transform_indices = @transform_10, window_bounds = array<i64: 32, 1>}, {transform_indices = @transform_11, window_bounds = array<i64: 4, 32, 256>}]} {
    %c0 = arith.constant 0 : index
    %c0_0 = arith.constant 0 : index
    %c0_1 = arith.constant 0 : index
    %0 = vector.load %arg1[%c0, %c0_0, %c0_1] : memref<4x32x256xf32, #tpu.memory_space<vmem>>, vector<4x32x256xf32>
    %c0_2 = arith.constant 0 : index
    %c0_3 = arith.constant 0 : index
    %c0_4 = arith.constant 0 : index
    %1 = vector.load %arg2[%c0_2, %c0_3, %c0_4] : memref<4x32x256xf32, #tpu.memory_space<vmem>>, vector<4x32x256xf32>
    %2 = arith.addf %0, %1 : vector<4x32x256xf32>
    %cst = arith.constant dense<0.000000e+00> : vector<4x32xf32>
    %3 = vector.multi_reduction <add>, %2, %cst [2] : vector<4x32x256xf32> to vector<4x32xf32>
    %cst_5 = arith.constant 2.560000e+02 : f32
    %4 = vector.broadcast %cst_5 : f32 to vector<4x32xf32>
    %5 = arith.divf %3, %4 : vector<4x32xf32>
    %c0_6 = arith.constant 0 : index
    %c0_7 = arith.constant 0 : index
    %6 = vector.load %arg3[%c0_6, %c0_7] : memref<32x4xf32, #tpu.memory_space<vmem>>, vector<32x4xf32>
    %cst_8 = arith.constant dense<0.000000e+00> : vector<4x4xf32>
    %7 = tpu.matmul %5, %6, %cst_8 {dimension_numbers = #tpu.dot_dimension_numbers<[1], [0], [0], [1], [0, 0, 1, 1], [], []>} : vector<4x32xf32>, vector<32x4xf32>, vector<4x4xf32> -> vector<4x4xf32>
    %c0_9 = arith.constant 0 : index
    %c0_10 = arith.constant 0 : index
    %8 = vector.load %arg4[%c0_9, %c0_10] : memref<1x4xf32, #tpu.memory_space<vmem>>, vector<1x4xf32>
    %9 = vector.broadcast %8 : vector<1x4xf32> to vector<4x4xf32>
    %10 = arith.addf %7, %9 : vector<4x4xf32>
    %cst_11 = arith.constant 0.000000e+00 : f32
    %11 = vector.broadcast %cst_11 : f32 to vector<4x4xf32>
    %12 = arith.maximumf %10, %11 : vector<4x4xf32>
    %c0_12 = arith.constant 0 : index
    %c0_13 = arith.constant 0 : index
    %13 = vector.load %arg5[%c0_12, %c0_13] : memref<4x32xf32, #tpu.memory_space<vmem>>, vector<4x32xf32>
    %cst_14 = arith.constant dense<0.000000e+00> : vector<4x32xf32>
    %14 = tpu.matmul %12, %13, %cst_14 {dimension_numbers = #tpu.dot_dimension_numbers<[1], [0], [0], [1], [0, 0, 1, 1], [], []>} : vector<4x4xf32>, vector<4x32xf32>, vector<4x32xf32> -> vector<4x32xf32>
    %c0_15 = arith.constant 0 : index
    %c0_16 = arith.constant 0 : index
    %15 = vector.load %arg6[%c0_15, %c0_16] : memref<1x32xf32, #tpu.memory_space<vmem>>, vector<1x32xf32>
    %16 = vector.broadcast %15 : vector<1x32xf32> to vector<4x32xf32>
    %17 = arith.addf %14, %16 : vector<4x32xf32>
    %cst_17 = arith.constant 5.000000e-01 : f32
    %18 = vector.broadcast %cst_17 : f32 to vector<4x32xf32>
    %19 = arith.mulf %18, %17 : vector<4x32xf32>
    %20 = math.tanh %19 : vector<4x32xf32>
    %cst_18 = arith.constant 1.000000e+00 : f32
    %21 = vector.broadcast %cst_18 : f32 to vector<4x32xf32>
    %22 = arith.addf %20, %21 : vector<4x32xf32>
    %cst_19 = arith.constant 5.000000e-01 : f32
    %23 = vector.broadcast %cst_19 : f32 to vector<4x32xf32>
    %24 = arith.mulf %23, %22 : vector<4x32xf32>
    %cst_20 = arith.constant dense<0.000000e+00> : vector<4x256xf32>
    %25 = vector.multi_reduction <add>, %2, %cst_20 [1] : vector<4x32x256xf32> to vector<4x256xf32>
    %cst_21 = arith.constant 3.200000e+01 : f32
    %26 = vector.broadcast %cst_21 : f32 to vector<4x256xf32>
    %27 = arith.divf %25, %26 : vector<4x256xf32>
    %cst_22 = arith.constant dense<0xFF800000> : vector<4x256xf32>
    %28 = vector.multi_reduction <maximumf>, %2, %cst_22 [1] : vector<4x32x256xf32> to vector<4x256xf32>
    %29 = vector.shape_cast %2 : vector<4x32x256xf32> to vector<128x256xf32>
    %30 = tpu.transpose %29, [1, 0] : vector<128x256xf32> -> vector<256x128xf32>
    %31 = vector.shape_cast %30 : vector<256x128xf32> to vector<16x16x128xf32>
    %32 = tpu.concatenate %27, %28 in 0 : vector<4x256xf32>, vector<4x256xf32> -> vector<8x256xf32>
    %33 = tpu.transpose %32, [1, 0] : vector<8x256xf32> -> vector<256x8xf32>
    %34 = vector.shape_cast %33 : vector<256x8xf32> to vector<16x16x8xf32>
    %c3 = arith.constant 3 : index
    %c3_23 = arith.constant 3 : index
    %c0_24 = arith.constant 0 : index
    %35 = vector.load %arg13[%c3, %c3_23, %c0_24] : memref<22x22x136xf32, #tpu.memory_space<vmem>>, vector<16x16x128xf32>
    tpu.vector_store %arg13[%c3, %c3_23, %c0_24], %31 {strides = array<i32>} : memref<22x22x136xf32, #tpu.memory_space<vmem>>, vector<16x16x128xf32>,
    %c3_25 = arith.constant 3 : index
    %c3_26 = arith.constant 3 : index
    %c128 = arith.constant 128 : index
    %36 = vector.load %arg13[%c3_25, %c3_26, %c128] : memref<22x22x136xf32, #tpu.memory_space<vmem>>, vector<16x16x8xf32>
    tpu.vector_store %arg13[%c3_25, %c3_26, %c128], %34 {strides = array<i32>} : memref<22x22x136xf32, #tpu.memory_space<vmem>>, vector<16x16x8xf32>,
    %c3_27 = arith.constant 3 : index
    %c6 = arith.constant 6 : index
    %c0_28 = arith.constant 0 : index
    %37 = vector.load %arg13[%c3_27, %c6, %c0_28] : memref<22x22x136xf32, #tpu.memory_space<vmem>>, vector<16x1x136xf32>
    %c3_29 = arith.constant 3 : index
    %c5 = arith.constant 5 : index
    %c0_30 = arith.constant 0 : index
    %38 = vector.load %arg13[%c3_29, %c5, %c0_30] : memref<22x22x136xf32, #tpu.memory_space<vmem>>, vector<16x1x136xf32>
    %c3_31 = arith.constant 3 : index
    %c4 = arith.constant 4 : index
    %c0_32 = arith.constant 0 : index
    %39 = vector.load %arg13[%c3_31, %c4, %c0_32] : memref<22x22x136xf32, #tpu.memory_space<vmem>>, vector<16x1x136xf32>
    %40 = tpu.concatenate %37, %38, %39 in 1 : vector<16x1x136xf32>, vector<16x1x136xf32>, vector<16x1x136xf32> -> vector<16x3x136xf32>
    %c3_33 = arith.constant 3 : index
    %c0_34 = arith.constant 0 : index
    %c0_35 = arith.constant 0 : index
    %41 = vector.load %arg13[%c3_33, %c0_34, %c0_35] : memref<22x22x136xf32, #tpu.memory_space<vmem>>, vector<16x3x136xf32>
    tpu.vector_store %arg13[%c3_33, %c0_34, %c0_35], %40 {strides = array<i32>} : memref<22x22x136xf32, #tpu.memory_space<vmem>>, vector<16x3x136xf32>,
    %c3_36 = arith.constant 3 : index
    %c17 = arith.constant 17 : index
    %c0_37 = arith.constant 0 : index
    %42 = vector.load %arg13[%c3_36, %c17, %c0_37] : memref<22x22x136xf32, #tpu.memory_space<vmem>>, vector<16x1x136xf32>
    %c3_38 = arith.constant 3 : index
    %c16 = arith.constant 16 : index
    %c0_39 = arith.constant 0 : index
    %43 = vector.load %arg13[%c3_38, %c16, %c0_39] : memref<22x22x136xf32, #tpu.memory_space<vmem>>, vector<16x1x136xf32>
    %c3_40 = arith.constant 3 : index
    %c15 = arith.constant 15 : index
    %c0_41 = arith.constant 0 : index
    %44 = vector.load %arg13[%c3_40, %c15, %c0_41] : memref<22x22x136xf32, #tpu.memory_space<vmem>>, vector<16x1x136xf32>
    %45 = tpu.concatenate %42, %43, %44 in 1 : vector<16x1x136xf32>, vector<16x1x136xf32>, vector<16x1x136xf32> -> vector<16x3x136xf32>
    %c3_42 = arith.constant 3 : index
    %c19 = arith.constant 19 : index
    %c0_43 = arith.constant 0 : index
    %46 = vector.load %arg13[%c3_42, %c19, %c0_43] : memref<22x22x136xf32, #tpu.memory_space<vmem>>, vector<16x3x136xf32>
    tpu.vector_store %arg13[%c3_42, %c19, %c0_43], %45 {strides = array<i32>} : memref<22x22x136xf32, #tpu.memory_space<vmem>>, vector<16x3x136xf32>,
    %c6_44 = arith.constant 6 : index
    %c0_45 = arith.constant 0 : index
    %c0_46 = arith.constant 0 : index
    %47 = vector.load %arg13[%c6_44, %c0_45, %c0_46] : memref<22x22x136xf32, #tpu.memory_space<vmem>>, vector<1x22x136xf32>
    %c5_47 = arith.constant 5 : index
    %c0_48 = arith.constant 0 : index
    %c0_49 = arith.constant 0 : index
    %48 = vector.load %arg13[%c5_47, %c0_48, %c0_49] : memref<22x22x136xf32, #tpu.memory_space<vmem>>, vector<1x22x136xf32>
    %c4_50 = arith.constant 4 : index
    %c0_51 = arith.constant 0 : index
    %c0_52 = arith.constant 0 : index
    %49 = vector.load %arg13[%c4_50, %c0_51, %c0_52] : memref<22x22x136xf32, #tpu.memory_space<vmem>>, vector<1x22x136xf32>
    %50 = tpu.concatenate %47, %48, %49 in 0 : vector<1x22x136xf32>, vector<1x22x136xf32>, vector<1x22x136xf32> -> vector<3x22x136xf32>
    %c0_53 = arith.constant 0 : index
    %c0_54 = arith.constant 0 : index
    %c0_55 = arith.constant 0 : index
    %51 = vector.load %arg13[%c0_53, %c0_54, %c0_55] : memref<22x22x136xf32, #tpu.memory_space<vmem>>, vector<3x22x136xf32>
    tpu.vector_store %arg13[%c0_53, %c0_54, %c0_55], %50 {strides = array<i32>} : memref<22x22x136xf32, #tpu.memory_space<vmem>>, vector<3x22x136xf32>,
    %c17_56 = arith.constant 17 : index
    %c0_57 = arith.constant 0 : index
    %c0_58 = arith.constant 0 : index
    %52 = vector.load %arg13[%c17_56, %c0_57, %c0_58] : memref<22x22x136xf32, #tpu.memory_space<vmem>>, vector<1x22x136xf32>
    %c16_59 = arith.constant 16 : index
    %c0_60 = arith.constant 0 : index
    %c0_61 = arith.constant 0 : index
    %53 = vector.load %arg13[%c16_59, %c0_60, %c0_61] : memref<22x22x136xf32, #tpu.memory_space<vmem>>, vector<1x22x136xf32>
    %c15_62 = arith.constant 15 : index
    %c0_63 = arith.constant 0 : index
    %c0_64 = arith.constant 0 : index
    %54 = vector.load %arg13[%c15_62, %c0_63, %c0_64] : memref<22x22x136xf32, #tpu.memory_space<vmem>>, vector<1x22x136xf32>
    %55 = tpu.concatenate %52, %53, %54 in 0 : vector<1x22x136xf32>, vector<1x22x136xf32>, vector<1x22x136xf32> -> vector<3x22x136xf32>
    %c19_65 = arith.constant 19 : index
    %c0_66 = arith.constant 0 : index
    %c0_67 = arith.constant 0 : index
    %56 = vector.load %arg13[%c19_65, %c0_66, %c0_67] : memref<22x22x136xf32, #tpu.memory_space<vmem>>, vector<3x22x136xf32>
    tpu.vector_store %arg13[%c19_65, %c0_66, %c0_67], %55 {strides = array<i32>} : memref<22x22x136xf32, #tpu.memory_space<vmem>>, vector<3x22x136xf32>,
    %cst_68 = arith.constant 0.000000e+00 : f32
    %57 = vector.broadcast %cst_68 : f32 to vector<8x16x136xf32>
    %c0_69 = arith.constant 0 : index
    %c0_70 = arith.constant 0 : index
    %c0_71 = arith.constant 0 : index
    %58 = vector.load %arg13[%c0_69, %c0_70, %c0_71] : memref<22x22x136xf32, #tpu.memory_space<vmem>>, vector<8x22x136xf32>
    %c0_72 = arith.constant 0 : index
    %c0_73 = arith.constant 0 : index
    %c0_74 = arith.constant 0 : index
    %59 = vector.load %arg7[%c0_72, %c0_73, %c0_74] : memref<49x1x136xf32, #tpu.memory_space<vmem>>, vector<1x1x136xf32>
    %60 = vector.shape_cast %59 : vector<1x1x136xf32> to vector<1x136xf32>
    %61 = vector.extract_strided_slice %58 {offsets = [0, 0, 0], sizes = [8, 16, 136], strides = [1, 1, 1]} : vector<8x22x136xf32> to vector<8x16x136xf32>
    %62 = vector.shape_cast %60 : vector<1x136xf32> to vector<1x1x136xf32>
    %63 = vector.broadcast %62 : vector<1x1x136xf32> to vector<8x16x136xf32>
    %64 = arith.mulf %63, %61 : vector<8x16x136xf32>
    %65 = arith.addf %57, %64 : vector<8x16x136xf32>
    %c1 = arith.constant 1 : index
    %c0_75 = arith.constant 0 : index
    %c0_76 = arith.constant 0 : index
    %66 = vector.load %arg7[%c1, %c0_75, %c0_76] : memref<49x1x136xf32, #tpu.memory_space<vmem>>, vector<1x1x136xf32>
    %67 = vector.shape_cast %66 : vector<1x1x136xf32> to vector<1x136xf32>
    %68 = vector.extract_strided_slice %58 {offsets = [0, 1, 0], sizes = [8, 16, 136], strides = [1, 1, 1]} : vector<8x22x136xf32> to vector<8x16x136xf32>
    %69 = vector.shape_cast %67 : vector<1x136xf32> to vector<1x1x136xf32>
    %70 = vector.broadcast %69 : vector<1x1x136xf32> to vector<8x16x136xf32>
    %71 = arith.mulf %70, %68 : vector<8x16x136xf32>
    %72 = arith.addf %65, %71 : vector<8x16x136xf32>
    %c2 = arith.constant 2 : index
    %c0_77 = arith.constant 0 : index
    %c0_78 = arith.constant 0 : index
    %73 = vector.load %arg7[%c2, %c0_77, %c0_78] : memref<49x1x136xf32, #tpu.memory_space<vmem>>, vector<1x1x136xf32>
    %74 = vector.shape_cast %73 : vector<1x1x136xf32> to vector<1x136xf32>
    %75 = vector.extract_strided_slice %58 {offsets = [0, 2, 0], sizes = [8, 16, 136], strides = [1, 1, 1]} : vector<8x22x136xf32> to vector<8x16x136xf32>
    %76 = vector.shape_cast %74 : vector<1x136xf32> to vector<1x1x136xf32>
    %77 = vector.broadcast %76 : vector<1x1x136xf32> to vector<8x16x136xf32>
    %78 = arith.mulf %77, %75 : vector<8x16x136xf32>
    %79 = arith.addf %72, %78 : vector<8x16x136xf32>
    %c3_79 = arith.constant 3 : index
    %c0_80 = arith.constant 0 : index
    %c0_81 = arith.constant 0 : index
    %80 = vector.load %arg7[%c3_79, %c0_80, %c0_81] : memref<49x1x136xf32, #tpu.memory_space<vmem>>, vector<1x1x136xf32>
    %81 = vector.shape_cast %80 : vector<1x1x136xf32> to vector<1x136xf32>
    %82 = vector.extract_strided_slice %58 {offsets = [0, 3, 0], sizes = [8, 16, 136], strides = [1, 1, 1]} : vector<8x22x136xf32> to vector<8x16x136xf32>
    %83 = vector.shape_cast %81 : vector<1x136xf32> to vector<1x1x136xf32>
    %84 = vector.broadcast %83 : vector<1x1x136xf32> to vector<8x16x136xf32>
    %85 = arith.mulf %84, %82 : vector<8x16x136xf32>
    %86 = arith.addf %79, %85 : vector<8x16x136xf32>
    %c4_82 = arith.constant 4 : index
    %c0_83 = arith.constant 0 : index
    %c0_84 = arith.constant 0 : index
    %87 = vector.load %arg7[%c4_82, %c0_83, %c0_84] : memref<49x1x136xf32, #tpu.memory_space<vmem>>, vector<1x1x136xf32>
    %88 = vector.shape_cast %87 : vector<1x1x136xf32> to vector<1x136xf32>
    %89 = vector.extract_strided_slice %58 {offsets = [0, 4, 0], sizes = [8, 16, 136], strides = [1, 1, 1]} : vector<8x22x136xf32> to vector<8x16x136xf32>
    %90 = vector.shape_cast %88 : vector<1x136xf32> to vector<1x1x136xf32>
    %91 = vector.broadcast %90 : vector<1x1x136xf32> to vector<8x16x136xf32>
    %92 = arith.mulf %91, %89 : vector<8x16x136xf32>
    %93 = arith.addf %86, %92 : vector<8x16x136xf32>
    %c5_85 = arith.constant 5 : index
    %c0_86 = arith.constant 0 : index
    %c0_87 = arith.constant 0 : index
    %94 = vector.load %arg7[%c5_85, %c0_86, %c0_87] : memref<49x1x136xf32, #tpu.memory_space<vmem>>, vector<1x1x136xf32>
    %95 = vector.shape_cast %94 : vector<1x1x136xf32> to vector<1x136xf32>
    %96 = vector.extract_strided_slice %58 {offsets = [0, 5, 0], sizes = [8, 16, 136], strides = [1, 1, 1]} : vector<8x22x136xf32> to vector<8x16x136xf32>
    %97 = vector.shape_cast %95 : vector<1x136xf32> to vector<1x1x136xf32>
    %98 = vector.broadcast %97 : vector<1x1x136xf32> to vector<8x16x136xf32>
    %99 = arith.mulf %98, %96 : vector<8x16x136xf32>
    %100 = arith.addf %93, %99 : vector<8x16x136xf32>
    %c6_88 = arith.constant 6 : index
    %c0_89 = arith.constant 0 : index
    %c0_90 = arith.constant 0 : index
    %101 = vector.load %arg7[%c6_88, %c0_89, %c0_90] : memref<49x1x136xf32, #tpu.memory_space<vmem>>, vector<1x1x136xf32>
    %102 = vector.shape_cast %101 : vector<1x1x136xf32> to vector<1x136xf32>
    %103 = vector.extract_strided_slice %58 {offsets = [0, 6, 0], sizes = [8, 16, 136], strides = [1, 1, 1]} : vector<8x22x136xf32> to vector<8x16x136xf32>
    %104 = vector.shape_cast %102 : vector<1x136xf32> to vector<1x1x136xf32>
    %105 = vector.broadcast %104 : vector<1x1x136xf32> to vector<8x16x136xf32>
    %106 = arith.mulf %105, %103 : vector<8x16x136xf32>
    %107 = arith.addf %100, %106 : vector<8x16x136xf32>
    %c1_91 = arith.constant 1 : index
    %c0_92 = arith.constant 0 : index
    %c0_93 = arith.constant 0 : index
    %108 = vector.load %arg13[%c1_91, %c0_92, %c0_93] : memref<22x22x136xf32, #tpu.memory_space<vmem>>, vector<8x22x136xf32>
    %c7 = arith.constant 7 : index
    %c0_94 = arith.constant 0 : index
    %c0_95 = arith.constant 0 : index
    %109 = vector.load %arg7[%c7, %c0_94, %c0_95] : memref<49x1x136xf32, #tpu.memory_space<vmem>>, vector<1x1x136xf32>
    %110 = vector.shape_cast %109 : vector<1x1x136xf32> to vector<1x136xf32>
    %111 = vector.extract_strided_slice %108 {offsets = [0, 0, 0], sizes = [8, 16, 136], strides = [1, 1, 1]} : vector<8x22x136xf32> to vector<8x16x136xf32>
    %112 = vector.shape_cast %110 : vector<1x136xf32> to vector<1x1x136xf32>
    %113 = vector.broadcast %112 : vector<1x1x136xf32> to vector<8x16x136xf32>
    %114 = arith.mulf %113, %111 : vector<8x16x136xf32>
    %115 = arith.addf %107, %114 : vector<8x16x136xf32>
    %c8 = arith.constant 8 : index
    %c0_96 = arith.constant 0 : index
    %c0_97 = arith.constant 0 : index
    %116 = vector.load %arg7[%c8, %c0_96, %c0_97] : memref<49x1x136xf32, #tpu.memory_space<vmem>>, vector<1x1x136xf32>
    %117 = vector.shape_cast %116 : vector<1x1x136xf32> to vector<1x136xf32>
    %118 = vector.extract_strided_slice %108 {offsets = [0, 1, 0], sizes = [8, 16, 136], strides = [1, 1, 1]} : vector<8x22x136xf32> to vector<8x16x136xf32>
    %119 = vector.shape_cast %117 : vector<1x136xf32> to vector<1x1x136xf32>
    %120 = vector.broadcast %119 : vector<1x1x136xf32> to vector<8x16x136xf32>
    %121 = arith.mulf %120, %118 : vector<8x16x136xf32>
    %122 = arith.addf %115, %121 : vector<8x16x136xf32>
    %c9 = arith.constant 9 : index
    %c0_98 = arith.constant 0 : index
    %c0_99 = arith.constant 0 : index
    %123 = vector.load %arg7[%c9, %c0_98, %c0_99] : memref<49x1x136xf32, #tpu.memory_space<vmem>>, vector<1x1x136xf32>
    %124 = vector.shape_cast %123 : vector<1x1x136xf32> to vector<1x136xf32>
    %125 = vector.extract_strided_slice %108 {offsets = [0, 2, 0], sizes = [8, 16, 136], strides = [1, 1, 1]} : vector<8x22x136xf32> to vector<8x16x136xf32>
    %126 = vector.shape_cast %124 : vector<1x136xf32> to vector<1x1x136xf32>
    %127 = vector.broadcast %126 : vector<1x1x136xf32> to vector<8x16x136xf32>
    %128 = arith.mulf %127, %125 : vector<8x16x136xf32>
    %129 = arith.addf %122, %128 : vector<8x16x136xf32>
    %c10 = arith.constant 10 : index
    %c0_100 = arith.constant 0 : index
    %c0_101 = arith.constant 0 : index
    %130 = vector.load %arg7[%c10, %c0_100, %c0_101] : memref<49x1x136xf32, #tpu.memory_space<vmem>>, vector<1x1x136xf32>
    %131 = vector.shape_cast %130 : vector<1x1x136xf32> to vector<1x136xf32>
    %132 = vector.extract_strided_slice %108 {offsets = [0, 3, 0], sizes = [8, 16, 136], strides = [1, 1, 1]} : vector<8x22x136xf32> to vector<8x16x136xf32>
    %133 = vector.shape_cast %131 : vector<1x136xf32> to vector<1x1x136xf32>
    %134 = vector.broadcast %133 : vector<1x1x136xf32> to vector<8x16x136xf32>
    %135 = arith.mulf %134, %132 : vector<8x16x136xf32>
    %136 = arith.addf %129, %135 : vector<8x16x136xf32>
    %c11 = arith.constant 11 : index
    %c0_102 = arith.constant 0 : index
    %c0_103 = arith.constant 0 : index
    %137 = vector.load %arg7[%c11, %c0_102, %c0_103] : memref<49x1x136xf32, #tpu.memory_space<vmem>>, vector<1x1x136xf32>
    %138 = vector.shape_cast %137 : vector<1x1x136xf32> to vector<1x136xf32>
    %139 = vector.extract_strided_slice %108 {offsets = [0, 4, 0], sizes = [8, 16, 136], strides = [1, 1, 1]} : vector<8x22x136xf32> to vector<8x16x136xf32>
    %140 = vector.shape_cast %138 : vector<1x136xf32> to vector<1x1x136xf32>
    %141 = vector.broadcast %140 : vector<1x1x136xf32> to vector<8x16x136xf32>
    %142 = arith.mulf %141, %139 : vector<8x16x136xf32>
    %143 = arith.addf %136, %142 : vector<8x16x136xf32>
    %c12 = arith.constant 12 : index
    %c0_104 = arith.constant 0 : index
    %c0_105 = arith.constant 0 : index
    %144 = vector.load %arg7[%c12, %c0_104, %c0_105] : memref<49x1x136xf32, #tpu.memory_space<vmem>>, vector<1x1x136xf32>
    %145 = vector.shape_cast %144 : vector<1x1x136xf32> to vector<1x136xf32>
    %146 = vector.extract_strided_slice %108 {offsets = [0, 5, 0], sizes = [8, 16, 136], strides = [1, 1, 1]} : vector<8x22x136xf32> to vector<8x16x136xf32>
    %147 = vector.shape_cast %145 : vector<1x136xf32> to vector<1x1x136xf32>
    %148 = vector.broadcast %147 : vector<1x1x136xf32> to vector<8x16x136xf32>
    %149 = arith.mulf %148, %146 : vector<8x16x136xf32>
    %150 = arith.addf %143, %149 : vector<8x16x136xf32>
    %c13 = arith.constant 13 : index
    %c0_106 = arith.constant 0 : index
    %c0_107 = arith.constant 0 : index
    %151 = vector.load %arg7[%c13, %c0_106, %c0_107] : memref<49x1x136xf32, #tpu.memory_space<vmem>>, vector<1x1x136xf32>
    %152 = vector.shape_cast %151 : vector<1x1x136xf32> to vector<1x136xf32>
    %153 = vector.extract_strided_slice %108 {offsets = [0, 6, 0], sizes = [8, 16, 136], strides = [1, 1, 1]} : vector<8x22x136xf32> to vector<8x16x136xf32>
    %154 = vector.shape_cast %152 : vector<1x136xf32> to vector<1x1x136xf32>
    %155 = vector.broadcast %154 : vector<1x1x136xf32> to vector<8x16x136xf32>
    %156 = arith.mulf %155, %153 : vector<8x16x136xf32>
    %157 = arith.addf %150, %156 : vector<8x16x136xf32>
    %c2_108 = arith.constant 2 : index
    %c0_109 = arith.constant 0 : index
    %c0_110 = arith.constant 0 : index
    %158 = vector.load %arg13[%c2_108, %c0_109, %c0_110] : memref<22x22x136xf32, #tpu.memory_space<vmem>>, vector<8x22x136xf32>
    %c14 = arith.constant 14 : index
    %c0_111 = arith.constant 0 : index
    %c0_112 = arith.constant 0 : index
    %159 = vector.load %arg7[%c14, %c0_111, %c0_112] : memref<49x1x136xf32, #tpu.memory_space<vmem>>, vector<1x1x136xf32>
    %160 = vector.shape_cast %159 : vector<1x1x136xf32> to vector<1x136xf32>
    %161 = vector.extract_strided_slice %158 {offsets = [0, 0, 0], sizes = [8, 16, 136], strides = [1, 1, 1]} : vector<8x22x136xf32> to vector<8x16x136xf32>
    %162 = vector.shape_cast %160 : vector<1x136xf32> to vector<1x1x136xf32>
    %163 = vector.broadcast %162 : vector<1x1x136xf32> to vector<8x16x136xf32>
    %164 = arith.mulf %163, %161 : vector<8x16x136xf32>
    %165 = arith.addf %157, %164 : vector<8x16x136xf32>
    %c15_113 = arith.constant 15 : index
    %c0_114 = arith.constant 0 : index
    %c0_115 = arith.constant 0 : index
    %166 = vector.load %arg7[%c15_113, %c0_114, %c0_115] : memref<49x1x136xf32, #tpu.memory_space<vmem>>, vector<1x1x136xf32>
    %167 = vector.shape_cast %166 : vector<1x1x136xf32> to vector<1x136xf32>
    %168 = vector.extract_strided_slice %158 {offsets = [0, 1, 0], sizes = [8, 16, 136], strides = [1, 1, 1]} : vector<8x22x136xf32> to vector<8x16x136xf32>
    %169 = vector.shape_cast %167 : vector<1x136xf32> to vector<1x1x136xf32>
    %170 = vector.broadcast %169 : vector<1x1x136xf32> to vector<8x16x136xf32>
    %171 = arith.mulf %170, %168 : vector<8x16x136xf32>
    %172 = arith.addf %165, %171 : vector<8x16x136xf32>
    %c16_116 = arith.constant 16 : index
    %c0_117 = arith.constant 0 : index
    %c0_118 = arith.constant 0 : index
    %173 = vector.load %arg7[%c16_116, %c0_117, %c0_118] : memref<49x1x136xf32, #tpu.memory_space<vmem>>, vector<1x1x136xf32>
    %174 = vector.shape_cast %173 : vector<1x1x136xf32> to vector<1x136xf32>
    %175 = vector.extract_strided_slice %158 {offsets = [0, 2, 0], sizes = [8, 16, 136], strides = [1, 1, 1]} : vector<8x22x136xf32> to vector<8x16x136xf32>
    %176 = vector.shape_cast %174 : vector<1x136xf32> to vector<1x1x136xf32>
    %177 = vector.broadcast %176 : vector<1x1x136xf32> to vector<8x16x136xf32>
    %178 = arith.mulf %177, %175 : vector<8x16x136xf32>
    %179 = arith.addf %172, %178 : vector<8x16x136xf32>
    %c17_119 = arith.constant 17 : index
    %c0_120 = arith.constant 0 : index
    %c0_121 = arith.constant 0 : index
    %180 = vector.load %arg7[%c17_119, %c0_120, %c0_121] : memref<49x1x136xf32, #tpu.memory_space<vmem>>, vector<1x1x136xf32>
    %181 = vector.shape_cast %180 : vector<1x1x136xf32> to vector<1x136xf32>
    %182 = vector.extract_strided_slice %158 {offsets = [0, 3, 0], sizes = [8, 16, 136], strides = [1, 1, 1]} : vector<8x22x136xf32> to vector<8x16x136xf32>
    %183 = vector.shape_cast %181 : vector<1x136xf32> to vector<1x1x136xf32>
    %184 = vector.broadcast %183 : vector<1x1x136xf32> to vector<8x16x136xf32>
    %185 = arith.mulf %184, %182 : vector<8x16x136xf32>
    %186 = arith.addf %179, %185 : vector<8x16x136xf32>
    %c18 = arith.constant 18 : index
    %c0_122 = arith.constant 0 : index
    %c0_123 = arith.constant 0 : index
    %187 = vector.load %arg7[%c18, %c0_122, %c0_123] : memref<49x1x136xf32, #tpu.memory_space<vmem>>, vector<1x1x136xf32>
    %188 = vector.shape_cast %187 : vector<1x1x136xf32> to vector<1x136xf32>
    %189 = vector.extract_strided_slice %158 {offsets = [0, 4, 0], sizes = [8, 16, 136], strides = [1, 1, 1]} : vector<8x22x136xf32> to vector<8x16x136xf32>
    %190 = vector.shape_cast %188 : vector<1x136xf32> to vector<1x1x136xf32>
    %191 = vector.broadcast %190 : vector<1x1x136xf32> to vector<8x16x136xf32>
    %192 = arith.mulf %191, %189 : vector<8x16x136xf32>
    %193 = arith.addf %186, %192 : vector<8x16x136xf32>
    %c19_124 = arith.constant 19 : index
    %c0_125 = arith.constant 0 : index
    %c0_126 = arith.constant 0 : index
    %194 = vector.load %arg7[%c19_124, %c0_125, %c0_126] : memref<49x1x136xf32, #tpu.memory_space<vmem>>, vector<1x1x136xf32>
    %195 = vector.shape_cast %194 : vector<1x1x136xf32> to vector<1x136xf32>
    %196 = vector.extract_strided_slice %158 {offsets = [0, 5, 0], sizes = [8, 16, 136], strides = [1, 1, 1]} : vector<8x22x136xf32> to vector<8x16x136xf32>
    %197 = vector.shape_cast %195 : vector<1x136xf32> to vector<1x1x136xf32>
    %198 = vector.broadcast %197 : vector<1x1x136xf32> to vector<8x16x136xf32>
    %199 = arith.mulf %198, %196 : vector<8x16x136xf32>
    %200 = arith.addf %193, %199 : vector<8x16x136xf32>
    %c20 = arith.constant 20 : index
    %c0_127 = arith.constant 0 : index
    %c0_128 = arith.constant 0 : index
    %201 = vector.load %arg7[%c20, %c0_127, %c0_128] : memref<49x1x136xf32, #tpu.memory_space<vmem>>, vector<1x1x136xf32>
    %202 = vector.shape_cast %201 : vector<1x1x136xf32> to vector<1x136xf32>
    %203 = vector.extract_strided_slice %158 {offsets = [0, 6, 0], sizes = [8, 16, 136], strides = [1, 1, 1]} : vector<8x22x136xf32> to vector<8x16x136xf32>
    %204 = vector.shape_cast %202 : vector<1x136xf32> to vector<1x1x136xf32>
    %205 = vector.broadcast %204 : vector<1x1x136xf32> to vector<8x16x136xf32>
    %206 = arith.mulf %205, %203 : vector<8x16x136xf32>
    %207 = arith.addf %200, %206 : vector<8x16x136xf32>
    %c3_129 = arith.constant 3 : index
    %c0_130 = arith.constant 0 : index
    %c0_131 = arith.constant 0 : index
    %208 = vector.load %arg13[%c3_129, %c0_130, %c0_131] : memref<22x22x136xf32, #tpu.memory_space<vmem>>, vector<8x22x136xf32>
    %c21 = arith.constant 21 : index
    %c0_132 = arith.constant 0 : index
    %c0_133 = arith.constant 0 : index
    %209 = vector.load %arg7[%c21, %c0_132, %c0_133] : memref<49x1x136xf32, #tpu.memory_space<vmem>>, vector<1x1x136xf32>
    %210 = vector.shape_cast %209 : vector<1x1x136xf32> to vector<1x136xf32>
    %211 = vector.extract_strided_slice %208 {offsets = [0, 0, 0], sizes = [8, 16, 136], strides = [1, 1, 1]} : vector<8x22x136xf32> to vector<8x16x136xf32>
    %212 = vector.shape_cast %210 : vector<1x136xf32> to vector<1x1x136xf32>
    %213 = vector.broadcast %212 : vector<1x1x136xf32> to vector<8x16x136xf32>
    %214 = arith.mulf %213, %211 : vector<8x16x136xf32>
    %215 = arith.addf %207, %214 : vector<8x16x136xf32>
    %c22 = arith.constant 22 : index
    %c0_134 = arith.constant 0 : index
    %c0_135 = arith.constant 0 : index
    %216 = vector.load %arg7[%c22, %c0_134, %c0_135] : memref<49x1x136xf32, #tpu.memory_space<vmem>>, vector<1x1x136xf32>
    %217 = vector.shape_cast %216 : vector<1x1x136xf32> to vector<1x136xf32>
    %218 = vector.extract_strided_slice %208 {offsets = [0, 1, 0], sizes = [8, 16, 136], strides = [1, 1, 1]} : vector<8x22x136xf32> to vector<8x16x136xf32>
    %219 = vector.shape_cast %217 : vector<1x136xf32> to vector<1x1x136xf32>
    %220 = vector.broadcast %219 : vector<1x1x136xf32> to vector<8x16x136xf32>
    %221 = arith.mulf %220, %218 : vector<8x16x136xf32>
    %222 = arith.addf %215, %221 : vector<8x16x136xf32>
    %c23 = arith.constant 23 : index
    %c0_136 = arith.constant 0 : index
    %c0_137 = arith.constant 0 : index
    %223 = vector.load %arg7[%c23, %c0_136, %c0_137] : memref<49x1x136xf32, #tpu.memory_space<vmem>>, vector<1x1x136xf32>
    %224 = vector.shape_cast %223 : vector<1x1x136xf32> to vector<1x136xf32>
    %225 = vector.extract_strided_slice %208 {offsets = [0, 2, 0], sizes = [8, 16, 136], strides = [1, 1, 1]} : vector<8x22x136xf32> to vector<8x16x136xf32>
    %226 = vector.shape_cast %224 : vector<1x136xf32> to vector<1x1x136xf32>
    %227 = vector.broadcast %226 : vector<1x1x136xf32> to vector<8x16x136xf32>
    %228 = arith.mulf %227, %225 : vector<8x16x136xf32>
    %229 = arith.addf %222, %228 : vector<8x16x136xf32>
    %c24 = arith.constant 24 : index
    %c0_138 = arith.constant 0 : index
    %c0_139 = arith.constant 0 : index
    %230 = vector.load %arg7[%c24, %c0_138, %c0_139] : memref<49x1x136xf32, #tpu.memory_space<vmem>>, vector<1x1x136xf32>
    %231 = vector.shape_cast %230 : vector<1x1x136xf32> to vector<1x136xf32>
    %232 = vector.extract_strided_slice %208 {offsets = [0, 3, 0], sizes = [8, 16, 136], strides = [1, 1, 1]} : vector<8x22x136xf32> to vector<8x16x136xf32>
    %233 = vector.shape_cast %231 : vector<1x136xf32> to vector<1x1x136xf32>
    %234 = vector.broadcast %233 : vector<1x1x136xf32> to vector<8x16x136xf32>
    %235 = arith.mulf %234, %232 : vector<8x16x136xf32>
    %236 = arith.addf %229, %235 : vector<8x16x136xf32>
    %c25 = arith.constant 25 : index
    %c0_140 = arith.constant 0 : index
    %c0_141 = arith.constant 0 : index
    %237 = vector.load %arg7[%c25, %c0_140, %c0_141] : memref<49x1x136xf32, #tpu.memory_space<vmem>>, vector<1x1x136xf32>
    %238 = vector.shape_cast %237 : vector<1x1x136xf32> to vector<1x136xf32>
    %239 = vector.extract_strided_slice %208 {offsets = [0, 4, 0], sizes = [8, 16, 136], strides = [1, 1, 1]} : vector<8x22x136xf32> to vector<8x16x136xf32>
    %240 = vector.shape_cast %238 : vector<1x136xf32> to vector<1x1x136xf32>
    %241 = vector.broadcast %240 : vector<1x1x136xf32> to vector<8x16x136xf32>
    %242 = arith.mulf %241, %239 : vector<8x16x136xf32>
    %243 = arith.addf %236, %242 : vector<8x16x136xf32>
    %c26 = arith.constant 26 : index
    %c0_142 = arith.constant 0 : index
    %c0_143 = arith.constant 0 : index
    %244 = vector.load %arg7[%c26, %c0_142, %c0_143] : memref<49x1x136xf32, #tpu.memory_space<vmem>>, vector<1x1x136xf32>
    %245 = vector.shape_cast %244 : vector<1x1x136xf32> to vector<1x136xf32>
    %246 = vector.extract_strided_slice %208 {offsets = [0, 5, 0], sizes = [8, 16, 136], strides = [1, 1, 1]} : vector<8x22x136xf32> to vector<8x16x136xf32>
    %247 = vector.shape_cast %245 : vector<1x136xf32> to vector<1x1x136xf32>
    %248 = vector.broadcast %247 : vector<1x1x136xf32> to vector<8x16x136xf32>
    %249 = arith.mulf %248, %246 : vector<8x16x136xf32>
    %250 = arith.addf %243, %249 : vector<8x16x136xf32>
    %c27 = arith.constant 27 : index
    %c0_144 = arith.constant 0 : index
    %c0_145 = arith.constant 0 : index
    %251 = vector.load %arg7[%c27, %c0_144, %c0_145] : memref<49x1x136xf32, #tpu.memory_space<vmem>>, vector<1x1x136xf32>
    %252 = vector.shape_cast %251 : vector<1x1x136xf32> to vector<1x136xf32>
    %253 = vector.extract_strided_slice %208 {offsets = [0, 6, 0], sizes = [8, 16, 136], strides = [1, 1, 1]} : vector<8x22x136xf32> to vector<8x16x136xf32>
    %254 = vector.shape_cast %252 : vector<1x136xf32> to vector<1x1x136xf32>
    %255 = vector.broadcast %254 : vector<1x1x136xf32> to vector<8x16x136xf32>
    %256 = arith.mulf %255, %253 : vector<8x16x136xf32>
    %257 = arith.addf %250, %256 : vector<8x16x136xf32>
    %c4_146 = arith.constant 4 : index
    %c0_147 = arith.constant 0 : index
    %c0_148 = arith.constant 0 : index
    %258 = vector.load %arg13[%c4_146, %c0_147, %c0_148] : memref<22x22x136xf32, #tpu.memory_space<vmem>>, vector<8x22x136xf32>
    %c28 = arith.constant 28 : index
    %c0_149 = arith.constant 0 : index
    %c0_150 = arith.constant 0 : index
    %259 = vector.load %arg7[%c28, %c0_149, %c0_150] : memref<49x1x136xf32, #tpu.memory_space<vmem>>, vector<1x1x136xf32>
    %260 = vector.shape_cast %259 : vector<1x1x136xf32> to vector<1x136xf32>
    %261 = vector.extract_strided_slice %258 {offsets = [0, 0, 0], sizes = [8, 16, 136], strides = [1, 1, 1]} : vector<8x22x136xf32> to vector<8x16x136xf32>
    %262 = vector.shape_cast %260 : vector<1x136xf32> to vector<1x1x136xf32>
    %263 = vector.broadcast %262 : vector<1x1x136xf32> to vector<8x16x136xf32>
    %264 = arith.mulf %263, %261 : vector<8x16x136xf32>
    %265 = arith.addf %257, %264 : vector<8x16x136xf32>
    %c29 = arith.constant 29 : index
    %c0_151 = arith.constant 0 : index
    %c0_152 = arith.constant 0 : index
    %266 = vector.load %arg7[%c29, %c0_151, %c0_152] : memref<49x1x136xf32, #tpu.memory_space<vmem>>, vector<1x1x136xf32>
    %267 = vector.shape_cast %266 : vector<1x1x136xf32> to vector<1x136xf32>
    %268 = vector.extract_strided_slice %258 {offsets = [0, 1, 0], sizes = [8, 16, 136], strides = [1, 1, 1]} : vector<8x22x136xf32> to vector<8x16x136xf32>
    %269 = vector.shape_cast %267 : vector<1x136xf32> to vector<1x1x136xf32>
    %270 = vector.broadcast %269 : vector<1x1x136xf32> to vector<8x16x136xf32>
    %271 = arith.mulf %270, %268 : vector<8x16x136xf32>
    %272 = arith.addf %265, %271 : vector<8x16x136xf32>
    %c30 = arith.constant 30 : index
    %c0_153 = arith.constant 0 : index
    %c0_154 = arith.constant 0 : index
    %273 = vector.load %arg7[%c30, %c0_153, %c0_154] : memref<49x1x136xf32, #tpu.memory_space<vmem>>, vector<1x1x136xf32>
    %274 = vector.shape_cast %273 : vector<1x1x136xf32> to vector<1x136xf32>
    %275 = vector.extract_strided_slice %258 {offsets = [0, 2, 0], sizes = [8, 16, 136], strides = [1, 1, 1]} : vector<8x22x136xf32> to vector<8x16x136xf32>
    %276 = vector.shape_cast %274 : vector<1x136xf32> to vector<1x1x136xf32>
    %277 = vector.broadcast %276 : vector<1x1x136xf32> to vector<8x16x136xf32>
    %278 = arith.mulf %277, %275 : vector<8x16x136xf32>
    %279 = arith.addf %272, %278 : vector<8x16x136xf32>
    %c31 = arith.constant 31 : index
    %c0_155 = arith.constant 0 : index
    %c0_156 = arith.constant 0 : index
    %280 = vector.load %arg7[%c31, %c0_155, %c0_156] : memref<49x1x136xf32, #tpu.memory_space<vmem>>, vector<1x1x136xf32>
    %281 = vector.shape_cast %280 : vector<1x1x136xf32> to vector<1x136xf32>
    %282 = vector.extract_strided_slice %258 {offsets = [0, 3, 0], sizes = [8, 16, 136], strides = [1, 1, 1]} : vector<8x22x136xf32> to vector<8x16x136xf32>
    %283 = vector.shape_cast %281 : vector<1x136xf32> to vector<1x1x136xf32>
    %284 = vector.broadcast %283 : vector<1x1x136xf32> to vector<8x16x136xf32>
    %285 = arith.mulf %284, %282 : vector<8x16x136xf32>
    %286 = arith.addf %279, %285 : vector<8x16x136xf32>
    %c32 = arith.constant 32 : index
    %c0_157 = arith.constant 0 : index
    %c0_158 = arith.constant 0 : index
    %287 = vector.load %arg7[%c32, %c0_157, %c0_158] : memref<49x1x136xf32, #tpu.memory_space<vmem>>, vector<1x1x136xf32>
    %288 = vector.shape_cast %287 : vector<1x1x136xf32> to vector<1x136xf32>
    %289 = vector.extract_strided_slice %258 {offsets = [0, 4, 0], sizes = [8, 16, 136], strides = [1, 1, 1]} : vector<8x22x136xf32> to vector<8x16x136xf32>
    %290 = vector.shape_cast %288 : vector<1x136xf32> to vector<1x1x136xf32>
    %291 = vector.broadcast %290 : vector<1x1x136xf32> to vector<8x16x136xf32>
    %292 = arith.mulf %291, %289 : vector<8x16x136xf32>
    %293 = arith.addf %286, %292 : vector<8x16x136xf32>
    %c33 = arith.constant 33 : index
    %c0_159 = arith.constant 0 : index
    %c0_160 = arith.constant 0 : index
    %294 = vector.load %arg7[%c33, %c0_159, %c0_160] : memref<49x1x136xf32, #tpu.memory_space<vmem>>, vector<1x1x136xf32>
    %295 = vector.shape_cast %294 : vector<1x1x136xf32> to vector<1x136xf32>
    %296 = vector.extract_strided_slice %258 {offsets = [0, 5, 0], sizes = [8, 16, 136], strides = [1, 1, 1]} : vector<8x22x136xf32> to vector<8x16x136xf32>
    %297 = vector.shape_cast %295 : vector<1x136xf32> to vector<1x1x136xf32>
    %298 = vector.broadcast %297 : vector<1x1x136xf32> to vector<8x16x136xf32>
    %299 = arith.mulf %298, %296 : vector<8x16x136xf32>
    %300 = arith.addf %293, %299 : vector<8x16x136xf32>
    %c34 = arith.constant 34 : index
    %c0_161 = arith.constant 0 : index
    %c0_162 = arith.constant 0 : index
    %301 = vector.load %arg7[%c34, %c0_161, %c0_162] : memref<49x1x136xf32, #tpu.memory_space<vmem>>, vector<1x1x136xf32>
    %302 = vector.shape_cast %301 : vector<1x1x136xf32> to vector<1x136xf32>
    %303 = vector.extract_strided_slice %258 {offsets = [0, 6, 0], sizes = [8, 16, 136], strides = [1, 1, 1]} : vector<8x22x136xf32> to vector<8x16x136xf32>
    %304 = vector.shape_cast %302 : vector<1x136xf32> to vector<1x1x136xf32>
    %305 = vector.broadcast %304 : vector<1x1x136xf32> to vector<8x16x136xf32>
    %306 = arith.mulf %305, %303 : vector<8x16x136xf32>
    %307 = arith.addf %300, %306 : vector<8x16x136xf32>
    %c5_163 = arith.constant 5 : index
    %c0_164 = arith.constant 0 : index
    %c0_165 = arith.constant 0 : index
    %308 = vector.load %arg13[%c5_163, %c0_164, %c0_165] : memref<22x22x136xf32, #tpu.memory_space<vmem>>, vector<8x22x136xf32>
    %c35 = arith.constant 35 : index
    %c0_166 = arith.constant 0 : index
    %c0_167 = arith.constant 0 : index
    %309 = vector.load %arg7[%c35, %c0_166, %c0_167] : memref<49x1x136xf32, #tpu.memory_space<vmem>>, vector<1x1x136xf32>
    %310 = vector.shape_cast %309 : vector<1x1x136xf32> to vector<1x136xf32>
    %311 = vector.extract_strided_slice %308 {offsets = [0, 0, 0], sizes = [8, 16, 136], strides = [1, 1, 1]} : vector<8x22x136xf32> to vector<8x16x136xf32>
    %312 = vector.shape_cast %310 : vector<1x136xf32> to vector<1x1x136xf32>
    %313 = vector.broadcast %312 : vector<1x1x136xf32> to vector<8x16x136xf32>
    %314 = arith.mulf %313, %311 : vector<8x16x136xf32>
    %315 = arith.addf %307, %314 : vector<8x16x136xf32>
    %c36 = arith.constant 36 : index
    %c0_168 = arith.constant 0 : index
    %c0_169 = arith.constant 0 : index
    %316 = vector.load %arg7[%c36, %c0_168, %c0_169] : memref<49x1x136xf32, #tpu.memory_space<vmem>>, vector<1x1x136xf32>
    %317 = vector.shape_cast %316 : vector<1x1x136xf32> to vector<1x136xf32>
    %318 = vector.extract_strided_slice %308 {offsets = [0, 1, 0], sizes = [8, 16, 136], strides = [1, 1, 1]} : vector<8x22x136xf32> to vector<8x16x136xf32>
    %319 = vector.shape_cast %317 : vector<1x136xf32> to vector<1x1x136xf32>
    %320 = vector.broadcast %319 : vector<1x1x136xf32> to vector<8x16x136xf32>
    %321 = arith.mulf %320, %318 : vector<8x16x136xf32>
    %322 = arith.addf %315, %321 : vector<8x16x136xf32>
    %c37 = arith.constant 37 : index
    %c0_170 = arith.constant 0 : index
    %c0_171 = arith.constant 0 : index
    %323 = vector.load %arg7[%c37, %c0_170, %c0_171] : memref<49x1x136xf32, #tpu.memory_space<vmem>>, vector<1x1x136xf32>
    %324 = vector.shape_cast %323 : vector<1x1x136xf32> to vector<1x136xf32>
    %325 = vector.extract_strided_slice %308 {offsets = [0, 2, 0], sizes = [8, 16, 136], strides = [1, 1, 1]} : vector<8x22x136xf32> to vector<8x16x136xf32>
    %326 = vector.shape_cast %324 : vector<1x136xf32> to vector<1x1x136xf32>
    %327 = vector.broadcast %326 : vector<1x1x136xf32> to vector<8x16x136xf32>
    %328 = arith.mulf %327, %325 : vector<8x16x136xf32>
    %329 = arith.addf %322, %328 : vector<8x16x136xf32>
    %c38 = arith.constant 38 : index
    %c0_172 = arith.constant 0 : index
    %c0_173 = arith.constant 0 : index
    %330 = vector.load %arg7[%c38, %c0_172, %c0_173] : memref<49x1x136xf32, #tpu.memory_space<vmem>>, vector<1x1x136xf32>
    %331 = vector.shape_cast %330 : vector<1x1x136xf32> to vector<1x136xf32>
    %332 = vector.extract_strided_slice %308 {offsets = [0, 3, 0], sizes = [8, 16, 136], strides = [1, 1, 1]} : vector<8x22x136xf32> to vector<8x16x136xf32>
    %333 = vector.shape_cast %331 : vector<1x136xf32> to vector<1x1x136xf32>
    %334 = vector.broadcast %333 : vector<1x1x136xf32> to vector<8x16x136xf32>
    %335 = arith.mulf %334, %332 : vector<8x16x136xf32>
    %336 = arith.addf %329, %335 : vector<8x16x136xf32>
    %c39 = arith.constant 39 : index
    %c0_174 = arith.constant 0 : index
    %c0_175 = arith.constant 0 : index
    %337 = vector.load %arg7[%c39, %c0_174, %c0_175] : memref<49x1x136xf32, #tpu.memory_space<vmem>>, vector<1x1x136xf32>
    %338 = vector.shape_cast %337 : vector<1x1x136xf32> to vector<1x136xf32>
    %339 = vector.extract_strided_slice %308 {offsets = [0, 4, 0], sizes = [8, 16, 136], strides = [1, 1, 1]} : vector<8x22x136xf32> to vector<8x16x136xf32>
    %340 = vector.shape_cast %338 : vector<1x136xf32> to vector<1x1x136xf32>
    %341 = vector.broadcast %340 : vector<1x1x136xf32> to vector<8x16x136xf32>
    %342 = arith.mulf %341, %339 : vector<8x16x136xf32>
    %343 = arith.addf %336, %342 : vector<8x16x136xf32>
    %c40 = arith.constant 40 : index
    %c0_176 = arith.constant 0 : index
    %c0_177 = arith.constant 0 : index
    %344 = vector.load %arg7[%c40, %c0_176, %c0_177] : memref<49x1x136xf32, #tpu.memory_space<vmem>>, vector<1x1x136xf32>
    %345 = vector.shape_cast %344 : vector<1x1x136xf32> to vector<1x136xf32>
    %346 = vector.extract_strided_slice %308 {offsets = [0, 5, 0], sizes = [8, 16, 136], strides = [1, 1, 1]} : vector<8x22x136xf32> to vector<8x16x136xf32>
    %347 = vector.shape_cast %345 : vector<1x136xf32> to vector<1x1x136xf32>
    %348 = vector.broadcast %347 : vector<1x1x136xf32> to vector<8x16x136xf32>
    %349 = arith.mulf %348, %346 : vector<8x16x136xf32>
    %350 = arith.addf %343, %349 : vector<8x16x136xf32>
    %c41 = arith.constant 41 : index
    %c0_178 = arith.constant 0 : index
    %c0_179 = arith.constant 0 : index
    %351 = vector.load %arg7[%c41, %c0_178, %c0_179] : memref<49x1x136xf32, #tpu.memory_space<vmem>>, vector<1x1x136xf32>
    %352 = vector.shape_cast %351 : vector<1x1x136xf32> to vector<1x136xf32>
    %353 = vector.extract_strided_slice %308 {offsets = [0, 6, 0], sizes = [8, 16, 136], strides = [1, 1, 1]} : vector<8x22x136xf32> to vector<8x16x136xf32>
    %354 = vector.shape_cast %352 : vector<1x136xf32> to vector<1x1x136xf32>
    %355 = vector.broadcast %354 : vector<1x1x136xf32> to vector<8x16x136xf32>
    %356 = arith.mulf %355, %353 : vector<8x16x136xf32>
    %357 = arith.addf %350, %356 : vector<8x16x136xf32>
    %c6_180 = arith.constant 6 : index
    %c0_181 = arith.constant 0 : index
    %c0_182 = arith.constant 0 : index
    %358 = vector.load %arg13[%c6_180, %c0_181, %c0_182] : memref<22x22x136xf32, #tpu.memory_space<vmem>>, vector<8x22x136xf32>
    %c42 = arith.constant 42 : index
    %c0_183 = arith.constant 0 : index
    %c0_184 = arith.constant 0 : index
    %359 = vector.load %arg7[%c42, %c0_183, %c0_184] : memref<49x1x136xf32, #tpu.memory_space<vmem>>, vector<1x1x136xf32>
    %360 = vector.shape_cast %359 : vector<1x1x136xf32> to vector<1x136xf32>
    %361 = vector.extract_strided_slice %358 {offsets = [0, 0, 0], sizes = [8, 16, 136], strides = [1, 1, 1]} : vector<8x22x136xf32> to vector<8x16x136xf32>
    %362 = vector.shape_cast %360 : vector<1x136xf32> to vector<1x1x136xf32>
    %363 = vector.broadcast %362 : vector<1x1x136xf32> to vector<8x16x136xf32>
    %364 = arith.mulf %363, %361 : vector<8x16x136xf32>
    %365 = arith.addf %357, %364 : vector<8x16x136xf32>
    %c43 = arith.constant 43 : index
    %c0_185 = arith.constant 0 : index
    %c0_186 = arith.constant 0 : index
    %366 = vector.load %arg7[%c43, %c0_185, %c0_186] : memref<49x1x136xf32, #tpu.memory_space<vmem>>, vector<1x1x136xf32>
    %367 = vector.shape_cast %366 : vector<1x1x136xf32> to vector<1x136xf32>
    %368 = vector.extract_strided_slice %358 {offsets = [0, 1, 0], sizes = [8, 16, 136], strides = [1, 1, 1]} : vector<8x22x136xf32> to vector<8x16x136xf32>
    %369 = vector.shape_cast %367 : vector<1x136xf32> to vector<1x1x136xf32>
    %370 = vector.broadcast %369 : vector<1x1x136xf32> to vector<8x16x136xf32>
    %371 = arith.mulf %370, %368 : vector<8x16x136xf32>
    %372 = arith.addf %365, %371 : vector<8x16x136xf32>
    %c44 = arith.constant 44 : index
    %c0_187 = arith.constant 0 : index
    %c0_188 = arith.constant 0 : index
    %373 = vector.load %arg7[%c44, %c0_187, %c0_188] : memref<49x1x136xf32, #tpu.memory_space<vmem>>, vector<1x1x136xf32>
    %374 = vector.shape_cast %373 : vector<1x1x136xf32> to vector<1x136xf32>
    %375 = vector.extract_strided_slice %358 {offsets = [0, 2, 0], sizes = [8, 16, 136], strides = [1, 1, 1]} : vector<8x22x136xf32> to vector<8x16x136xf32>
    %376 = vector.shape_cast %374 : vector<1x136xf32> to vector<1x1x136xf32>
    %377 = vector.broadcast %376 : vector<1x1x136xf32> to vector<8x16x136xf32>
    %378 = arith.mulf %377, %375 : vector<8x16x136xf32>
    %379 = arith.addf %372, %378 : vector<8x16x136xf32>
    %c45 = arith.constant 45 : index
    %c0_189 = arith.constant 0 : index
    %c0_190 = arith.constant 0 : index
    %380 = vector.load %arg7[%c45, %c0_189, %c0_190] : memref<49x1x136xf32, #tpu.memory_space<vmem>>, vector<1x1x136xf32>
    %381 = vector.shape_cast %380 : vector<1x1x136xf32> to vector<1x136xf32>
    %382 = vector.extract_strided_slice %358 {offsets = [0, 3, 0], sizes = [8, 16, 136], strides = [1, 1, 1]} : vector<8x22x136xf32> to vector<8x16x136xf32>
    %383 = vector.shape_cast %381 : vector<1x136xf32> to vector<1x1x136xf32>
    %384 = vector.broadcast %383 : vector<1x1x136xf32> to vector<8x16x136xf32>
    %385 = arith.mulf %384, %382 : vector<8x16x136xf32>
    %386 = arith.addf %379, %385 : vector<8x16x136xf32>
    %c46 = arith.constant 46 : index
    %c0_191 = arith.constant 0 : index
    %c0_192 = arith.constant 0 : index
    %387 = vector.load %arg7[%c46, %c0_191, %c0_192] : memref<49x1x136xf32, #tpu.memory_space<vmem>>, vector<1x1x136xf32>
    %388 = vector.shape_cast %387 : vector<1x1x136xf32> to vector<1x136xf32>
    %389 = vector.extract_strided_slice %358 {offsets = [0, 4, 0], sizes = [8, 16, 136], strides = [1, 1, 1]} : vector<8x22x136xf32> to vector<8x16x136xf32>
    %390 = vector.shape_cast %388 : vector<1x136xf32> to vector<1x1x136xf32>
    %391 = vector.broadcast %390 : vector<1x1x136xf32> to vector<8x16x136xf32>
    %392 = arith.mulf %391, %389 : vector<8x16x136xf32>
    %393 = arith.addf %386, %392 : vector<8x16x136xf32>
    %c47 = arith.constant 47 : index
    %c0_193 = arith.constant 0 : index
    %c0_194 = arith.constant 0 : index
    %394 = vector.load %arg7[%c47, %c0_193, %c0_194] : memref<49x1x136xf32, #tpu.memory_space<vmem>>, vector<1x1x136xf32>
    %395 = vector.shape_cast %394 : vector<1x1x136xf32> to vector<1x136xf32>
    %396 = vector.extract_strided_slice %358 {offsets = [0, 5, 0], sizes = [8, 16, 136], strides = [1, 1, 1]} : vector<8x22x136xf32> to vector<8x16x136xf32>
    %397 = vector.shape_cast %395 : vector<1x136xf32> to vector<1x1x136xf32>
    %398 = vector.broadcast %397 : vector<1x1x136xf32> to vector<8x16x136xf32>
    %399 = arith.mulf %398, %396 : vector<8x16x136xf32>
    %400 = arith.addf %393, %399 : vector<8x16x136xf32>
    %c48 = arith.constant 48 : index
    %c0_195 = arith.constant 0 : index
    %c0_196 = arith.constant 0 : index
    %401 = vector.load %arg7[%c48, %c0_195, %c0_196] : memref<49x1x136xf32, #tpu.memory_space<vmem>>, vector<1x1x136xf32>
    %402 = vector.shape_cast %401 : vector<1x1x136xf32> to vector<1x136xf32>
    %403 = vector.extract_strided_slice %358 {offsets = [0, 6, 0], sizes = [8, 16, 136], strides = [1, 1, 1]} : vector<8x22x136xf32> to vector<8x16x136xf32>
    %404 = vector.shape_cast %402 : vector<1x136xf32> to vector<1x1x136xf32>
    %405 = vector.broadcast %404 : vector<1x1x136xf32> to vector<8x16x136xf32>
    %406 = arith.mulf %405, %403 : vector<8x16x136xf32>
    %407 = arith.addf %400, %406 : vector<8x16x136xf32>
    %408 = vector.extract_strided_slice %407 {offsets = [0, 0, 0], sizes = [8, 16, 128], strides = [1, 1, 1]} : vector<8x16x136xf32> to vector<8x16x128xf32>
    %c0_197 = arith.constant 0 : index
    %c0_198 = arith.constant 0 : index
    %c0_199 = arith.constant 0 : index
    %409 = vector.load %arg15[%c0_197, %c0_198, %c0_199] : memref<16x16x128xf32, #tpu.memory_space<vmem>>, vector<8x16x128xf32>
    tpu.vector_store %arg15[%c0_197, %c0_198, %c0_199], %408 {strides = array<i32>} : memref<16x16x128xf32, #tpu.memory_space<vmem>>, vector<8x16x128xf32>,
    %410 = vector.extract_strided_slice %407 {offsets = [0, 0, 128], sizes = [8, 16, 4], strides = [1, 1, 1]} : vector<8x16x136xf32> to vector<8x16x4xf32>
    %411 = vector.extract_strided_slice %407 {offsets = [0, 0, 132], sizes = [8, 16, 4], strides = [1, 1, 1]} : vector<8x16x136xf32> to vector<8x16x4xf32>
    %412 = arith.addf %410, %411 : vector<8x16x4xf32>
    %413 = vector.extract_strided_slice %412 {offsets = [0, 0, 0], sizes = [8, 16, 1], strides = [1, 1, 1]} : vector<8x16x4xf32> to vector<8x16x1xf32>
    %414 = vector.extract_strided_slice %24 {offsets = [0, 0], sizes = [1, 32], strides = [1, 1]} : vector<4x32xf32> to vector<1x32xf32>
    %415 = vector.shape_cast %414 : vector<1x32xf32> to vector<1x1x32xf32>
    %416 = vector.broadcast %413 : vector<8x16x1xf32> to vector<8x16x32xf32>
    %417 = vector.broadcast %415 : vector<1x1x32xf32> to vector<8x16x32xf32>
    %418 = arith.addf %416, %417 : vector<8x16x32xf32>
    %419 = vector.extract_strided_slice %412 {offsets = [0, 0, 1], sizes = [8, 16, 1], strides = [1, 1, 1]} : vector<8x16x4xf32> to vector<8x16x1xf32>
    %420 = vector.extract_strided_slice %24 {offsets = [1, 0], sizes = [1, 32], strides = [1, 1]} : vector<4x32xf32> to vector<1x32xf32>
    %421 = vector.shape_cast %420 : vector<1x32xf32> to vector<1x1x32xf32>
    %422 = vector.broadcast %419 : vector<8x16x1xf32> to vector<8x16x32xf32>
    %423 = vector.broadcast %421 : vector<1x1x32xf32> to vector<8x16x32xf32>
    %424 = arith.addf %422, %423 : vector<8x16x32xf32>
    %425 = vector.extract_strided_slice %412 {offsets = [0, 0, 2], sizes = [8, 16, 1], strides = [1, 1, 1]} : vector<8x16x4xf32> to vector<8x16x1xf32>
    %426 = vector.extract_strided_slice %24 {offsets = [2, 0], sizes = [1, 32], strides = [1, 1]} : vector<4x32xf32> to vector<1x32xf32>
    %427 = vector.shape_cast %426 : vector<1x32xf32> to vector<1x1x32xf32>
    %428 = vector.broadcast %425 : vector<8x16x1xf32> to vector<8x16x32xf32>
    %429 = vector.broadcast %427 : vector<1x1x32xf32> to vector<8x16x32xf32>
    %430 = arith.addf %428, %429 : vector<8x16x32xf32>
    %431 = vector.extract_strided_slice %412 {offsets = [0, 0, 3], sizes = [8, 16, 1], strides = [1, 1, 1]} : vector<8x16x4xf32> to vector<8x16x1xf32>
    %432 = vector.extract_strided_slice %24 {offsets = [3, 0], sizes = [1, 32], strides = [1, 1]} : vector<4x32xf32> to vector<1x32xf32>
    %433 = vector.shape_cast %432 : vector<1x32xf32> to vector<1x1x32xf32>
    %434 = vector.broadcast %431 : vector<8x16x1xf32> to vector<8x16x32xf32>
    %435 = vector.broadcast %433 : vector<1x1x32xf32> to vector<8x16x32xf32>
    %436 = arith.addf %434, %435 : vector<8x16x32xf32>
    %437 = tpu.concatenate %418, %424, %430, %436 in 2 : vector<8x16x32xf32>, vector<8x16x32xf32>, vector<8x16x32xf32>, vector<8x16x32xf32> -> vector<8x16x128xf32>
    %c3_200 = arith.constant 3 : index
    %c3_201 = arith.constant 3 : index
    %c0_202 = arith.constant 0 : index
    %438 = vector.load %arg14[%c3_200, %c3_201, %c0_202] : memref<22x22x128xf32, #tpu.memory_space<vmem>>, vector<8x16x128xf32>
    tpu.vector_store %arg14[%c3_200, %c3_201, %c0_202], %437 {strides = array<i32>} : memref<22x22x128xf32, #tpu.memory_space<vmem>>, vector<8x16x128xf32>,
    %cst_203 = arith.constant 0.000000e+00 : f32
    %439 = vector.broadcast %cst_203 : f32 to vector<8x16x136xf32>
    %c8_204 = arith.constant 8 : index
    %c0_205 = arith.constant 0 : index
    %c0_206 = arith.constant 0 : index
    %440 = vector.load %arg13[%c8_204, %c0_205, %c0_206] : memref<22x22x136xf32, #tpu.memory_space<vmem>>, vector<8x22x136xf32>
    %c0_207 = arith.constant 0 : index
    %c0_208 = arith.constant 0 : index
    %c0_209 = arith.constant 0 : index
    %441 = vector.load %arg7[%c0_207, %c0_208, %c0_209] : memref<49x1x136xf32, #tpu.memory_space<vmem>>, vector<1x1x136xf32>
    %442 = vector.shape_cast %441 : vector<1x1x136xf32> to vector<1x136xf32>
    %443 = vector.extract_strided_slice %440 {offsets = [0, 0, 0], sizes = [8, 16, 136], strides = [1, 1, 1]} : vector<8x22x136xf32> to vector<8x16x136xf32>
    %444 = vector.shape_cast %442 : vector<1x136xf32> to vector<1x1x136xf32>
    %445 = vector.broadcast %444 : vector<1x1x136xf32> to vector<8x16x136xf32>
    %446 = arith.mulf %445, %443 : vector<8x16x136xf32>
    %447 = arith.addf %439, %446 : vector<8x16x136xf32>
    %c1_210 = arith.constant 1 : index
    %c0_211 = arith.constant 0 : index
    %c0_212 = arith.constant 0 : index
    %448 = vector.load %arg7[%c1_210, %c0_211, %c0_212] : memref<49x1x136xf32, #tpu.memory_space<vmem>>, vector<1x1x136xf32>
    %449 = vector.shape_cast %448 : vector<1x1x136xf32> to vector<1x136xf32>
    %450 = vector.extract_strided_slice %440 {offsets = [0, 1, 0], sizes = [8, 16, 136], strides = [1, 1, 1]} : vector<8x22x136xf32> to vector<8x16x136xf32>
    %451 = vector.shape_cast %449 : vector<1x136xf32> to vector<1x1x136xf32>
    %452 = vector.broadcast %451 : vector<1x1x136xf32> to vector<8x16x136xf32>
    %453 = arith.mulf %452, %450 : vector<8x16x136xf32>
    %454 = arith.addf %447, %453 : vector<8x16x136xf32>
    %c2_213 = arith.constant 2 : index
    %c0_214 = arith.constant 0 : index
    %c0_215 = arith.constant 0 : index
    %455 = vector.load %arg7[%c2_213, %c0_214, %c0_215] : memref<49x1x136xf32, #tpu.memory_space<vmem>>, vector<1x1x136xf32>
    %456 = vector.shape_cast %455 : vector<1x1x136xf32> to vector<1x136xf32>
    %457 = vector.extract_strided_slice %440 {offsets = [0, 2, 0], sizes = [8, 16, 136], strides = [1, 1, 1]} : vector<8x22x136xf32> to vector<8x16x136xf32>
    %458 = vector.shape_cast %456 : vector<1x136xf32> to vector<1x1x136xf32>
    %459 = vector.broadcast %458 : vector<1x1x136xf32> to vector<8x16x136xf32>
    %460 = arith.mulf %459, %457 : vector<8x16x136xf32>
    %461 = arith.addf %454, %460 : vector<8x16x136xf32>
    %c3_216 = arith.constant 3 : index
    %c0_217 = arith.constant 0 : index
    %c0_218 = arith.constant 0 : index
    %462 = vector.load %arg7[%c3_216, %c0_217, %c0_218] : memref<49x1x136xf32, #tpu.memory_space<vmem>>, vector<1x1x136xf32>
    %463 = vector.shape_cast %462 : vector<1x1x136xf32> to vector<1x136xf32>
    %464 = vector.extract_strided_slice %440 {offsets = [0, 3, 0], sizes = [8, 16, 136], strides = [1, 1, 1]} : vector<8x22x136xf32> to vector<8x16x136xf32>
    %465 = vector.shape_cast %463 : vector<1x136xf32> to vector<1x1x136xf32>
    %466 = vector.broadcast %465 : vector<1x1x136xf32> to vector<8x16x136xf32>
    %467 = arith.mulf %466, %464 : vector<8x16x136xf32>
    %468 = arith.addf %461, %467 : vector<8x16x136xf32>
    %c4_219 = arith.constant 4 : index
    %c0_220 = arith.constant 0 : index
    %c0_221 = arith.constant 0 : index
    %469 = vector.load %arg7[%c4_219, %c0_220, %c0_221] : memref<49x1x136xf32, #tpu.memory_space<vmem>>, vector<1x1x136xf32>
    %470 = vector.shape_cast %469 : vector<1x1x136xf32> to vector<1x136xf32>
    %471 = vector.extract_strided_slice %440 {offsets = [0, 4, 0], sizes = [8, 16, 136], strides = [1, 1, 1]} : vector<8x22x136xf32> to vector<8x16x136xf32>
    %472 = vector.shape_cast %470 : vector<1x136xf32> to vector<1x1x136xf32>
    %473 = vector.broadcast %472 : vector<1x1x136xf32> to vector<8x16x136xf32>
    %474 = arith.mulf %473, %471 : vector<8x16x136xf32>
    %475 = arith.addf %468, %474 : vector<8x16x136xf32>
    %c5_222 = arith.constant 5 : index
    %c0_223 = arith.constant 0 : index
    %c0_224 = arith.constant 0 : index
    %476 = vector.load %arg7[%c5_222, %c0_223, %c0_224] : memref<49x1x136xf32, #tpu.memory_space<vmem>>, vector<1x1x136xf32>
    %477 = vector.shape_cast %476 : vector<1x1x136xf32> to vector<1x136xf32>
    %478 = vector.extract_strided_slice %440 {offsets = [0, 5, 0], sizes = [8, 16, 136], strides = [1, 1, 1]} : vector<8x22x136xf32> to vector<8x16x136xf32>
    %479 = vector.shape_cast %477 : vector<1x136xf32> to vector<1x1x136xf32>
    %480 = vector.broadcast %479 : vector<1x1x136xf32> to vector<8x16x136xf32>
    %481 = arith.mulf %480, %478 : vector<8x16x136xf32>
    %482 = arith.addf %475, %481 : vector<8x16x136xf32>
    %c6_225 = arith.constant 6 : index
    %c0_226 = arith.constant 0 : index
    %c0_227 = arith.constant 0 : index
    %483 = vector.load %arg7[%c6_225, %c0_226, %c0_227] : memref<49x1x136xf32, #tpu.memory_space<vmem>>, vector<1x1x136xf32>
    %484 = vector.shape_cast %483 : vector<1x1x136xf32> to vector<1x136xf32>
    %485 = vector.extract_strided_slice %440 {offsets = [0, 6, 0], sizes = [8, 16, 136], strides = [1, 1, 1]} : vector<8x22x136xf32> to vector<8x16x136xf32>
    %486 = vector.shape_cast %484 : vector<1x136xf32> to vector<1x1x136xf32>
    %487 = vector.broadcast %486 : vector<1x1x136xf32> to vector<8x16x136xf32>
    %488 = arith.mulf %487, %485 : vector<8x16x136xf32>
    %489 = arith.addf %482, %488 : vector<8x16x136xf32>
    %c9_228 = arith.constant 9 : index
    %c0_229 = arith.constant 0 : index
    %c0_230 = arith.constant 0 : index
    %490 = vector.load %arg13[%c9_228, %c0_229, %c0_230] : memref<22x22x136xf32, #tpu.memory_space<vmem>>, vector<8x22x136xf32>
    %c7_231 = arith.constant 7 : index
    %c0_232 = arith.constant 0 : index
    %c0_233 = arith.constant 0 : index
    %491 = vector.load %arg7[%c7_231, %c0_232, %c0_233] : memref<49x1x136xf32, #tpu.memory_space<vmem>>, vector<1x1x136xf32>
    %492 = vector.shape_cast %491 : vector<1x1x136xf32> to vector<1x136xf32>
    %493 = vector.extract_strided_slice %490 {offsets = [0, 0, 0], sizes = [8, 16, 136], strides = [1, 1, 1]} : vector<8x22x136xf32> to vector<8x16x136xf32>
    %494 = vector.shape_cast %492 : vector<1x136xf32> to vector<1x1x136xf32>
    %495 = vector.broadcast %494 : vector<1x1x136xf32> to vector<8x16x136xf32>
    %496 = arith.mulf %495, %493 : vector<8x16x136xf32>
    %497 = arith.addf %489, %496 : vector<8x16x136xf32>
    %c8_234 = arith.constant 8 : index
    %c0_235 = arith.constant 0 : index
    %c0_236 = arith.constant 0 : index
    %498 = vector.load %arg7[%c8_234, %c0_235, %c0_236] : memref<49x1x136xf32, #tpu.memory_space<vmem>>, vector<1x1x136xf32>
    %499 = vector.shape_cast %498 : vector<1x1x136xf32> to vector<1x136xf32>
    %500 = vector.extract_strided_slice %490 {offsets = [0, 1, 0], sizes = [8, 16, 136], strides = [1, 1, 1]} : vector<8x22x136xf32> to vector<8x16x136xf32>
    %501 = vector.shape_cast %499 : vector<1x136xf32> to vector<1x1x136xf32>
    %502 = vector.broadcast %501 : vector<1x1x136xf32> to vector<8x16x136xf32>
    %503 = arith.mulf %502, %500 : vector<8x16x136xf32>
    %504 = arith.addf %497, %503 : vector<8x16x136xf32>
    %c9_237 = arith.constant 9 : index
    %c0_238 = arith.constant 0 : index
    %c0_239 = arith.constant 0 : index
    %505 = vector.load %arg7[%c9_237, %c0_238, %c0_239] : memref<49x1x136xf32, #tpu.memory_space<vmem>>, vector<1x1x136xf32>
    %506 = vector.shape_cast %505 : vector<1x1x136xf32> to vector<1x136xf32>
    %507 = vector.extract_strided_slice %490 {offsets = [0, 2, 0], sizes = [8, 16, 136], strides = [1, 1, 1]} : vector<8x22x136xf32> to vector<8x16x136xf32>
    %508 = vector.shape_cast %506 : vector<1x136xf32> to vector<1x1x136xf32>
    %509 = vector.broadcast %508 : vector<1x1x136xf32> to vector<8x16x136xf32>
    %510 = arith.mulf %509, %507 : vector<8x16x136xf32>
    %511 = arith.addf %504, %510 : vector<8x16x136xf32>
    %c10_240 = arith.constant 10 : index
    %c0_241 = arith.constant 0 : index
    %c0_242 = arith.constant 0 : index
    %512 = vector.load %arg7[%c10_240, %c0_241, %c0_242] : memref<49x1x136xf32, #tpu.memory_space<vmem>>, vector<1x1x136xf32>
    %513 = vector.shape_cast %512 : vector<1x1x136xf32> to vector<1x136xf32>
    %514 = vector.extract_strided_slice %490 {offsets = [0, 3, 0], sizes = [8, 16, 136], strides = [1, 1, 1]} : vector<8x22x136xf32> to vector<8x16x136xf32>
    %515 = vector.shape_cast %513 : vector<1x136xf32> to vector<1x1x136xf32>
    %516 = vector.broadcast %515 : vector<1x1x136xf32> to vector<8x16x136xf32>
    %517 = arith.mulf %516, %514 : vector<8x16x136xf32>
    %518 = arith.addf %511, %517 : vector<8x16x136xf32>
    %c11_243 = arith.constant 11 : index
    %c0_244 = arith.constant 0 : index
    %c0_245 = arith.constant 0 : index
    %519 = vector.load %arg7[%c11_243, %c0_244, %c0_245] : memref<49x1x136xf32, #tpu.memory_space<vmem>>, vector<1x1x136xf32>
    %520 = vector.shape_cast %519 : vector<1x1x136xf32> to vector<1x136xf32>
    %521 = vector.extract_strided_slice %490 {offsets = [0, 4, 0], sizes = [8, 16, 136], strides = [1, 1, 1]} : vector<8x22x136xf32> to vector<8x16x136xf32>
    %522 = vector.shape_cast %520 : vector<1x136xf32> to vector<1x1x136xf32>
    %523 = vector.broadcast %522 : vector<1x1x136xf32> to vector<8x16x136xf32>
    %524 = arith.mulf %523, %521 : vector<8x16x136xf32>
    %525 = arith.addf %518, %524 : vector<8x16x136xf32>
    %c12_246 = arith.constant 12 : index
    %c0_247 = arith.constant 0 : index
    %c0_248 = arith.constant 0 : index
    %526 = vector.load %arg7[%c12_246, %c0_247, %c0_248] : memref<49x1x136xf32, #tpu.memory_space<vmem>>, vector<1x1x136xf32>
    %527 = vector.shape_cast %526 : vector<1x1x136xf32> to vector<1x136xf32>
    %528 = vector.extract_strided_slice %490 {offsets = [0, 5, 0], sizes = [8, 16, 136], strides = [1, 1, 1]} : vector<8x22x136xf32> to vector<8x16x136xf32>
    %529 = vector.shape_cast %527 : vector<1x136xf32> to vector<1x1x136xf32>
    %530 = vector.broadcast %529 : vector<1x1x136xf32> to vector<8x16x136xf32>
    %531 = arith.mulf %530, %528 : vector<8x16x136xf32>
    %532 = arith.addf %525, %531 : vector<8x16x136xf32>
    %c13_249 = arith.constant 13 : index
    %c0_250 = arith.constant 0 : index
    %c0_251 = arith.constant 0 : index
    %533 = vector.load %arg7[%c13_249, %c0_250, %c0_251] : memref<49x1x136xf32, #tpu.memory_space<vmem>>, vector<1x1x136xf32>
    %534 = vector.shape_cast %533 : vector<1x1x136xf32> to vector<1x136xf32>
    %535 = vector.extract_strided_slice %490 {offsets = [0, 6, 0], sizes = [8, 16, 136], strides = [1, 1, 1]} : vector<8x22x136xf32> to vector<8x16x136xf32>
    %536 = vector.shape_cast %534 : vector<1x136xf32> to vector<1x1x136xf32>
    %537 = vector.broadcast %536 : vector<1x1x136xf32> to vector<8x16x136xf32>
    %538 = arith.mulf %537, %535 : vector<8x16x136xf32>
    %539 = arith.addf %532, %538 : vector<8x16x136xf32>
    %c10_252 = arith.constant 10 : index
    %c0_253 = arith.constant 0 : index
    %c0_254 = arith.constant 0 : index
    %540 = vector.load %arg13[%c10_252, %c0_253, %c0_254] : memref<22x22x136xf32, #tpu.memory_space<vmem>>, vector<8x22x136xf32>
    %c14_255 = arith.constant 14 : index
    %c0_256 = arith.constant 0 : index
    %c0_257 = arith.constant 0 : index
    %541 = vector.load %arg7[%c14_255, %c0_256, %c0_257] : memref<49x1x136xf32, #tpu.memory_space<vmem>>, vector<1x1x136xf32>
    %542 = vector.shape_cast %541 : vector<1x1x136xf32> to vector<1x136xf32>
    %543 = vector.extract_strided_slice %540 {offsets = [0, 0, 0], sizes = [8, 16, 136], strides = [1, 1, 1]} : vector<8x22x136xf32> to vector<8x16x136xf32>
    %544 = vector.shape_cast %542 : vector<1x136xf32> to vector<1x1x136xf32>
    %545 = vector.broadcast %544 : vector<1x1x136xf32> to vector<8x16x136xf32>
    %546 = arith.mulf %545, %543 : vector<8x16x136xf32>
    %547 = arith.addf %539, %546 : vector<8x16x136xf32>
    %c15_258 = arith.constant 15 : index
    %c0_259 = arith.constant 0 : index
    %c0_260 = arith.constant 0 : index
    %548 = vector.load %arg7[%c15_258, %c0_259, %c0_260] : memref<49x1x136xf32, #tpu.memory_space<vmem>>, vector<1x1x136xf32>
    %549 = vector.shape_cast %548 : vector<1x1x136xf32> to vector<1x136xf32>
    %550 = vector.extract_strided_slice %540 {offsets = [0, 1, 0], sizes = [8, 16, 136], strides = [1, 1, 1]} : vector<8x22x136xf32> to vector<8x16x136xf32>
    %551 = vector.shape_cast %549 : vector<1x136xf32> to vector<1x1x136xf32>
    %552 = vector.broadcast %551 : vector<1x1x136xf32> to vector<8x16x136xf32>
    %553 = arith.mulf %552, %550 : vector<8x16x136xf32>
    %554 = arith.addf %547, %553 : vector<8x16x136xf32>
    %c16_261 = arith.constant 16 : index
    %c0_262 = arith.constant 0 : index
    %c0_263 = arith.constant 0 : index
    %555 = vector.load %arg7[%c16_261, %c0_262, %c0_263] : memref<49x1x136xf32, #tpu.memory_space<vmem>>, vector<1x1x136xf32>
    %556 = vector.shape_cast %555 : vector<1x1x136xf32> to vector<1x136xf32>
    %557 = vector.extract_strided_slice %540 {offsets = [0, 2, 0], sizes = [8, 16, 136], strides = [1, 1, 1]} : vector<8x22x136xf32> to vector<8x16x136xf32>
    %558 = vector.shape_cast %556 : vector<1x136xf32> to vector<1x1x136xf32>
    %559 = vector.broadcast %558 : vector<1x1x136xf32> to vector<8x16x136xf32>
    %560 = arith.mulf %559, %557 : vector<8x16x136xf32>
    %561 = arith.addf %554, %560 : vector<8x16x136xf32>
    %c17_264 = arith.constant 17 : index
    %c0_265 = arith.constant 0 : index
    %c0_266 = arith.constant 0 : index
    %562 = vector.load %arg7[%c17_264, %c0_265, %c0_266] : memref<49x1x136xf32, #tpu.memory_space<vmem>>, vector<1x1x136xf32>
    %563 = vector.shape_cast %562 : vector<1x1x136xf32> to vector<1x136xf32>
    %564 = vector.extract_strided_slice %540 {offsets = [0, 3, 0], sizes = [8, 16, 136], strides = [1, 1, 1]} : vector<8x22x136xf32> to vector<8x16x136xf32>
    %565 = vector.shape_cast %563 : vector<1x136xf32> to vector<1x1x136xf32>
    %566 = vector.broadcast %565 : vector<1x1x136xf32> to vector<8x16x136xf32>
    %567 = arith.mulf %566, %564 : vector<8x16x136xf32>
    %568 = arith.addf %561, %567 : vector<8x16x136xf32>
    %c18_267 = arith.constant 18 : index
    %c0_268 = arith.constant 0 : index
    %c0_269 = arith.constant 0 : index
    %569 = vector.load %arg7[%c18_267, %c0_268, %c0_269] : memref<49x1x136xf32, #tpu.memory_space<vmem>>, vector<1x1x136xf32>
    %570 = vector.shape_cast %569 : vector<1x1x136xf32> to vector<1x136xf32>
    %571 = vector.extract_strided_slice %540 {offsets = [0, 4, 0], sizes = [8, 16, 136], strides = [1, 1, 1]} : vector<8x22x136xf32> to vector<8x16x136xf32>
    %572 = vector.shape_cast %570 : vector<1x136xf32> to vector<1x1x136xf32>
    %573 = vector.broadcast %572 : vector<1x1x136xf32> to vector<8x16x136xf32>
    %574 = arith.mulf %573, %571 : vector<8x16x136xf32>
    %575 = arith.addf %568, %574 : vector<8x16x136xf32>
    %c19_270 = arith.constant 19 : index
    %c0_271 = arith.constant 0 : index
    %c0_272 = arith.constant 0 : index
    %576 = vector.load %arg7[%c19_270, %c0_271, %c0_272] : memref<49x1x136xf32, #tpu.memory_space<vmem>>, vector<1x1x136xf32>
    %577 = vector.shape_cast %576 : vector<1x1x136xf32> to vector<1x136xf32>
    %578 = vector.extract_strided_slice %540 {offsets = [0, 5, 0], sizes = [8, 16, 136], strides = [1, 1, 1]} : vector<8x22x136xf32> to vector<8x16x136xf32>
    %579 = vector.shape_cast %577 : vector<1x136xf32> to vector<1x1x136xf32>
    %580 = vector.broadcast %579 : vector<1x1x136xf32> to vector<8x16x136xf32>
    %581 = arith.mulf %580, %578 : vector<8x16x136xf32>
    %582 = arith.addf %575, %581 : vector<8x16x136xf32>
    %c20_273 = arith.constant 20 : index
    %c0_274 = arith.constant 0 : index
    %c0_275 = arith.constant 0 : index
    %583 = vector.load %arg7[%c20_273, %c0_274, %c0_275] : memref<49x1x136xf32, #tpu.memory_space<vmem>>, vector<1x1x136xf32>
    %584 = vector.shape_cast %583 : vector<1x1x136xf32> to vector<1x136xf32>
    %585 = vector.extract_strided_slice %540 {offsets = [0, 6, 0], sizes = [8, 16, 136], strides = [1, 1, 1]} : vector<8x22x136xf32> to vector<8x16x136xf32>
    %586 = vector.shape_cast %584 : vector<1x136xf32> to vector<1x1x136xf32>
    %587 = vector.broadcast %586 : vector<1x1x136xf32> to vector<8x16x136xf32>
    %588 = arith.mulf %587, %585 : vector<8x16x136xf32>
    %589 = arith.addf %582, %588 : vector<8x16x136xf32>
    %c11_276 = arith.constant 11 : index
    %c0_277 = arith.constant 0 : index
    %c0_278 = arith.constant 0 : index
    %590 = vector.load %arg13[%c11_276, %c0_277, %c0_278] : memref<22x22x136xf32, #tpu.memory_space<vmem>>, vector<8x22x136xf32>
    %c21_279 = arith.constant 21 : index
    %c0_280 = arith.constant 0 : index
    %c0_281 = arith.constant 0 : index
    %591 = vector.load %arg7[%c21_279, %c0_280, %c0_281] : memref<49x1x136xf32, #tpu.memory_space<vmem>>, vector<1x1x136xf32>
    %592 = vector.shape_cast %591 : vector<1x1x136xf32> to vector<1x136xf32>
    %593 = vector.extract_strided_slice %590 {offsets = [0, 0, 0], sizes = [8, 16, 136], strides = [1, 1, 1]} : vector<8x22x136xf32> to vector<8x16x136xf32>
    %594 = vector.shape_cast %592 : vector<1x136xf32> to vector<1x1x136xf32>
    %595 = vector.broadcast %594 : vector<1x1x136xf32> to vector<8x16x136xf32>
    %596 = arith.mulf %595, %593 : vector<8x16x136xf32>
    %597 = arith.addf %589, %596 : vector<8x16x136xf32>
    %c22_282 = arith.constant 22 : index
    %c0_283 = arith.constant 0 : index
    %c0_284 = arith.constant 0 : index
    %598 = vector.load %arg7[%c22_282, %c0_283, %c0_284] : memref<49x1x136xf32, #tpu.memory_space<vmem>>, vector<1x1x136xf32>
    %599 = vector.shape_cast %598 : vector<1x1x136xf32> to vector<1x136xf32>
    %600 = vector.extract_strided_slice %590 {offsets = [0, 1, 0], sizes = [8, 16, 136], strides = [1, 1, 1]} : vector<8x22x136xf32> to vector<8x16x136xf32>
    %601 = vector.shape_cast %599 : vector<1x136xf32> to vector<1x1x136xf32>
    %602 = vector.broadcast %601 : vector<1x1x136xf32> to vector<8x16x136xf32>
    %603 = arith.mulf %602, %600 : vector<8x16x136xf32>
    %604 = arith.addf %597, %603 : vector<8x16x136xf32>
    %c23_285 = arith.constant 23 : index
    %c0_286 = arith.constant 0 : index
    %c0_287 = arith.constant 0 : index
    %605 = vector.load %arg7[%c23_285, %c0_286, %c0_287] : memref<49x1x136xf32, #tpu.memory_space<vmem>>, vector<1x1x136xf32>
    %606 = vector.shape_cast %605 : vector<1x1x136xf32> to vector<1x136xf32>
    %607 = vector.extract_strided_slice %590 {offsets = [0, 2, 0], sizes = [8, 16, 136], strides = [1, 1, 1]} : vector<8x22x136xf32> to vector<8x16x136xf32>
    %608 = vector.shape_cast %606 : vector<1x136xf32> to vector<1x1x136xf32>
    %609 = vector.broadcast %608 : vector<1x1x136xf32> to vector<8x16x136xf32>
    %610 = arith.mulf %609, %607 : vector<8x16x136xf32>
    %611 = arith.addf %604, %610 : vector<8x16x136xf32>
    %c24_288 = arith.constant 24 : index
    %c0_289 = arith.constant 0 : index
    %c0_290 = arith.constant 0 : index
    %612 = vector.load %arg7[%c24_288, %c0_289, %c0_290] : memref<49x1x136xf32, #tpu.memory_space<vmem>>, vector<1x1x136xf32>
    %613 = vector.shape_cast %612 : vector<1x1x136xf32> to vector<1x136xf32>
    %614 = vector.extract_strided_slice %590 {offsets = [0, 3, 0], sizes = [8, 16, 136], strides = [1, 1, 1]} : vector<8x22x136xf32> to vector<8x16x136xf32>
    %615 = vector.shape_cast %613 : vector<1x136xf32> to vector<1x1x136xf32>
    %616 = vector.broadcast %615 : vector<1x1x136xf32> to vector<8x16x136xf32>
    %617 = arith.mulf %616, %614 : vector<8x16x136xf32>
    %618 = arith.addf %611, %617 : vector<8x16x136xf32>
    %c25_291 = arith.constant 25 : index
    %c0_292 = arith.constant 0 : index
    %c0_293 = arith.constant 0 : index
    %619 = vector.load %arg7[%c25_291, %c0_292, %c0_293] : memref<49x1x136xf32, #tpu.memory_space<vmem>>, vector<1x1x136xf32>
    %620 = vector.shape_cast %619 : vector<1x1x136xf32> to vector<1x136xf32>
    %621 = vector.extract_strided_slice %590 {offsets = [0, 4, 0], sizes = [8, 16, 136], strides = [1, 1, 1]} : vector<8x22x136xf32> to vector<8x16x136xf32>
    %622 = vector.shape_cast %620 : vector<1x136xf32> to vector<1x1x136xf32>
    %623 = vector.broadcast %622 : vector<1x1x136xf32> to vector<8x16x136xf32>
    %624 = arith.mulf %623, %621 : vector<8x16x136xf32>
    %625 = arith.addf %618, %624 : vector<8x16x136xf32>
    %c26_294 = arith.constant 26 : index
    %c0_295 = arith.constant 0 : index
    %c0_296 = arith.constant 0 : index
    %626 = vector.load %arg7[%c26_294, %c0_295, %c0_296] : memref<49x1x136xf32, #tpu.memory_space<vmem>>, vector<1x1x136xf32>
    %627 = vector.shape_cast %626 : vector<1x1x136xf32> to vector<1x136xf32>
    %628 = vector.extract_strided_slice %590 {offsets = [0, 5, 0], sizes = [8, 16, 136], strides = [1, 1, 1]} : vector<8x22x136xf32> to vector<8x16x136xf32>
    %629 = vector.shape_cast %627 : vector<1x136xf32> to vector<1x1x136xf32>
    %630 = vector.broadcast %629 : vector<1x1x136xf32> to vector<8x16x136xf32>
    %631 = arith.mulf %630, %628 : vector<8x16x136xf32>
    %632 = arith.addf %625, %631 : vector<8x16x136xf32>
    %c27_297 = arith.constant 27 : index
    %c0_298 = arith.constant 0 : index
    %c0_299 = arith.constant 0 : index
    %633 = vector.load %arg7[%c27_297, %c0_298, %c0_299] : memref<49x1x136xf32, #tpu.memory_space<vmem>>, vector<1x1x136xf32>
    %634 = vector.shape_cast %633 : vector<1x1x136xf32> to vector<1x136xf32>
    %635 = vector.extract_strided_slice %590 {offsets = [0, 6, 0], sizes = [8, 16, 136], strides = [1, 1, 1]} : vector<8x22x136xf32> to vector<8x16x136xf32>
    %636 = vector.shape_cast %634 : vector<1x136xf32> to vector<1x1x136xf32>
    %637 = vector.broadcast %636 : vector<1x1x136xf32> to vector<8x16x136xf32>
    %638 = arith.mulf %637, %635 : vector<8x16x136xf32>
    %639 = arith.addf %632, %638 : vector<8x16x136xf32>
    %c12_300 = arith.constant 12 : index
    %c0_301 = arith.constant 0 : index
    %c0_302 = arith.constant 0 : index
    %640 = vector.load %arg13[%c12_300, %c0_301, %c0_302] : memref<22x22x136xf32, #tpu.memory_space<vmem>>, vector<8x22x136xf32>
    %c28_303 = arith.constant 28 : index
    %c0_304 = arith.constant 0 : index
    %c0_305 = arith.constant 0 : index
    %641 = vector.load %arg7[%c28_303, %c0_304, %c0_305] : memref<49x1x136xf32, #tpu.memory_space<vmem>>, vector<1x1x136xf32>
    %642 = vector.shape_cast %641 : vector<1x1x136xf32> to vector<1x136xf32>
    %643 = vector.extract_strided_slice %640 {offsets = [0, 0, 0], sizes = [8, 16, 136], strides = [1, 1, 1]} : vector<8x22x136xf32> to vector<8x16x136xf32>
    %644 = vector.shape_cast %642 : vector<1x136xf32> to vector<1x1x136xf32>
    %645 = vector.broadcast %644 : vector<1x1x136xf32> to vector<8x16x136xf32>
    %646 = arith.mulf %645, %643 : vector<8x16x136xf32>
    %647 = arith.addf %639, %646 : vector<8x16x136xf32>
    %c29_306 = arith.constant 29 : index
    %c0_307 = arith.constant 0 : index
    %c0_308 = arith.constant 0 : index
    %648 = vector.load %arg7[%c29_306, %c0_307, %c0_308] : memref<49x1x136xf32, #tpu.memory_space<vmem>>, vector<1x1x136xf32>
    %649 = vector.shape_cast %648 : vector<1x1x136xf32> to vector<1x136xf32>
    %650 = vector.extract_strided_slice %640 {offsets = [0, 1, 0], sizes = [8, 16, 136], strides = [1, 1, 1]} : vector<8x22x136xf32> to vector<8x16x136xf32>
    %651 = vector.shape_cast %649 : vector<1x136xf32> to vector<1x1x136xf32>
    %652 = vector.broadcast %651 : vector<1x1x136xf32> to vector<8x16x136xf32>
    %653 = arith.mulf %652, %650 : vector<8x16x136xf32>
    %654 = arith.addf %647, %653 : vector<8x16x136xf32>
    %c30_309 = arith.constant 30 : index
    %c0_310 = arith.constant 0 : index
    %c0_311 = arith.constant 0 : index
    %655 = vector.load %arg7[%c30_309, %c0_310, %c0_311] : memref<49x1x136xf32, #tpu.memory_space<vmem>>, vector<1x1x136xf32>
    %656 = vector.shape_cast %655 : vector<1x1x136xf32> to vector<1x136xf32>
    %657 = vector.extract_strided_slice %640 {offsets = [0, 2, 0], sizes = [8, 16, 136], strides = [1, 1, 1]} : vector<8x22x136xf32> to vector<8x16x136xf32>
    %658 = vector.shape_cast %656 : vector<1x136xf32> to vector<1x1x136xf32>
    %659 = vector.broadcast %658 : vector<1x1x136xf32> to vector<8x16x136xf32>
    %660 = arith.mulf %659, %657 : vector<8x16x136xf32>
    %661 = arith.addf %654, %660 : vector<8x16x136xf32>
    %c31_312 = arith.constant 31 : index
    %c0_313 = arith.constant 0 : index
    %c0_314 = arith.constant 0 : index
    %662 = vector.load %arg7[%c31_312, %c0_313, %c0_314] : memref<49x1x136xf32, #tpu.memory_space<vmem>>, vector<1x1x136xf32>
    %663 = vector.shape_cast %662 : vector<1x1x136xf32> to vector<1x136xf32>
    %664 = vector.extract_strided_slice %640 {offsets = [0, 3, 0], sizes = [8, 16, 136], strides = [1, 1, 1]} : vector<8x22x136xf32> to vector<8x16x136xf32>
    %665 = vector.shape_cast %663 : vector<1x136xf32> to vector<1x1x136xf32>
    %666 = vector.broadcast %665 : vector<1x1x136xf32> to vector<8x16x136xf32>
    %667 = arith.mulf %666, %664 : vector<8x16x136xf32>
    %668 = arith.addf %661, %667 : vector<8x16x136xf32>
    %c32_315 = arith.constant 32 : index
    %c0_316 = arith.constant 0 : index
    %c0_317 = arith.constant 0 : index
    %669 = vector.load %arg7[%c32_315, %c0_316, %c0_317] : memref<49x1x136xf32, #tpu.memory_space<vmem>>, vector<1x1x136xf32>
    %670 = vector.shape_cast %669 : vector<1x1x136xf32> to vector<1x136xf32>
    %671 = vector.extract_strided_slice %640 {offsets = [0, 4, 0], sizes = [8, 16, 136], strides = [1, 1, 1]} : vector<8x22x136xf32> to vector<8x16x136xf32>
    %672 = vector.shape_cast %670 : vector<1x136xf32> to vector<1x1x136xf32>
    %673 = vector.broadcast %672 : vector<1x1x136xf32> to vector<8x16x136xf32>
    %674 = arith.mulf %673, %671 : vector<8x16x136xf32>
    %675 = arith.addf %668, %674 : vector<8x16x136xf32>
    %c33_318 = arith.constant 33 : index
    %c0_319 = arith.constant 0 : index
    %c0_320 = arith.constant 0 : index
    %676 = vector.load %arg7[%c33_318, %c0_319, %c0_320] : memref<49x1x136xf32, #tpu.memory_space<vmem>>, vector<1x1x136xf32>
    %677 = vector.shape_cast %676 : vector<1x1x136xf32> to vector<1x136xf32>
    %678 = vector.extract_strided_slice %640 {offsets = [0, 5, 0], sizes = [8, 16, 136], strides = [1, 1, 1]} : vector<8x22x136xf32> to vector<8x16x136xf32>
    %679 = vector.shape_cast %677 : vector<1x136xf32> to vector<1x1x136xf32>
    %680 = vector.broadcast %679 : vector<1x1x136xf32> to vector<8x16x136xf32>
    %681 = arith.mulf %680, %678 : vector<8x16x136xf32>
    %682 = arith.addf %675, %681 : vector<8x16x136xf32>
    %c34_321 = arith.constant 34 : index
    %c0_322 = arith.constant 0 : index
    %c0_323 = arith.constant 0 : index
    %683 = vector.load %arg7[%c34_321, %c0_322, %c0_323] : memref<49x1x136xf32, #tpu.memory_space<vmem>>, vector<1x1x136xf32>
    %684 = vector.shape_cast %683 : vector<1x1x136xf32> to vector<1x136xf32>
    %685 = vector.extract_strided_slice %640 {offsets = [0, 6, 0], sizes = [8, 16, 136], strides = [1, 1, 1]} : vector<8x22x136xf32> to vector<8x16x136xf32>
    %686 = vector.shape_cast %684 : vector<1x136xf32> to vector<1x1x136xf32>
    %687 = vector.broadcast %686 : vector<1x1x136xf32> to vector<8x16x136xf32>
    %688 = arith.mulf %687, %685 : vector<8x16x136xf32>
    %689 = arith.addf %682, %688 : vector<8x16x136xf32>
    %c13_324 = arith.constant 13 : index
    %c0_325 = arith.constant 0 : index
    %c0_326 = arith.constant 0 : index
    %690 = vector.load %arg13[%c13_324, %c0_325, %c0_326] : memref<22x22x136xf32, #tpu.memory_space<vmem>>, vector<8x22x136xf32>
    %c35_327 = arith.constant 35 : index
    %c0_328 = arith.constant 0 : index
    %c0_329 = arith.constant 0 : index
    %691 = vector.load %arg7[%c35_327, %c0_328, %c0_329] : memref<49x1x136xf32, #tpu.memory_space<vmem>>, vector<1x1x136xf32>
    %692 = vector.shape_cast %691 : vector<1x1x136xf32> to vector<1x136xf32>
    %693 = vector.extract_strided_slice %690 {offsets = [0, 0, 0], sizes = [8, 16, 136], strides = [1, 1, 1]} : vector<8x22x136xf32> to vector<8x16x136xf32>
    %694 = vector.shape_cast %692 : vector<1x136xf32> to vector<1x1x136xf32>
    %695 = vector.broadcast %694 : vector<1x1x136xf32> to vector<8x16x136xf32>
    %696 = arith.mulf %695, %693 : vector<8x16x136xf32>
    %697 = arith.addf %689, %696 : vector<8x16x136xf32>
    %c36_330 = arith.constant 36 : index
    %c0_331 = arith.constant 0 : index
    %c0_332 = arith.constant 0 : index
    %698 = vector.load %arg7[%c36_330, %c0_331, %c0_332] : memref<49x1x136xf32, #tpu.memory_space<vmem>>, vector<1x1x136xf32>
    %699 = vector.shape_cast %698 : vector<1x1x136xf32> to vector<1x136xf32>
    %700 = vector.extract_strided_slice %690 {offsets = [0, 1, 0], sizes = [8, 16, 136], strides = [1, 1, 1]} : vector<8x22x136xf32> to vector<8x16x136xf32>
    %701 = vector.shape_cast %699 : vector<1x136xf32> to vector<1x1x136xf32>
    %702 = vector.broadcast %701 : vector<1x1x136xf32> to vector<8x16x136xf32>
    %703 = arith.mulf %702, %700 : vector<8x16x136xf32>
    %704 = arith.addf %697, %703 : vector<8x16x136xf32>
    %c37_333 = arith.constant 37 : index
    %c0_334 = arith.constant 0 : index
    %c0_335 = arith.constant 0 : index
    %705 = vector.load %arg7[%c37_333, %c0_334, %c0_335] : memref<49x1x136xf32, #tpu.memory_space<vmem>>, vector<1x1x136xf32>
    %706 = vector.shape_cast %705 : vector<1x1x136xf32> to vector<1x136xf32>
    %707 = vector.extract_strided_slice %690 {offsets = [0, 2, 0], sizes = [8, 16, 136], strides = [1, 1, 1]} : vector<8x22x136xf32> to vector<8x16x136xf32>
    %708 = vector.shape_cast %706 : vector<1x136xf32> to vector<1x1x136xf32>
    %709 = vector.broadcast %708 : vector<1x1x136xf32> to vector<8x16x136xf32>
    %710 = arith.mulf %709, %707 : vector<8x16x136xf32>
    %711 = arith.addf %704, %710 : vector<8x16x136xf32>
    %c38_336 = arith.constant 38 : index
    %c0_337 = arith.constant 0 : index
    %c0_338 = arith.constant 0 : index
    %712 = vector.load %arg7[%c38_336, %c0_337, %c0_338] : memref<49x1x136xf32, #tpu.memory_space<vmem>>, vector<1x1x136xf32>
    %713 = vector.shape_cast %712 : vector<1x1x136xf32> to vector<1x136xf32>
    %714 = vector.extract_strided_slice %690 {offsets = [0, 3, 0], sizes = [8, 16, 136], strides = [1, 1, 1]} : vector<8x22x136xf32> to vector<8x16x136xf32>
    %715 = vector.shape_cast %713 : vector<1x136xf32> to vector<1x1x136xf32>
    %716 = vector.broadcast %715 : vector<1x1x136xf32> to vector<8x16x136xf32>
    %717 = arith.mulf %716, %714 : vector<8x16x136xf32>
    %718 = arith.addf %711, %717 : vector<8x16x136xf32>
    %c39_339 = arith.constant 39 : index
    %c0_340 = arith.constant 0 : index
    %c0_341 = arith.constant 0 : index
    %719 = vector.load %arg7[%c39_339, %c0_340, %c0_341] : memref<49x1x136xf32, #tpu.memory_space<vmem>>, vector<1x1x136xf32>
    %720 = vector.shape_cast %719 : vector<1x1x136xf32> to vector<1x136xf32>
    %721 = vector.extract_strided_slice %690 {offsets = [0, 4, 0], sizes = [8, 16, 136], strides = [1, 1, 1]} : vector<8x22x136xf32> to vector<8x16x136xf32>
    %722 = vector.shape_cast %720 : vector<1x136xf32> to vector<1x1x136xf32>
    %723 = vector.broadcast %722 : vector<1x1x136xf32> to vector<8x16x136xf32>
    %724 = arith.mulf %723, %721 : vector<8x16x136xf32>
    %725 = arith.addf %718, %724 : vector<8x16x136xf32>
    %c40_342 = arith.constant 40 : index
    %c0_343 = arith.constant 0 : index
    %c0_344 = arith.constant 0 : index
    %726 = vector.load %arg7[%c40_342, %c0_343, %c0_344] : memref<49x1x136xf32, #tpu.memory_space<vmem>>, vector<1x1x136xf32>
    %727 = vector.shape_cast %726 : vector<1x1x136xf32> to vector<1x136xf32>
    %728 = vector.extract_strided_slice %690 {offsets = [0, 5, 0], sizes = [8, 16, 136], strides = [1, 1, 1]} : vector<8x22x136xf32> to vector<8x16x136xf32>
    %729 = vector.shape_cast %727 : vector<1x136xf32> to vector<1x1x136xf32>
    %730 = vector.broadcast %729 : vector<1x1x136xf32> to vector<8x16x136xf32>
    %731 = arith.mulf %730, %728 : vector<8x16x136xf32>
    %732 = arith.addf %725, %731 : vector<8x16x136xf32>
    %c41_345 = arith.constant 41 : index
    %c0_346 = arith.constant 0 : index
    %c0_347 = arith.constant 0 : index
    %733 = vector.load %arg7[%c41_345, %c0_346, %c0_347] : memref<49x1x136xf32, #tpu.memory_space<vmem>>, vector<1x1x136xf32>
    %734 = vector.shape_cast %733 : vector<1x1x136xf32> to vector<1x136xf32>
    %735 = vector.extract_strided_slice %690 {offsets = [0, 6, 0], sizes = [8, 16, 136], strides = [1, 1, 1]} : vector<8x22x136xf32> to vector<8x16x136xf32>
    %736 = vector.shape_cast %734 : vector<1x136xf32> to vector<1x1x136xf32>
    %737 = vector.broadcast %736 : vector<1x1x136xf32> to vector<8x16x136xf32>
    %738 = arith.mulf %737, %735 : vector<8x16x136xf32>
    %739 = arith.addf %732, %738 : vector<8x16x136xf32>
    %c14_348 = arith.constant 14 : index
    %c0_349 = arith.constant 0 : index
    %c0_350 = arith.constant 0 : index
    %740 = vector.load %arg13[%c14_348, %c0_349, %c0_350] : memref<22x22x136xf32, #tpu.memory_space<vmem>>, vector<8x22x136xf32>
    %c42_351 = arith.constant 42 : index
    %c0_352 = arith.constant 0 : index
    %c0_353 = arith.constant 0 : index
    %741 = vector.load %arg7[%c42_351, %c0_352, %c0_353] : memref<49x1x136xf32, #tpu.memory_space<vmem>>, vector<1x1x136xf32>
    %742 = vector.shape_cast %741 : vector<1x1x136xf32> to vector<1x136xf32>
    %743 = vector.extract_strided_slice %740 {offsets = [0, 0, 0], sizes = [8, 16, 136], strides = [1, 1, 1]} : vector<8x22x136xf32> to vector<8x16x136xf32>
    %744 = vector.shape_cast %742 : vector<1x136xf32> to vector<1x1x136xf32>
    %745 = vector.broadcast %744 : vector<1x1x136xf32> to vector<8x16x136xf32>
    %746 = arith.mulf %745, %743 : vector<8x16x136xf32>
    %747 = arith.addf %739, %746 : vector<8x16x136xf32>
    %c43_354 = arith.constant 43 : index
    %c0_355 = arith.constant 0 : index
    %c0_356 = arith.constant 0 : index
    %748 = vector.load %arg7[%c43_354, %c0_355, %c0_356] : memref<49x1x136xf32, #tpu.memory_space<vmem>>, vector<1x1x136xf32>
    %749 = vector.shape_cast %748 : vector<1x1x136xf32> to vector<1x136xf32>
    %750 = vector.extract_strided_slice %740 {offsets = [0, 1, 0], sizes = [8, 16, 136], strides = [1, 1, 1]} : vector<8x22x136xf32> to vector<8x16x136xf32>
    %751 = vector.shape_cast %749 : vector<1x136xf32> to vector<1x1x136xf32>
    %752 = vector.broadcast %751 : vector<1x1x136xf32> to vector<8x16x136xf32>
    %753 = arith.mulf %752, %750 : vector<8x16x136xf32>
    %754 = arith.addf %747, %753 : vector<8x16x136xf32>
    %c44_357 = arith.constant 44 : index
    %c0_358 = arith.constant 0 : index
    %c0_359 = arith.constant 0 : index
    %755 = vector.load %arg7[%c44_357, %c0_358, %c0_359] : memref<49x1x136xf32, #tpu.memory_space<vmem>>, vector<1x1x136xf32>
    %756 = vector.shape_cast %755 : vector<1x1x136xf32> to vector<1x136xf32>
    %757 = vector.extract_strided_slice %740 {offsets = [0, 2, 0], sizes = [8, 16, 136], strides = [1, 1, 1]} : vector<8x22x136xf32> to vector<8x16x136xf32>
    %758 = vector.shape_cast %756 : vector<1x136xf32> to vector<1x1x136xf32>
    %759 = vector.broadcast %758 : vector<1x1x136xf32> to vector<8x16x136xf32>
    %760 = arith.mulf %759, %757 : vector<8x16x136xf32>
    %761 = arith.addf %754, %760 : vector<8x16x136xf32>
    %c45_360 = arith.constant 45 : index
    %c0_361 = arith.constant 0 : index
    %c0_362 = arith.constant 0 : index
    %762 = vector.load %arg7[%c45_360, %c0_361, %c0_362] : memref<49x1x136xf32, #tpu.memory_space<vmem>>, vector<1x1x136xf32>
    %763 = vector.shape_cast %762 : vector<1x1x136xf32> to vector<1x136xf32>
    %764 = vector.extract_strided_slice %740 {offsets = [0, 3, 0], sizes = [8, 16, 136], strides = [1, 1, 1]} : vector<8x22x136xf32> to vector<8x16x136xf32>
    %765 = vector.shape_cast %763 : vector<1x136xf32> to vector<1x1x136xf32>
    %766 = vector.broadcast %765 : vector<1x1x136xf32> to vector<8x16x136xf32>
    %767 = arith.mulf %766, %764 : vector<8x16x136xf32>
    %768 = arith.addf %761, %767 : vector<8x16x136xf32>
    %c46_363 = arith.constant 46 : index
    %c0_364 = arith.constant 0 : index
    %c0_365 = arith.constant 0 : index
    %769 = vector.load %arg7[%c46_363, %c0_364, %c0_365] : memref<49x1x136xf32, #tpu.memory_space<vmem>>, vector<1x1x136xf32>
    %770 = vector.shape_cast %769 : vector<1x1x136xf32> to vector<1x136xf32>
    %771 = vector.extract_strided_slice %740 {offsets = [0, 4, 0], sizes = [8, 16, 136], strides = [1, 1, 1]} : vector<8x22x136xf32> to vector<8x16x136xf32>
    %772 = vector.shape_cast %770 : vector<1x136xf32> to vector<1x1x136xf32>
    %773 = vector.broadcast %772 : vector<1x1x136xf32> to vector<8x16x136xf32>
    %774 = arith.mulf %773, %771 : vector<8x16x136xf32>
    %775 = arith.addf %768, %774 : vector<8x16x136xf32>
    %c47_366 = arith.constant 47 : index
    %c0_367 = arith.constant 0 : index
    %c0_368 = arith.constant 0 : index
    %776 = vector.load %arg7[%c47_366, %c0_367, %c0_368] : memref<49x1x136xf32, #tpu.memory_space<vmem>>, vector<1x1x136xf32>
    %777 = vector.shape_cast %776 : vector<1x1x136xf32> to vector<1x136xf32>
    %778 = vector.extract_strided_slice %740 {offsets = [0, 5, 0], sizes = [8, 16, 136], strides = [1, 1, 1]} : vector<8x22x136xf32> to vector<8x16x136xf32>
    %779 = vector.shape_cast %777 : vector<1x136xf32> to vector<1x1x136xf32>
    %780 = vector.broadcast %779 : vector<1x1x136xf32> to vector<8x16x136xf32>
    %781 = arith.mulf %780, %778 : vector<8x16x136xf32>
    %782 = arith.addf %775, %781 : vector<8x16x136xf32>
    %c48_369 = arith.constant 48 : index
    %c0_370 = arith.constant 0 : index
    %c0_371 = arith.constant 0 : index
    %783 = vector.load %arg7[%c48_369, %c0_370, %c0_371] : memref<49x1x136xf32, #tpu.memory_space<vmem>>, vector<1x1x136xf32>
    %784 = vector.shape_cast %783 : vector<1x1x136xf32> to vector<1x136xf32>
    %785 = vector.extract_strided_slice %740 {offsets = [0, 6, 0], sizes = [8, 16, 136], strides = [1, 1, 1]} : vector<8x22x136xf32> to vector<8x16x136xf32>
    %786 = vector.shape_cast %784 : vector<1x136xf32> to vector<1x1x136xf32>
    %787 = vector.broadcast %786 : vector<1x1x136xf32> to vector<8x16x136xf32>
    %788 = arith.mulf %787, %785 : vector<8x16x136xf32>
    %789 = arith.addf %782, %788 : vector<8x16x136xf32>
    %790 = vector.extract_strided_slice %789 {offsets = [0, 0, 0], sizes = [8, 16, 128], strides = [1, 1, 1]} : vector<8x16x136xf32> to vector<8x16x128xf32>
    %c8_372 = arith.constant 8 : index
    %c0_373 = arith.constant 0 : index
    %c0_374 = arith.constant 0 : index
    %791 = vector.load %arg15[%c8_372, %c0_373, %c0_374] : memref<16x16x128xf32, #tpu.memory_space<vmem>>, vector<8x16x128xf32>
    tpu.vector_store %arg15[%c8_372, %c0_373, %c0_374], %790 {strides = array<i32>} : memref<16x16x128xf32, #tpu.memory_space<vmem>>, vector<8x16x128xf32>,
    %792 = vector.extract_strided_slice %789 {offsets = [0, 0, 128], sizes = [8, 16, 4], strides = [1, 1, 1]} : vector<8x16x136xf32> to vector<8x16x4xf32>
    %793 = vector.extract_strided_slice %789 {offsets = [0, 0, 132], sizes = [8, 16, 4], strides = [1, 1, 1]} : vector<8x16x136xf32> to vector<8x16x4xf32>
    %794 = arith.addf %792, %793 : vector<8x16x4xf32>
    %795 = vector.extract_strided_slice %794 {offsets = [0, 0, 0], sizes = [8, 16, 1], strides = [1, 1, 1]} : vector<8x16x4xf32> to vector<8x16x1xf32>
    %796 = vector.extract_strided_slice %24 {offsets = [0, 0], sizes = [1, 32], strides = [1, 1]} : vector<4x32xf32> to vector<1x32xf32>
    %797 = vector.shape_cast %796 : vector<1x32xf32> to vector<1x1x32xf32>
    %798 = vector.broadcast %795 : vector<8x16x1xf32> to vector<8x16x32xf32>
    %799 = vector.broadcast %797 : vector<1x1x32xf32> to vector<8x16x32xf32>
    %800 = arith.addf %798, %799 : vector<8x16x32xf32>
    %801 = vector.extract_strided_slice %794 {offsets = [0, 0, 1], sizes = [8, 16, 1], strides = [1, 1, 1]} : vector<8x16x4xf32> to vector<8x16x1xf32>
    %802 = vector.extract_strided_slice %24 {offsets = [1, 0], sizes = [1, 32], strides = [1, 1]} : vector<4x32xf32> to vector<1x32xf32>
    %803 = vector.shape_cast %802 : vector<1x32xf32> to vector<1x1x32xf32>
    %804 = vector.broadcast %801 : vector<8x16x1xf32> to vector<8x16x32xf32>
    %805 = vector.broadcast %803 : vector<1x1x32xf32> to vector<8x16x32xf32>
    %806 = arith.addf %804, %805 : vector<8x16x32xf32>
    %807 = vector.extract_strided_slice %794 {offsets = [0, 0, 2], sizes = [8, 16, 1], strides = [1, 1, 1]} : vector<8x16x4xf32> to vector<8x16x1xf32>
    %808 = vector.extract_strided_slice %24 {offsets = [2, 0], sizes = [1, 32], strides = [1, 1]} : vector<4x32xf32> to vector<1x32xf32>
    %809 = vector.shape_cast %808 : vector<1x32xf32> to vector<1x1x32xf32>
    %810 = vector.broadcast %807 : vector<8x16x1xf32> to vector<8x16x32xf32>
    %811 = vector.broadcast %809 : vector<1x1x32xf32> to vector<8x16x32xf32>
    %812 = arith.addf %810, %811 : vector<8x16x32xf32>
    %813 = vector.extract_strided_slice %794 {offsets = [0, 0, 3], sizes = [8, 16, 1], strides = [1, 1, 1]} : vector<8x16x4xf32> to vector<8x16x1xf32>
    %814 = vector.extract_strided_slice %24 {offsets = [3, 0], sizes = [1, 32], strides = [1, 1]} : vector<4x32xf32> to vector<1x32xf32>
    %815 = vector.shape_cast %814 : vector<1x32xf32> to vector<1x1x32xf32>
    %816 = vector.broadcast %813 : vector<8x16x1xf32> to vector<8x16x32xf32>
    %817 = vector.broadcast %815 : vector<1x1x32xf32> to vector<8x16x32xf32>
    %818 = arith.addf %816, %817 : vector<8x16x32xf32>
    %819 = tpu.concatenate %800, %806, %812, %818 in 2 : vector<8x16x32xf32>, vector<8x16x32xf32>, vector<8x16x32xf32>, vector<8x16x32xf32> -> vector<8x16x128xf32>
    %c11_375 = arith.constant 11 : index
    %c3_376 = arith.constant 3 : index
    %c0_377 = arith.constant 0 : index
    %820 = vector.load %arg14[%c11_375, %c3_376, %c0_377] : memref<22x22x128xf32, #tpu.memory_space<vmem>>, vector<8x16x128xf32>
    tpu.vector_store %arg14[%c11_375, %c3_376, %c0_377], %819 {strides = array<i32>} : memref<22x22x128xf32, #tpu.memory_space<vmem>>, vector<8x16x128xf32>,
    %c3_378 = arith.constant 3 : index
    %c6_379 = arith.constant 6 : index
    %c0_380 = arith.constant 0 : index
    %821 = vector.load %arg14[%c3_378, %c6_379, %c0_380] : memref<22x22x128xf32, #tpu.memory_space<vmem>>, vector<16x1x128xf32>
    %c3_381 = arith.constant 3 : index
    %c5_382 = arith.constant 5 : index
    %c0_383 = arith.constant 0 : index
    %822 = vector.load %arg14[%c3_381, %c5_382, %c0_383] : memref<22x22x128xf32, #tpu.memory_space<vmem>>, vector<16x1x128xf32>
    %c3_384 = arith.constant 3 : index
    %c4_385 = arith.constant 4 : index
    %c0_386 = arith.constant 0 : index
    %823 = vector.load %arg14[%c3_384, %c4_385, %c0_386] : memref<22x22x128xf32, #tpu.memory_space<vmem>>, vector<16x1x128xf32>
    %824 = tpu.concatenate %821, %822, %823 in 1 : vector<16x1x128xf32>, vector<16x1x128xf32>, vector<16x1x128xf32> -> vector<16x3x128xf32>
    %c3_387 = arith.constant 3 : index
    %c0_388 = arith.constant 0 : index
    %c0_389 = arith.constant 0 : index
    %825 = vector.load %arg14[%c3_387, %c0_388, %c0_389] : memref<22x22x128xf32, #tpu.memory_space<vmem>>, vector<16x3x128xf32>
    tpu.vector_store %arg14[%c3_387, %c0_388, %c0_389], %824 {strides = array<i32>} : memref<22x22x128xf32, #tpu.memory_space<vmem>>, vector<16x3x128xf32>,
    %c3_390 = arith.constant 3 : index
    %c17_391 = arith.constant 17 : index
    %c0_392 = arith.constant 0 : index
    %826 = vector.load %arg14[%c3_390, %c17_391, %c0_392] : memref<22x22x128xf32, #tpu.memory_space<vmem>>, vector<16x1x128xf32>
    %c3_393 = arith.constant 3 : index
    %c16_394 = arith.constant 16 : index
    %c0_395 = arith.constant 0 : index
    %827 = vector.load %arg14[%c3_393, %c16_394, %c0_395] : memref<22x22x128xf32, #tpu.memory_space<vmem>>, vector<16x1x128xf32>
    %c3_396 = arith.constant 3 : index
    %c15_397 = arith.constant 15 : index
    %c0_398 = arith.constant 0 : index
    %828 = vector.load %arg14[%c3_396, %c15_397, %c0_398] : memref<22x22x128xf32, #tpu.memory_space<vmem>>, vector<16x1x128xf32>
    %829 = tpu.concatenate %826, %827, %828 in 1 : vector<16x1x128xf32>, vector<16x1x128xf32>, vector<16x1x128xf32> -> vector<16x3x128xf32>
    %c3_399 = arith.constant 3 : index
    %c19_400 = arith.constant 19 : index
    %c0_401 = arith.constant 0 : index
    %830 = vector.load %arg14[%c3_399, %c19_400, %c0_401] : memref<22x22x128xf32, #tpu.memory_space<vmem>>, vector<16x3x128xf32>
    tpu.vector_store %arg14[%c3_399, %c19_400, %c0_401], %829 {strides = array<i32>} : memref<22x22x128xf32, #tpu.memory_space<vmem>>, vector<16x3x128xf32>,
    %c6_402 = arith.constant 6 : index
    %c0_403 = arith.constant 0 : index
    %c0_404 = arith.constant 0 : index
    %831 = vector.load %arg14[%c6_402, %c0_403, %c0_404] : memref<22x22x128xf32, #tpu.memory_space<vmem>>, vector<1x22x128xf32>
    %c5_405 = arith.constant 5 : index
    %c0_406 = arith.constant 0 : index
    %c0_407 = arith.constant 0 : index
    %832 = vector.load %arg14[%c5_405, %c0_406, %c0_407] : memref<22x22x128xf32, #tpu.memory_space<vmem>>, vector<1x22x128xf32>
    %c4_408 = arith.constant 4 : index
    %c0_409 = arith.constant 0 : index
    %c0_410 = arith.constant 0 : index
    %833 = vector.load %arg14[%c4_408, %c0_409, %c0_410] : memref<22x22x128xf32, #tpu.memory_space<vmem>>, vector<1x22x128xf32>
    %834 = tpu.concatenate %831, %832, %833 in 0 : vector<1x22x128xf32>, vector<1x22x128xf32>, vector<1x22x128xf32> -> vector<3x22x128xf32>
    %c0_411 = arith.constant 0 : index
    %c0_412 = arith.constant 0 : index
    %c0_413 = arith.constant 0 : index
    %835 = vector.load %arg14[%c0_411, %c0_412, %c0_413] : memref<22x22x128xf32, #tpu.memory_space<vmem>>, vector<3x22x128xf32>
    tpu.vector_store %arg14[%c0_411, %c0_412, %c0_413], %834 {strides = array<i32>} : memref<22x22x128xf32, #tpu.memory_space<vmem>>, vector<3x22x128xf32>,
    %c17_414 = arith.constant 17 : index
    %c0_415 = arith.constant 0 : index
    %c0_416 = arith.constant 0 : index
    %836 = vector.load %arg14[%c17_414, %c0_415, %c0_416] : memref<22x22x128xf32, #tpu.memory_space<vmem>>, vector<1x22x128xf32>
    %c16_417 = arith.constant 16 : index
    %c0_418 = arith.constant 0 : index
    %c0_419 = arith.constant 0 : index
    %837 = vector.load %arg14[%c16_417, %c0_418, %c0_419] : memref<22x22x128xf32, #tpu.memory_space<vmem>>, vector<1x22x128xf32>
    %c15_420 = arith.constant 15 : index
    %c0_421 = arith.constant 0 : index
    %c0_422 = arith.constant 0 : index
    %838 = vector.load %arg14[%c15_420, %c0_421, %c0_422] : memref<22x22x128xf32, #tpu.memory_space<vmem>>, vector<1x22x128xf32>
    %839 = tpu.concatenate %836, %837, %838 in 0 : vector<1x22x128xf32>, vector<1x22x128xf32>, vector<1x22x128xf32> -> vector<3x22x128xf32>
    %c19_423 = arith.constant 19 : index
    %c0_424 = arith.constant 0 : index
    %c0_425 = arith.constant 0 : index
    %840 = vector.load %arg14[%c19_423, %c0_424, %c0_425] : memref<22x22x128xf32, #tpu.memory_space<vmem>>, vector<3x22x128xf32>
    tpu.vector_store %arg14[%c19_423, %c0_424, %c0_425], %839 {strides = array<i32>} : memref<22x22x128xf32, #tpu.memory_space<vmem>>, vector<3x22x128xf32>,
    %cst_426 = arith.constant 0.000000e+00 : f32
    %841 = vector.broadcast %cst_426 : f32 to vector<8x16x128xf32>
    %c0_427 = arith.constant 0 : index
    %c0_428 = arith.constant 0 : index
    %c0_429 = arith.constant 0 : index
    %842 = vector.load %arg14[%c0_427, %c0_428, %c0_429] : memref<22x22x128xf32, #tpu.memory_space<vmem>>, vector<8x22x128xf32>
    %c0_430 = arith.constant 0 : index
    %c0_431 = arith.constant 0 : index
    %c0_432 = arith.constant 0 : index
    %843 = vector.load %arg8[%c0_430, %c0_431, %c0_432] : memref<49x1x128xf32, #tpu.memory_space<vmem>>, vector<1x1x128xf32>
    %844 = vector.shape_cast %843 : vector<1x1x128xf32> to vector<1x128xf32>
    %845 = vector.extract_strided_slice %842 {offsets = [0, 0, 0], sizes = [8, 16, 128], strides = [1, 1, 1]} : vector<8x22x128xf32> to vector<8x16x128xf32>
    %846 = vector.shape_cast %844 : vector<1x128xf32> to vector<1x1x128xf32>
    %847 = vector.broadcast %846 : vector<1x1x128xf32> to vector<8x16x128xf32>
    %848 = arith.mulf %847, %845 : vector<8x16x128xf32>
    %849 = arith.addf %841, %848 : vector<8x16x128xf32>
    %c1_433 = arith.constant 1 : index
    %c0_434 = arith.constant 0 : index
    %c0_435 = arith.constant 0 : index
    %850 = vector.load %arg8[%c1_433, %c0_434, %c0_435] : memref<49x1x128xf32, #tpu.memory_space<vmem>>, vector<1x1x128xf32>
    %851 = vector.shape_cast %850 : vector<1x1x128xf32> to vector<1x128xf32>
    %852 = vector.extract_strided_slice %842 {offsets = [0, 1, 0], sizes = [8, 16, 128], strides = [1, 1, 1]} : vector<8x22x128xf32> to vector<8x16x128xf32>
    %853 = vector.shape_cast %851 : vector<1x128xf32> to vector<1x1x128xf32>
    %854 = vector.broadcast %853 : vector<1x1x128xf32> to vector<8x16x128xf32>
    %855 = arith.mulf %854, %852 : vector<8x16x128xf32>
    %856 = arith.addf %849, %855 : vector<8x16x128xf32>
    %c2_436 = arith.constant 2 : index
    %c0_437 = arith.constant 0 : index
    %c0_438 = arith.constant 0 : index
    %857 = vector.load %arg8[%c2_436, %c0_437, %c0_438] : memref<49x1x128xf32, #tpu.memory_space<vmem>>, vector<1x1x128xf32>
    %858 = vector.shape_cast %857 : vector<1x1x128xf32> to vector<1x128xf32>
    %859 = vector.extract_strided_slice %842 {offsets = [0, 2, 0], sizes = [8, 16, 128], strides = [1, 1, 1]} : vector<8x22x128xf32> to vector<8x16x128xf32>
    %860 = vector.shape_cast %858 : vector<1x128xf32> to vector<1x1x128xf32>
    %861 = vector.broadcast %860 : vector<1x1x128xf32> to vector<8x16x128xf32>
    %862 = arith.mulf %861, %859 : vector<8x16x128xf32>
    %863 = arith.addf %856, %862 : vector<8x16x128xf32>
    %c3_439 = arith.constant 3 : index
    %c0_440 = arith.constant 0 : index
    %c0_441 = arith.constant 0 : index
    %864 = vector.load %arg8[%c3_439, %c0_440, %c0_441] : memref<49x1x128xf32, #tpu.memory_space<vmem>>, vector<1x1x128xf32>
    %865 = vector.shape_cast %864 : vector<1x1x128xf32> to vector<1x128xf32>
    %866 = vector.extract_strided_slice %842 {offsets = [0, 3, 0], sizes = [8, 16, 128], strides = [1, 1, 1]} : vector<8x22x128xf32> to vector<8x16x128xf32>
    %867 = vector.shape_cast %865 : vector<1x128xf32> to vector<1x1x128xf32>
    %868 = vector.broadcast %867 : vector<1x1x128xf32> to vector<8x16x128xf32>
    %869 = arith.mulf %868, %866 : vector<8x16x128xf32>
    %870 = arith.addf %863, %869 : vector<8x16x128xf32>
    %c4_442 = arith.constant 4 : index
    %c0_443 = arith.constant 0 : index
    %c0_444 = arith.constant 0 : index
    %871 = vector.load %arg8[%c4_442, %c0_443, %c0_444] : memref<49x1x128xf32, #tpu.memory_space<vmem>>, vector<1x1x128xf32>
    %872 = vector.shape_cast %871 : vector<1x1x128xf32> to vector<1x128xf32>
    %873 = vector.extract_strided_slice %842 {offsets = [0, 4, 0], sizes = [8, 16, 128], strides = [1, 1, 1]} : vector<8x22x128xf32> to vector<8x16x128xf32>
    %874 = vector.shape_cast %872 : vector<1x128xf32> to vector<1x1x128xf32>
    %875 = vector.broadcast %874 : vector<1x1x128xf32> to vector<8x16x128xf32>
    %876 = arith.mulf %875, %873 : vector<8x16x128xf32>
    %877 = arith.addf %870, %876 : vector<8x16x128xf32>
    %c5_445 = arith.constant 5 : index
    %c0_446 = arith.constant 0 : index
    %c0_447 = arith.constant 0 : index
    %878 = vector.load %arg8[%c5_445, %c0_446, %c0_447] : memref<49x1x128xf32, #tpu.memory_space<vmem>>, vector<1x1x128xf32>
    %879 = vector.shape_cast %878 : vector<1x1x128xf32> to vector<1x128xf32>
    %880 = vector.extract_strided_slice %842 {offsets = [0, 5, 0], sizes = [8, 16, 128], strides = [1, 1, 1]} : vector<8x22x128xf32> to vector<8x16x128xf32>
    %881 = vector.shape_cast %879 : vector<1x128xf32> to vector<1x1x128xf32>
    %882 = vector.broadcast %881 : vector<1x1x128xf32> to vector<8x16x128xf32>
    %883 = arith.mulf %882, %880 : vector<8x16x128xf32>
    %884 = arith.addf %877, %883 : vector<8x16x128xf32>
    %c6_448 = arith.constant 6 : index
    %c0_449 = arith.constant 0 : index
    %c0_450 = arith.constant 0 : index
    %885 = vector.load %arg8[%c6_448, %c0_449, %c0_450] : memref<49x1x128xf32, #tpu.memory_space<vmem>>, vector<1x1x128xf32>
    %886 = vector.shape_cast %885 : vector<1x1x128xf32> to vector<1x128xf32>
    %887 = vector.extract_strided_slice %842 {offsets = [0, 6, 0], sizes = [8, 16, 128], strides = [1, 1, 1]} : vector<8x22x128xf32> to vector<8x16x128xf32>
    %888 = vector.shape_cast %886 : vector<1x128xf32> to vector<1x1x128xf32>
    %889 = vector.broadcast %888 : vector<1x1x128xf32> to vector<8x16x128xf32>
    %890 = arith.mulf %889, %887 : vector<8x16x128xf32>
    %891 = arith.addf %884, %890 : vector<8x16x128xf32>
    %c1_451 = arith.constant 1 : index
    %c0_452 = arith.constant 0 : index
    %c0_453 = arith.constant 0 : index
    %892 = vector.load %arg14[%c1_451, %c0_452, %c0_453] : memref<22x22x128xf32, #tpu.memory_space<vmem>>, vector<8x22x128xf32>
    %c7_454 = arith.constant 7 : index
    %c0_455 = arith.constant 0 : index
    %c0_456 = arith.constant 0 : index
    %893 = vector.load %arg8[%c7_454, %c0_455, %c0_456] : memref<49x1x128xf32, #tpu.memory_space<vmem>>, vector<1x1x128xf32>
    %894 = vector.shape_cast %893 : vector<1x1x128xf32> to vector<1x128xf32>
    %895 = vector.extract_strided_slice %892 {offsets = [0, 0, 0], sizes = [8, 16, 128], strides = [1, 1, 1]} : vector<8x22x128xf32> to vector<8x16x128xf32>
    %896 = vector.shape_cast %894 : vector<1x128xf32> to vector<1x1x128xf32>
    %897 = vector.broadcast %896 : vector<1x1x128xf32> to vector<8x16x128xf32>
    %898 = arith.mulf %897, %895 : vector<8x16x128xf32>
    %899 = arith.addf %891, %898 : vector<8x16x128xf32>
    %c8_457 = arith.constant 8 : index
    %c0_458 = arith.constant 0 : index
    %c0_459 = arith.constant 0 : index
    %900 = vector.load %arg8[%c8_457, %c0_458, %c0_459] : memref<49x1x128xf32, #tpu.memory_space<vmem>>, vector<1x1x128xf32>
    %901 = vector.shape_cast %900 : vector<1x1x128xf32> to vector<1x128xf32>
    %902 = vector.extract_strided_slice %892 {offsets = [0, 1, 0], sizes = [8, 16, 128], strides = [1, 1, 1]} : vector<8x22x128xf32> to vector<8x16x128xf32>
    %903 = vector.shape_cast %901 : vector<1x128xf32> to vector<1x1x128xf32>
    %904 = vector.broadcast %903 : vector<1x1x128xf32> to vector<8x16x128xf32>
    %905 = arith.mulf %904, %902 : vector<8x16x128xf32>
    %906 = arith.addf %899, %905 : vector<8x16x128xf32>
    %c9_460 = arith.constant 9 : index
    %c0_461 = arith.constant 0 : index
    %c0_462 = arith.constant 0 : index
    %907 = vector.load %arg8[%c9_460, %c0_461, %c0_462] : memref<49x1x128xf32, #tpu.memory_space<vmem>>, vector<1x1x128xf32>
    %908 = vector.shape_cast %907 : vector<1x1x128xf32> to vector<1x128xf32>
    %909 = vector.extract_strided_slice %892 {offsets = [0, 2, 0], sizes = [8, 16, 128], strides = [1, 1, 1]} : vector<8x22x128xf32> to vector<8x16x128xf32>
    %910 = vector.shape_cast %908 : vector<1x128xf32> to vector<1x1x128xf32>
    %911 = vector.broadcast %910 : vector<1x1x128xf32> to vector<8x16x128xf32>
    %912 = arith.mulf %911, %909 : vector<8x16x128xf32>
    %913 = arith.addf %906, %912 : vector<8x16x128xf32>
    %c10_463 = arith.constant 10 : index
    %c0_464 = arith.constant 0 : index
    %c0_465 = arith.constant 0 : index
    %914 = vector.load %arg8[%c10_463, %c0_464, %c0_465] : memref<49x1x128xf32, #tpu.memory_space<vmem>>, vector<1x1x128xf32>
    %915 = vector.shape_cast %914 : vector<1x1x128xf32> to vector<1x128xf32>
    %916 = vector.extract_strided_slice %892 {offsets = [0, 3, 0], sizes = [8, 16, 128], strides = [1, 1, 1]} : vector<8x22x128xf32> to vector<8x16x128xf32>
    %917 = vector.shape_cast %915 : vector<1x128xf32> to vector<1x1x128xf32>
    %918 = vector.broadcast %917 : vector<1x1x128xf32> to vector<8x16x128xf32>
    %919 = arith.mulf %918, %916 : vector<8x16x128xf32>
    %920 = arith.addf %913, %919 : vector<8x16x128xf32>
    %c11_466 = arith.constant 11 : index
    %c0_467 = arith.constant 0 : index
    %c0_468 = arith.constant 0 : index
    %921 = vector.load %arg8[%c11_466, %c0_467, %c0_468] : memref<49x1x128xf32, #tpu.memory_space<vmem>>, vector<1x1x128xf32>
    %922 = vector.shape_cast %921 : vector<1x1x128xf32> to vector<1x128xf32>
    %923 = vector.extract_strided_slice %892 {offsets = [0, 4, 0], sizes = [8, 16, 128], strides = [1, 1, 1]} : vector<8x22x128xf32> to vector<8x16x128xf32>
    %924 = vector.shape_cast %922 : vector<1x128xf32> to vector<1x1x128xf32>
    %925 = vector.broadcast %924 : vector<1x1x128xf32> to vector<8x16x128xf32>
    %926 = arith.mulf %925, %923 : vector<8x16x128xf32>
    %927 = arith.addf %920, %926 : vector<8x16x128xf32>
    %c12_469 = arith.constant 12 : index
    %c0_470 = arith.constant 0 : index
    %c0_471 = arith.constant 0 : index
    %928 = vector.load %arg8[%c12_469, %c0_470, %c0_471] : memref<49x1x128xf32, #tpu.memory_space<vmem>>, vector<1x1x128xf32>
    %929 = vector.shape_cast %928 : vector<1x1x128xf32> to vector<1x128xf32>
    %930 = vector.extract_strided_slice %892 {offsets = [0, 5, 0], sizes = [8, 16, 128], strides = [1, 1, 1]} : vector<8x22x128xf32> to vector<8x16x128xf32>
    %931 = vector.shape_cast %929 : vector<1x128xf32> to vector<1x1x128xf32>
    %932 = vector.broadcast %931 : vector<1x1x128xf32> to vector<8x16x128xf32>
    %933 = arith.mulf %932, %930 : vector<8x16x128xf32>
    %934 = arith.addf %927, %933 : vector<8x16x128xf32>
    %c13_472 = arith.constant 13 : index
    %c0_473 = arith.constant 0 : index
    %c0_474 = arith.constant 0 : index
    %935 = vector.load %arg8[%c13_472, %c0_473, %c0_474] : memref<49x1x128xf32, #tpu.memory_space<vmem>>, vector<1x1x128xf32>
    %936 = vector.shape_cast %935 : vector<1x1x128xf32> to vector<1x128xf32>
    %937 = vector.extract_strided_slice %892 {offsets = [0, 6, 0], sizes = [8, 16, 128], strides = [1, 1, 1]} : vector<8x22x128xf32> to vector<8x16x128xf32>
    %938 = vector.shape_cast %936 : vector<1x128xf32> to vector<1x1x128xf32>
    %939 = vector.broadcast %938 : vector<1x1x128xf32> to vector<8x16x128xf32>
    %940 = arith.mulf %939, %937 : vector<8x16x128xf32>
    %941 = arith.addf %934, %940 : vector<8x16x128xf32>
    %c2_475 = arith.constant 2 : index
    %c0_476 = arith.constant 0 : index
    %c0_477 = arith.constant 0 : index
    %942 = vector.load %arg14[%c2_475, %c0_476, %c0_477] : memref<22x22x128xf32, #tpu.memory_space<vmem>>, vector<8x22x128xf32>
    %c14_478 = arith.constant 14 : index
    %c0_479 = arith.constant 0 : index
    %c0_480 = arith.constant 0 : index
    %943 = vector.load %arg8[%c14_478, %c0_479, %c0_480] : memref<49x1x128xf32, #tpu.memory_space<vmem>>, vector<1x1x128xf32>
    %944 = vector.shape_cast %943 : vector<1x1x128xf32> to vector<1x128xf32>
    %945 = vector.extract_strided_slice %942 {offsets = [0, 0, 0], sizes = [8, 16, 128], strides = [1, 1, 1]} : vector<8x22x128xf32> to vector<8x16x128xf32>
    %946 = vector.shape_cast %944 : vector<1x128xf32> to vector<1x1x128xf32>
    %947 = vector.broadcast %946 : vector<1x1x128xf32> to vector<8x16x128xf32>
    %948 = arith.mulf %947, %945 : vector<8x16x128xf32>
    %949 = arith.addf %941, %948 : vector<8x16x128xf32>
    %c15_481 = arith.constant 15 : index
    %c0_482 = arith.constant 0 : index
    %c0_483 = arith.constant 0 : index
    %950 = vector.load %arg8[%c15_481, %c0_482, %c0_483] : memref<49x1x128xf32, #tpu.memory_space<vmem>>, vector<1x1x128xf32>
    %951 = vector.shape_cast %950 : vector<1x1x128xf32> to vector<1x128xf32>
    %952 = vector.extract_strided_slice %942 {offsets = [0, 1, 0], sizes = [8, 16, 128], strides = [1, 1, 1]} : vector<8x22x128xf32> to vector<8x16x128xf32>
    %953 = vector.shape_cast %951 : vector<1x128xf32> to vector<1x1x128xf32>
    %954 = vector.broadcast %953 : vector<1x1x128xf32> to vector<8x16x128xf32>
    %955 = arith.mulf %954, %952 : vector<8x16x128xf32>
    %956 = arith.addf %949, %955 : vector<8x16x128xf32>
    %c16_484 = arith.constant 16 : index
    %c0_485 = arith.constant 0 : index
    %c0_486 = arith.constant 0 : index
    %957 = vector.load %arg8[%c16_484, %c0_485, %c0_486] : memref<49x1x128xf32, #tpu.memory_space<vmem>>, vector<1x1x128xf32>
    %958 = vector.shape_cast %957 : vector<1x1x128xf32> to vector<1x128xf32>
    %959 = vector.extract_strided_slice %942 {offsets = [0, 2, 0], sizes = [8, 16, 128], strides = [1, 1, 1]} : vector<8x22x128xf32> to vector<8x16x128xf32>
    %960 = vector.shape_cast %958 : vector<1x128xf32> to vector<1x1x128xf32>
    %961 = vector.broadcast %960 : vector<1x1x128xf32> to vector<8x16x128xf32>
    %962 = arith.mulf %961, %959 : vector<8x16x128xf32>
    %963 = arith.addf %956, %962 : vector<8x16x128xf32>
    %c17_487 = arith.constant 17 : index
    %c0_488 = arith.constant 0 : index
    %c0_489 = arith.constant 0 : index
    %964 = vector.load %arg8[%c17_487, %c0_488, %c0_489] : memref<49x1x128xf32, #tpu.memory_space<vmem>>, vector<1x1x128xf32>
    %965 = vector.shape_cast %964 : vector<1x1x128xf32> to vector<1x128xf32>
    %966 = vector.extract_strided_slice %942 {offsets = [0, 3, 0], sizes = [8, 16, 128], strides = [1, 1, 1]} : vector<8x22x128xf32> to vector<8x16x128xf32>
    %967 = vector.shape_cast %965 : vector<1x128xf32> to vector<1x1x128xf32>
    %968 = vector.broadcast %967 : vector<1x1x128xf32> to vector<8x16x128xf32>
    %969 = arith.mulf %968, %966 : vector<8x16x128xf32>
    %970 = arith.addf %963, %969 : vector<8x16x128xf32>
    %c18_490 = arith.constant 18 : index
    %c0_491 = arith.constant 0 : index
    %c0_492 = arith.constant 0 : index
    %971 = vector.load %arg8[%c18_490, %c0_491, %c0_492] : memref<49x1x128xf32, #tpu.memory_space<vmem>>, vector<1x1x128xf32>
    %972 = vector.shape_cast %971 : vector<1x1x128xf32> to vector<1x128xf32>
    %973 = vector.extract_strided_slice %942 {offsets = [0, 4, 0], sizes = [8, 16, 128], strides = [1, 1, 1]} : vector<8x22x128xf32> to vector<8x16x128xf32>
    %974 = vector.shape_cast %972 : vector<1x128xf32> to vector<1x1x128xf32>
    %975 = vector.broadcast %974 : vector<1x1x128xf32> to vector<8x16x128xf32>
    %976 = arith.mulf %975, %973 : vector<8x16x128xf32>
    %977 = arith.addf %970, %976 : vector<8x16x128xf32>
    %c19_493 = arith.constant 19 : index
    %c0_494 = arith.constant 0 : index
    %c0_495 = arith.constant 0 : index
    %978 = vector.load %arg8[%c19_493, %c0_494, %c0_495] : memref<49x1x128xf32, #tpu.memory_space<vmem>>, vector<1x1x128xf32>
    %979 = vector.shape_cast %978 : vector<1x1x128xf32> to vector<1x128xf32>
    %980 = vector.extract_strided_slice %942 {offsets = [0, 5, 0], sizes = [8, 16, 128], strides = [1, 1, 1]} : vector<8x22x128xf32> to vector<8x16x128xf32>
    %981 = vector.shape_cast %979 : vector<1x128xf32> to vector<1x1x128xf32>
    %982 = vector.broadcast %981 : vector<1x1x128xf32> to vector<8x16x128xf32>
    %983 = arith.mulf %982, %980 : vector<8x16x128xf32>
    %984 = arith.addf %977, %983 : vector<8x16x128xf32>
    %c20_496 = arith.constant 20 : index
    %c0_497 = arith.constant 0 : index
    %c0_498 = arith.constant 0 : index
    %985 = vector.load %arg8[%c20_496, %c0_497, %c0_498] : memref<49x1x128xf32, #tpu.memory_space<vmem>>, vector<1x1x128xf32>
    %986 = vector.shape_cast %985 : vector<1x1x128xf32> to vector<1x128xf32>
    %987 = vector.extract_strided_slice %942 {offsets = [0, 6, 0], sizes = [8, 16, 128], strides = [1, 1, 1]} : vector<8x22x128xf32> to vector<8x16x128xf32>
    %988 = vector.shape_cast %986 : vector<1x128xf32> to vector<1x1x128xf32>
    %989 = vector.broadcast %988 : vector<1x1x128xf32> to vector<8x16x128xf32>
    %990 = arith.mulf %989, %987 : vector<8x16x128xf32>
    %991 = arith.addf %984, %990 : vector<8x16x128xf32>
    %c3_499 = arith.constant 3 : index
    %c0_500 = arith.constant 0 : index
    %c0_501 = arith.constant 0 : index
    %992 = vector.load %arg14[%c3_499, %c0_500, %c0_501] : memref<22x22x128xf32, #tpu.memory_space<vmem>>, vector<8x22x128xf32>
    %c21_502 = arith.constant 21 : index
    %c0_503 = arith.constant 0 : index
    %c0_504 = arith.constant 0 : index
    %993 = vector.load %arg8[%c21_502, %c0_503, %c0_504] : memref<49x1x128xf32, #tpu.memory_space<vmem>>, vector<1x1x128xf32>
    %994 = vector.shape_cast %993 : vector<1x1x128xf32> to vector<1x128xf32>
    %995 = vector.extract_strided_slice %992 {offsets = [0, 0, 0], sizes = [8, 16, 128], strides = [1, 1, 1]} : vector<8x22x128xf32> to vector<8x16x128xf32>
    %996 = vector.shape_cast %994 : vector<1x128xf32> to vector<1x1x128xf32>
    %997 = vector.broadcast %996 : vector<1x1x128xf32> to vector<8x16x128xf32>
    %998 = arith.mulf %997, %995 : vector<8x16x128xf32>
    %999 = arith.addf %991, %998 : vector<8x16x128xf32>
    %c22_505 = arith.constant 22 : index
    %c0_506 = arith.constant 0 : index
    %c0_507 = arith.constant 0 : index
    %1000 = vector.load %arg8[%c22_505, %c0_506, %c0_507] : memref<49x1x128xf32, #tpu.memory_space<vmem>>, vector<1x1x128xf32>
    %1001 = vector.shape_cast %1000 : vector<1x1x128xf32> to vector<1x128xf32>
    %1002 = vector.extract_strided_slice %992 {offsets = [0, 1, 0], sizes = [8, 16, 128], strides = [1, 1, 1]} : vector<8x22x128xf32> to vector<8x16x128xf32>
    %1003 = vector.shape_cast %1001 : vector<1x128xf32> to vector<1x1x128xf32>
    %1004 = vector.broadcast %1003 : vector<1x1x128xf32> to vector<8x16x128xf32>
    %1005 = arith.mulf %1004, %1002 : vector<8x16x128xf32>
    %1006 = arith.addf %999, %1005 : vector<8x16x128xf32>
    %c23_508 = arith.constant 23 : index
    %c0_509 = arith.constant 0 : index
    %c0_510 = arith.constant 0 : index
    %1007 = vector.load %arg8[%c23_508, %c0_509, %c0_510] : memref<49x1x128xf32, #tpu.memory_space<vmem>>, vector<1x1x128xf32>
    %1008 = vector.shape_cast %1007 : vector<1x1x128xf32> to vector<1x128xf32>
    %1009 = vector.extract_strided_slice %992 {offsets = [0, 2, 0], sizes = [8, 16, 128], strides = [1, 1, 1]} : vector<8x22x128xf32> to vector<8x16x128xf32>
    %1010 = vector.shape_cast %1008 : vector<1x128xf32> to vector<1x1x128xf32>
    %1011 = vector.broadcast %1010 : vector<1x1x128xf32> to vector<8x16x128xf32>
    %1012 = arith.mulf %1011, %1009 : vector<8x16x128xf32>
    %1013 = arith.addf %1006, %1012 : vector<8x16x128xf32>
    %c24_511 = arith.constant 24 : index
    %c0_512 = arith.constant 0 : index
    %c0_513 = arith.constant 0 : index
    %1014 = vector.load %arg8[%c24_511, %c0_512, %c0_513] : memref<49x1x128xf32, #tpu.memory_space<vmem>>, vector<1x1x128xf32>
    %1015 = vector.shape_cast %1014 : vector<1x1x128xf32> to vector<1x128xf32>
    %1016 = vector.extract_strided_slice %992 {offsets = [0, 3, 0], sizes = [8, 16, 128], strides = [1, 1, 1]} : vector<8x22x128xf32> to vector<8x16x128xf32>
    %1017 = vector.shape_cast %1015 : vector<1x128xf32> to vector<1x1x128xf32>
    %1018 = vector.broadcast %1017 : vector<1x1x128xf32> to vector<8x16x128xf32>
    %1019 = arith.mulf %1018, %1016 : vector<8x16x128xf32>
    %1020 = arith.addf %1013, %1019 : vector<8x16x128xf32>
    %c25_514 = arith.constant 25 : index
    %c0_515 = arith.constant 0 : index
    %c0_516 = arith.constant 0 : index
    %1021 = vector.load %arg8[%c25_514, %c0_515, %c0_516] : memref<49x1x128xf32, #tpu.memory_space<vmem>>, vector<1x1x128xf32>
    %1022 = vector.shape_cast %1021 : vector<1x1x128xf32> to vector<1x128xf32>
    %1023 = vector.extract_strided_slice %992 {offsets = [0, 4, 0], sizes = [8, 16, 128], strides = [1, 1, 1]} : vector<8x22x128xf32> to vector<8x16x128xf32>
    %1024 = vector.shape_cast %1022 : vector<1x128xf32> to vector<1x1x128xf32>
    %1025 = vector.broadcast %1024 : vector<1x1x128xf32> to vector<8x16x128xf32>
    %1026 = arith.mulf %1025, %1023 : vector<8x16x128xf32>
    %1027 = arith.addf %1020, %1026 : vector<8x16x128xf32>
    %c26_517 = arith.constant 26 : index
    %c0_518 = arith.constant 0 : index
    %c0_519 = arith.constant 0 : index
    %1028 = vector.load %arg8[%c26_517, %c0_518, %c0_519] : memref<49x1x128xf32, #tpu.memory_space<vmem>>, vector<1x1x128xf32>
    %1029 = vector.shape_cast %1028 : vector<1x1x128xf32> to vector<1x128xf32>
    %1030 = vector.extract_strided_slice %992 {offsets = [0, 5, 0], sizes = [8, 16, 128], strides = [1, 1, 1]} : vector<8x22x128xf32> to vector<8x16x128xf32>
    %1031 = vector.shape_cast %1029 : vector<1x128xf32> to vector<1x1x128xf32>
    %1032 = vector.broadcast %1031 : vector<1x1x128xf32> to vector<8x16x128xf32>
    %1033 = arith.mulf %1032, %1030 : vector<8x16x128xf32>
    %1034 = arith.addf %1027, %1033 : vector<8x16x128xf32>
    %c27_520 = arith.constant 27 : index
    %c0_521 = arith.constant 0 : index
    %c0_522 = arith.constant 0 : index
    %1035 = vector.load %arg8[%c27_520, %c0_521, %c0_522] : memref<49x1x128xf32, #tpu.memory_space<vmem>>, vector<1x1x128xf32>
    %1036 = vector.shape_cast %1035 : vector<1x1x128xf32> to vector<1x128xf32>
    %1037 = vector.extract_strided_slice %992 {offsets = [0, 6, 0], sizes = [8, 16, 128], strides = [1, 1, 1]} : vector<8x22x128xf32> to vector<8x16x128xf32>
    %1038 = vector.shape_cast %1036 : vector<1x128xf32> to vector<1x1x128xf32>
    %1039 = vector.broadcast %1038 : vector<1x1x128xf32> to vector<8x16x128xf32>
    %1040 = arith.mulf %1039, %1037 : vector<8x16x128xf32>
    %1041 = arith.addf %1034, %1040 : vector<8x16x128xf32>
    %c4_523 = arith.constant 4 : index
    %c0_524 = arith.constant 0 : index
    %c0_525 = arith.constant 0 : index
    %1042 = vector.load %arg14[%c4_523, %c0_524, %c0_525] : memref<22x22x128xf32, #tpu.memory_space<vmem>>, vector<8x22x128xf32>
    %c28_526 = arith.constant 28 : index
    %c0_527 = arith.constant 0 : index
    %c0_528 = arith.constant 0 : index
    %1043 = vector.load %arg8[%c28_526, %c0_527, %c0_528] : memref<49x1x128xf32, #tpu.memory_space<vmem>>, vector<1x1x128xf32>
    %1044 = vector.shape_cast %1043 : vector<1x1x128xf32> to vector<1x128xf32>
    %1045 = vector.extract_strided_slice %1042 {offsets = [0, 0, 0], sizes = [8, 16, 128], strides = [1, 1, 1]} : vector<8x22x128xf32> to vector<8x16x128xf32>
    %1046 = vector.shape_cast %1044 : vector<1x128xf32> to vector<1x1x128xf32>
    %1047 = vector.broadcast %1046 : vector<1x1x128xf32> to vector<8x16x128xf32>
    %1048 = arith.mulf %1047, %1045 : vector<8x16x128xf32>
    %1049 = arith.addf %1041, %1048 : vector<8x16x128xf32>
    %c29_529 = arith.constant 29 : index
    %c0_530 = arith.constant 0 : index
    %c0_531 = arith.constant 0 : index
    %1050 = vector.load %arg8[%c29_529, %c0_530, %c0_531] : memref<49x1x128xf32, #tpu.memory_space<vmem>>, vector<1x1x128xf32>
    %1051 = vector.shape_cast %1050 : vector<1x1x128xf32> to vector<1x128xf32>
    %1052 = vector.extract_strided_slice %1042 {offsets = [0, 1, 0], sizes = [8, 16, 128], strides = [1, 1, 1]} : vector<8x22x128xf32> to vector<8x16x128xf32>
    %1053 = vector.shape_cast %1051 : vector<1x128xf32> to vector<1x1x128xf32>
    %1054 = vector.broadcast %1053 : vector<1x1x128xf32> to vector<8x16x128xf32>
    %1055 = arith.mulf %1054, %1052 : vector<8x16x128xf32>
    %1056 = arith.addf %1049, %1055 : vector<8x16x128xf32>
    %c30_532 = arith.constant 30 : index
    %c0_533 = arith.constant 0 : index
    %c0_534 = arith.constant 0 : index
    %1057 = vector.load %arg8[%c30_532, %c0_533, %c0_534] : memref<49x1x128xf32, #tpu.memory_space<vmem>>, vector<1x1x128xf32>
    %1058 = vector.shape_cast %1057 : vector<1x1x128xf32> to vector<1x128xf32>
    %1059 = vector.extract_strided_slice %1042 {offsets = [0, 2, 0], sizes = [8, 16, 128], strides = [1, 1, 1]} : vector<8x22x128xf32> to vector<8x16x128xf32>
    %1060 = vector.shape_cast %1058 : vector<1x128xf32> to vector<1x1x128xf32>
    %1061 = vector.broadcast %1060 : vector<1x1x128xf32> to vector<8x16x128xf32>
    %1062 = arith.mulf %1061, %1059 : vector<8x16x128xf32>
    %1063 = arith.addf %1056, %1062 : vector<8x16x128xf32>
    %c31_535 = arith.constant 31 : index
    %c0_536 = arith.constant 0 : index
    %c0_537 = arith.constant 0 : index
    %1064 = vector.load %arg8[%c31_535, %c0_536, %c0_537] : memref<49x1x128xf32, #tpu.memory_space<vmem>>, vector<1x1x128xf32>
    %1065 = vector.shape_cast %1064 : vector<1x1x128xf32> to vector<1x128xf32>
    %1066 = vector.extract_strided_slice %1042 {offsets = [0, 3, 0], sizes = [8, 16, 128], strides = [1, 1, 1]} : vector<8x22x128xf32> to vector<8x16x128xf32>
    %1067 = vector.shape_cast %1065 : vector<1x128xf32> to vector<1x1x128xf32>
    %1068 = vector.broadcast %1067 : vector<1x1x128xf32> to vector<8x16x128xf32>
    %1069 = arith.mulf %1068, %1066 : vector<8x16x128xf32>
    %1070 = arith.addf %1063, %1069 : vector<8x16x128xf32>
    %c32_538 = arith.constant 32 : index
    %c0_539 = arith.constant 0 : index
    %c0_540 = arith.constant 0 : index
    %1071 = vector.load %arg8[%c32_538, %c0_539, %c0_540] : memref<49x1x128xf32, #tpu.memory_space<vmem>>, vector<1x1x128xf32>
    %1072 = vector.shape_cast %1071 : vector<1x1x128xf32> to vector<1x128xf32>
    %1073 = vector.extract_strided_slice %1042 {offsets = [0, 4, 0], sizes = [8, 16, 128], strides = [1, 1, 1]} : vector<8x22x128xf32> to vector<8x16x128xf32>
    %1074 = vector.shape_cast %1072 : vector<1x128xf32> to vector<1x1x128xf32>
    %1075 = vector.broadcast %1074 : vector<1x1x128xf32> to vector<8x16x128xf32>
    %1076 = arith.mulf %1075, %1073 : vector<8x16x128xf32>
    %1077 = arith.addf %1070, %1076 : vector<8x16x128xf32>
    %c33_541 = arith.constant 33 : index
    %c0_542 = arith.constant 0 : index
    %c0_543 = arith.constant 0 : index
    %1078 = vector.load %arg8[%c33_541, %c0_542, %c0_543] : memref<49x1x128xf32, #tpu.memory_space<vmem>>, vector<1x1x128xf32>
    %1079 = vector.shape_cast %1078 : vector<1x1x128xf32> to vector<1x128xf32>
    %1080 = vector.extract_strided_slice %1042 {offsets = [0, 5, 0], sizes = [8, 16, 128], strides = [1, 1, 1]} : vector<8x22x128xf32> to vector<8x16x128xf32>
    %1081 = vector.shape_cast %1079 : vector<1x128xf32> to vector<1x1x128xf32>
    %1082 = vector.broadcast %1081 : vector<1x1x128xf32> to vector<8x16x128xf32>
    %1083 = arith.mulf %1082, %1080 : vector<8x16x128xf32>
    %1084 = arith.addf %1077, %1083 : vector<8x16x128xf32>
    %c34_544 = arith.constant 34 : index
    %c0_545 = arith.constant 0 : index
    %c0_546 = arith.constant 0 : index
    %1085 = vector.load %arg8[%c34_544, %c0_545, %c0_546] : memref<49x1x128xf32, #tpu.memory_space<vmem>>, vector<1x1x128xf32>
    %1086 = vector.shape_cast %1085 : vector<1x1x128xf32> to vector<1x128xf32>
    %1087 = vector.extract_strided_slice %1042 {offsets = [0, 6, 0], sizes = [8, 16, 128], strides = [1, 1, 1]} : vector<8x22x128xf32> to vector<8x16x128xf32>
    %1088 = vector.shape_cast %1086 : vector<1x128xf32> to vector<1x1x128xf32>
    %1089 = vector.broadcast %1088 : vector<1x1x128xf32> to vector<8x16x128xf32>
    %1090 = arith.mulf %1089, %1087 : vector<8x16x128xf32>
    %1091 = arith.addf %1084, %1090 : vector<8x16x128xf32>
    %c5_547 = arith.constant 5 : index
    %c0_548 = arith.constant 0 : index
    %c0_549 = arith.constant 0 : index
    %1092 = vector.load %arg14[%c5_547, %c0_548, %c0_549] : memref<22x22x128xf32, #tpu.memory_space<vmem>>, vector<8x22x128xf32>
    %c35_550 = arith.constant 35 : index
    %c0_551 = arith.constant 0 : index
    %c0_552 = arith.constant 0 : index
    %1093 = vector.load %arg8[%c35_550, %c0_551, %c0_552] : memref<49x1x128xf32, #tpu.memory_space<vmem>>, vector<1x1x128xf32>
    %1094 = vector.shape_cast %1093 : vector<1x1x128xf32> to vector<1x128xf32>
    %1095 = vector.extract_strided_slice %1092 {offsets = [0, 0, 0], sizes = [8, 16, 128], strides = [1, 1, 1]} : vector<8x22x128xf32> to vector<8x16x128xf32>
    %1096 = vector.shape_cast %1094 : vector<1x128xf32> to vector<1x1x128xf32>
    %1097 = vector.broadcast %1096 : vector<1x1x128xf32> to vector<8x16x128xf32>
    %1098 = arith.mulf %1097, %1095 : vector<8x16x128xf32>
    %1099 = arith.addf %1091, %1098 : vector<8x16x128xf32>
    %c36_553 = arith.constant 36 : index
    %c0_554 = arith.constant 0 : index
    %c0_555 = arith.constant 0 : index
    %1100 = vector.load %arg8[%c36_553, %c0_554, %c0_555] : memref<49x1x128xf32, #tpu.memory_space<vmem>>, vector<1x1x128xf32>
    %1101 = vector.shape_cast %1100 : vector<1x1x128xf32> to vector<1x128xf32>
    %1102 = vector.extract_strided_slice %1092 {offsets = [0, 1, 0], sizes = [8, 16, 128], strides = [1, 1, 1]} : vector<8x22x128xf32> to vector<8x16x128xf32>
    %1103 = vector.shape_cast %1101 : vector<1x128xf32> to vector<1x1x128xf32>
    %1104 = vector.broadcast %1103 : vector<1x1x128xf32> to vector<8x16x128xf32>
    %1105 = arith.mulf %1104, %1102 : vector<8x16x128xf32>
    %1106 = arith.addf %1099, %1105 : vector<8x16x128xf32>
    %c37_556 = arith.constant 37 : index
    %c0_557 = arith.constant 0 : index
    %c0_558 = arith.constant 0 : index
    %1107 = vector.load %arg8[%c37_556, %c0_557, %c0_558] : memref<49x1x128xf32, #tpu.memory_space<vmem>>, vector<1x1x128xf32>
    %1108 = vector.shape_cast %1107 : vector<1x1x128xf32> to vector<1x128xf32>
    %1109 = vector.extract_strided_slice %1092 {offsets = [0, 2, 0], sizes = [8, 16, 128], strides = [1, 1, 1]} : vector<8x22x128xf32> to vector<8x16x128xf32>
    %1110 = vector.shape_cast %1108 : vector<1x128xf32> to vector<1x1x128xf32>
    %1111 = vector.broadcast %1110 : vector<1x1x128xf32> to vector<8x16x128xf32>
    %1112 = arith.mulf %1111, %1109 : vector<8x16x128xf32>
    %1113 = arith.addf %1106, %1112 : vector<8x16x128xf32>
    %c38_559 = arith.constant 38 : index
    %c0_560 = arith.constant 0 : index
    %c0_561 = arith.constant 0 : index
    %1114 = vector.load %arg8[%c38_559, %c0_560, %c0_561] : memref<49x1x128xf32, #tpu.memory_space<vmem>>, vector<1x1x128xf32>
    %1115 = vector.shape_cast %1114 : vector<1x1x128xf32> to vector<1x128xf32>
    %1116 = vector.extract_strided_slice %1092 {offsets = [0, 3, 0], sizes = [8, 16, 128], strides = [1, 1, 1]} : vector<8x22x128xf32> to vector<8x16x128xf32>
    %1117 = vector.shape_cast %1115 : vector<1x128xf32> to vector<1x1x128xf32>
    %1118 = vector.broadcast %1117 : vector<1x1x128xf32> to vector<8x16x128xf32>
    %1119 = arith.mulf %1118, %1116 : vector<8x16x128xf32>
    %1120 = arith.addf %1113, %1119 : vector<8x16x128xf32>
    %c39_562 = arith.constant 39 : index
    %c0_563 = arith.constant 0 : index
    %c0_564 = arith.constant 0 : index
    %1121 = vector.load %arg8[%c39_562, %c0_563, %c0_564] : memref<49x1x128xf32, #tpu.memory_space<vmem>>, vector<1x1x128xf32>
    %1122 = vector.shape_cast %1121 : vector<1x1x128xf32> to vector<1x128xf32>
    %1123 = vector.extract_strided_slice %1092 {offsets = [0, 4, 0], sizes = [8, 16, 128], strides = [1, 1, 1]} : vector<8x22x128xf32> to vector<8x16x128xf32>
    %1124 = vector.shape_cast %1122 : vector<1x128xf32> to vector<1x1x128xf32>
    %1125 = vector.broadcast %1124 : vector<1x1x128xf32> to vector<8x16x128xf32>
    %1126 = arith.mulf %1125, %1123 : vector<8x16x128xf32>
    %1127 = arith.addf %1120, %1126 : vector<8x16x128xf32>
    %c40_565 = arith.constant 40 : index
    %c0_566 = arith.constant 0 : index
    %c0_567 = arith.constant 0 : index
    %1128 = vector.load %arg8[%c40_565, %c0_566, %c0_567] : memref<49x1x128xf32, #tpu.memory_space<vmem>>, vector<1x1x128xf32>
    %1129 = vector.shape_cast %1128 : vector<1x1x128xf32> to vector<1x128xf32>
    %1130 = vector.extract_strided_slice %1092 {offsets = [0, 5, 0], sizes = [8, 16, 128], strides = [1, 1, 1]} : vector<8x22x128xf32> to vector<8x16x128xf32>
    %1131 = vector.shape_cast %1129 : vector<1x128xf32> to vector<1x1x128xf32>
    %1132 = vector.broadcast %1131 : vector<1x1x128xf32> to vector<8x16x128xf32>
    %1133 = arith.mulf %1132, %1130 : vector<8x16x128xf32>
    %1134 = arith.addf %1127, %1133 : vector<8x16x128xf32>
    %c41_568 = arith.constant 41 : index
    %c0_569 = arith.constant 0 : index
    %c0_570 = arith.constant 0 : index
    %1135 = vector.load %arg8[%c41_568, %c0_569, %c0_570] : memref<49x1x128xf32, #tpu.memory_space<vmem>>, vector<1x1x128xf32>
    %1136 = vector.shape_cast %1135 : vector<1x1x128xf32> to vector<1x128xf32>
    %1137 = vector.extract_strided_slice %1092 {offsets = [0, 6, 0], sizes = [8, 16, 128], strides = [1, 1, 1]} : vector<8x22x128xf32> to vector<8x16x128xf32>
    %1138 = vector.shape_cast %1136 : vector<1x128xf32> to vector<1x1x128xf32>
    %1139 = vector.broadcast %1138 : vector<1x1x128xf32> to vector<8x16x128xf32>
    %1140 = arith.mulf %1139, %1137 : vector<8x16x128xf32>
    %1141 = arith.addf %1134, %1140 : vector<8x16x128xf32>
    %c6_571 = arith.constant 6 : index
    %c0_572 = arith.constant 0 : index
    %c0_573 = arith.constant 0 : index
    %1142 = vector.load %arg14[%c6_571, %c0_572, %c0_573] : memref<22x22x128xf32, #tpu.memory_space<vmem>>, vector<8x22x128xf32>
    %c42_574 = arith.constant 42 : index
    %c0_575 = arith.constant 0 : index
    %c0_576 = arith.constant 0 : index
    %1143 = vector.load %arg8[%c42_574, %c0_575, %c0_576] : memref<49x1x128xf32, #tpu.memory_space<vmem>>, vector<1x1x128xf32>
    %1144 = vector.shape_cast %1143 : vector<1x1x128xf32> to vector<1x128xf32>
    %1145 = vector.extract_strided_slice %1142 {offsets = [0, 0, 0], sizes = [8, 16, 128], strides = [1, 1, 1]} : vector<8x22x128xf32> to vector<8x16x128xf32>
    %1146 = vector.shape_cast %1144 : vector<1x128xf32> to vector<1x1x128xf32>
    %1147 = vector.broadcast %1146 : vector<1x1x128xf32> to vector<8x16x128xf32>
    %1148 = arith.mulf %1147, %1145 : vector<8x16x128xf32>
    %1149 = arith.addf %1141, %1148 : vector<8x16x128xf32>
    %c43_577 = arith.constant 43 : index
    %c0_578 = arith.constant 0 : index
    %c0_579 = arith.constant 0 : index
    %1150 = vector.load %arg8[%c43_577, %c0_578, %c0_579] : memref<49x1x128xf32, #tpu.memory_space<vmem>>, vector<1x1x128xf32>
    %1151 = vector.shape_cast %1150 : vector<1x1x128xf32> to vector<1x128xf32>
    %1152 = vector.extract_strided_slice %1142 {offsets = [0, 1, 0], sizes = [8, 16, 128], strides = [1, 1, 1]} : vector<8x22x128xf32> to vector<8x16x128xf32>
    %1153 = vector.shape_cast %1151 : vector<1x128xf32> to vector<1x1x128xf32>
    %1154 = vector.broadcast %1153 : vector<1x1x128xf32> to vector<8x16x128xf32>
    %1155 = arith.mulf %1154, %1152 : vector<8x16x128xf32>
    %1156 = arith.addf %1149, %1155 : vector<8x16x128xf32>
    %c44_580 = arith.constant 44 : index
    %c0_581 = arith.constant 0 : index
    %c0_582 = arith.constant 0 : index
    %1157 = vector.load %arg8[%c44_580, %c0_581, %c0_582] : memref<49x1x128xf32, #tpu.memory_space<vmem>>, vector<1x1x128xf32>
    %1158 = vector.shape_cast %1157 : vector<1x1x128xf32> to vector<1x128xf32>
    %1159 = vector.extract_strided_slice %1142 {offsets = [0, 2, 0], sizes = [8, 16, 128], strides = [1, 1, 1]} : vector<8x22x128xf32> to vector<8x16x128xf32>
    %1160 = vector.shape_cast %1158 : vector<1x128xf32> to vector<1x1x128xf32>
    %1161 = vector.broadcast %1160 : vector<1x1x128xf32> to vector<8x16x128xf32>
    %1162 = arith.mulf %1161, %1159 : vector<8x16x128xf32>
    %1163 = arith.addf %1156, %1162 : vector<8x16x128xf32>
    %c45_583 = arith.constant 45 : index
    %c0_584 = arith.constant 0 : index
    %c0_585 = arith.constant 0 : index
    %1164 = vector.load %arg8[%c45_583, %c0_584, %c0_585] : memref<49x1x128xf32, #tpu.memory_space<vmem>>, vector<1x1x128xf32>
    %1165 = vector.shape_cast %1164 : vector<1x1x128xf32> to vector<1x128xf32>
    %1166 = vector.extract_strided_slice %1142 {offsets = [0, 3, 0], sizes = [8, 16, 128], strides = [1, 1, 1]} : vector<8x22x128xf32> to vector<8x16x128xf32>
    %1167 = vector.shape_cast %1165 : vector<1x128xf32> to vector<1x1x128xf32>
    %1168 = vector.broadcast %1167 : vector<1x1x128xf32> to vector<8x16x128xf32>
    %1169 = arith.mulf %1168, %1166 : vector<8x16x128xf32>
    %1170 = arith.addf %1163, %1169 : vector<8x16x128xf32>
    %c46_586 = arith.constant 46 : index
    %c0_587 = arith.constant 0 : index
    %c0_588 = arith.constant 0 : index
    %1171 = vector.load %arg8[%c46_586, %c0_587, %c0_588] : memref<49x1x128xf32, #tpu.memory_space<vmem>>, vector<1x1x128xf32>
    %1172 = vector.shape_cast %1171 : vector<1x1x128xf32> to vector<1x128xf32>
    %1173 = vector.extract_strided_slice %1142 {offsets = [0, 4, 0], sizes = [8, 16, 128], strides = [1, 1, 1]} : vector<8x22x128xf32> to vector<8x16x128xf32>
    %1174 = vector.shape_cast %1172 : vector<1x128xf32> to vector<1x1x128xf32>
    %1175 = vector.broadcast %1174 : vector<1x1x128xf32> to vector<8x16x128xf32>
    %1176 = arith.mulf %1175, %1173 : vector<8x16x128xf32>
    %1177 = arith.addf %1170, %1176 : vector<8x16x128xf32>
    %c47_589 = arith.constant 47 : index
    %c0_590 = arith.constant 0 : index
    %c0_591 = arith.constant 0 : index
    %1178 = vector.load %arg8[%c47_589, %c0_590, %c0_591] : memref<49x1x128xf32, #tpu.memory_space<vmem>>, vector<1x1x128xf32>
    %1179 = vector.shape_cast %1178 : vector<1x1x128xf32> to vector<1x128xf32>
    %1180 = vector.extract_strided_slice %1142 {offsets = [0, 5, 0], sizes = [8, 16, 128], strides = [1, 1, 1]} : vector<8x22x128xf32> to vector<8x16x128xf32>
    %1181 = vector.shape_cast %1179 : vector<1x128xf32> to vector<1x1x128xf32>
    %1182 = vector.broadcast %1181 : vector<1x1x128xf32> to vector<8x16x128xf32>
    %1183 = arith.mulf %1182, %1180 : vector<8x16x128xf32>
    %1184 = arith.addf %1177, %1183 : vector<8x16x128xf32>
    %c48_592 = arith.constant 48 : index
    %c0_593 = arith.constant 0 : index
    %c0_594 = arith.constant 0 : index
    %1185 = vector.load %arg8[%c48_592, %c0_593, %c0_594] : memref<49x1x128xf32, #tpu.memory_space<vmem>>, vector<1x1x128xf32>
    %1186 = vector.shape_cast %1185 : vector<1x1x128xf32> to vector<1x128xf32>
    %1187 = vector.extract_strided_slice %1142 {offsets = [0, 6, 0], sizes = [8, 16, 128], strides = [1, 1, 1]} : vector<8x22x128xf32> to vector<8x16x128xf32>
    %1188 = vector.shape_cast %1186 : vector<1x128xf32> to vector<1x1x128xf32>
    %1189 = vector.broadcast %1188 : vector<1x1x128xf32> to vector<8x16x128xf32>
    %1190 = arith.mulf %1189, %1187 : vector<8x16x128xf32>
    %1191 = arith.addf %1184, %1190 : vector<8x16x128xf32>
    %c0_595 = arith.constant 0 : index
    %c0_596 = arith.constant 0 : index
    %c0_597 = arith.constant 0 : index
    %1192 = vector.load %arg15[%c0_595, %c0_596, %c0_597] : memref<16x16x128xf32, #tpu.memory_space<vmem>>, vector<8x16x128xf32>
    %1193 = arith.addf %1192, %1191 : vector<8x16x128xf32>
    %c0_598 = arith.constant 0 : index
    %c0_599 = arith.constant 0 : index
    %1194 = vector.load %arg9[%c0_598, %c0_599] : memref<1x128xf32, #tpu.memory_space<vmem>>, vector<1x128xf32>
    %1195 = vector.shape_cast %1194 : vector<1x128xf32> to vector<1x1x128xf32>
    %1196 = vector.broadcast %1195 : vector<1x1x128xf32> to vector<8x16x128xf32>
    %1197 = arith.addf %1193, %1196 : vector<8x16x128xf32>
    %cst_600 = arith.constant 5.000000e-01 : f32
    %1198 = vector.broadcast %cst_600 : f32 to vector<8x16x128xf32>
    %1199 = arith.mulf %1198, %1197 : vector<8x16x128xf32>
    %1200 = math.tanh %1199 : vector<8x16x128xf32>
    %cst_601 = arith.constant 1.000000e+00 : f32
    %1201 = vector.broadcast %cst_601 : f32 to vector<8x16x128xf32>
    %1202 = arith.addf %1200, %1201 : vector<8x16x128xf32>
    %cst_602 = arith.constant 5.000000e-01 : f32
    %1203 = vector.broadcast %cst_602 : f32 to vector<8x16x128xf32>
    %1204 = arith.mulf %1203, %1202 : vector<8x16x128xf32>
    %cst_603 = arith.constant 5.000000e-01 : f32
    %1205 = vector.broadcast %cst_603 : f32 to vector<8x16x128xf32>
    %1206 = arith.mulf %1205, %1204 : vector<8x16x128xf32>
    %1207 = math.tanh %1206 : vector<8x16x128xf32>
    %cst_604 = arith.constant 1.000000e+00 : f32
    %1208 = vector.broadcast %cst_604 : f32 to vector<8x16x128xf32>
    %1209 = arith.addf %1207, %1208 : vector<8x16x128xf32>
    %cst_605 = arith.constant 5.000000e-01 : f32
    %1210 = vector.broadcast %cst_605 : f32 to vector<8x16x128xf32>
    %1211 = arith.mulf %1210, %1209 : vector<8x16x128xf32>
    %c0_606 = arith.constant 0 : index
    %c0_607 = arith.constant 0 : index
    %c0_608 = arith.constant 0 : index
    %1212 = vector.load %arg15[%c0_606, %c0_607, %c0_608] : memref<16x16x128xf32, #tpu.memory_space<vmem>>, vector<8x16x128xf32>
    tpu.vector_store %arg15[%c0_606, %c0_607, %c0_608], %1211 {strides = array<i32>} : memref<16x16x128xf32, #tpu.memory_space<vmem>>, vector<8x16x128xf32>,
    %cst_609 = arith.constant 0.000000e+00 : f32
    %1213 = vector.broadcast %cst_609 : f32 to vector<8x16x128xf32>
    %c8_610 = arith.constant 8 : index
    %c0_611 = arith.constant 0 : index
    %c0_612 = arith.constant 0 : index
    %1214 = vector.load %arg14[%c8_610, %c0_611, %c0_612] : memref<22x22x128xf32, #tpu.memory_space<vmem>>, vector<8x22x128xf32>
    %c0_613 = arith.constant 0 : index
    %c0_614 = arith.constant 0 : index
    %c0_615 = arith.constant 0 : index
    %1215 = vector.load %arg8[%c0_613, %c0_614, %c0_615] : memref<49x1x128xf32, #tpu.memory_space<vmem>>, vector<1x1x128xf32>
    %1216 = vector.shape_cast %1215 : vector<1x1x128xf32> to vector<1x128xf32>
    %1217 = vector.extract_strided_slice %1214 {offsets = [0, 0, 0], sizes = [8, 16, 128], strides = [1, 1, 1]} : vector<8x22x128xf32> to vector<8x16x128xf32>
    %1218 = vector.shape_cast %1216 : vector<1x128xf32> to vector<1x1x128xf32>
    %1219 = vector.broadcast %1218 : vector<1x1x128xf32> to vector<8x16x128xf32>
    %1220 = arith.mulf %1219, %1217 : vector<8x16x128xf32>
    %1221 = arith.addf %1213, %1220 : vector<8x16x128xf32>
    %c1_616 = arith.constant 1 : index
    %c0_617 = arith.constant 0 : index
    %c0_618 = arith.constant 0 : index
    %1222 = vector.load %arg8[%c1_616, %c0_617, %c0_618] : memref<49x1x128xf32, #tpu.memory_space<vmem>>, vector<1x1x128xf32>
    %1223 = vector.shape_cast %1222 : vector<1x1x128xf32> to vector<1x128xf32>
    %1224 = vector.extract_strided_slice %1214 {offsets = [0, 1, 0], sizes = [8, 16, 128], strides = [1, 1, 1]} : vector<8x22x128xf32> to vector<8x16x128xf32>
    %1225 = vector.shape_cast %1223 : vector<1x128xf32> to vector<1x1x128xf32>
    %1226 = vector.broadcast %1225 : vector<1x1x128xf32> to vector<8x16x128xf32>
    %1227 = arith.mulf %1226, %1224 : vector<8x16x128xf32>
    %1228 = arith.addf %1221, %1227 : vector<8x16x128xf32>
    %c2_619 = arith.constant 2 : index
    %c0_620 = arith.constant 0 : index
    %c0_621 = arith.constant 0 : index
    %1229 = vector.load %arg8[%c2_619, %c0_620, %c0_621] : memref<49x1x128xf32, #tpu.memory_space<vmem>>, vector<1x1x128xf32>
    %1230 = vector.shape_cast %1229 : vector<1x1x128xf32> to vector<1x128xf32>
    %1231 = vector.extract_strided_slice %1214 {offsets = [0, 2, 0], sizes = [8, 16, 128], strides = [1, 1, 1]} : vector<8x22x128xf32> to vector<8x16x128xf32>
    %1232 = vector.shape_cast %1230 : vector<1x128xf32> to vector<1x1x128xf32>
    %1233 = vector.broadcast %1232 : vector<1x1x128xf32> to vector<8x16x128xf32>
    %1234 = arith.mulf %1233, %1231 : vector<8x16x128xf32>
    %1235 = arith.addf %1228, %1234 : vector<8x16x128xf32>
    %c3_622 = arith.constant 3 : index
    %c0_623 = arith.constant 0 : index
    %c0_624 = arith.constant 0 : index
    %1236 = vector.load %arg8[%c3_622, %c0_623, %c0_624] : memref<49x1x128xf32, #tpu.memory_space<vmem>>, vector<1x1x128xf32>
    %1237 = vector.shape_cast %1236 : vector<1x1x128xf32> to vector<1x128xf32>
    %1238 = vector.extract_strided_slice %1214 {offsets = [0, 3, 0], sizes = [8, 16, 128], strides = [1, 1, 1]} : vector<8x22x128xf32> to vector<8x16x128xf32>
    %1239 = vector.shape_cast %1237 : vector<1x128xf32> to vector<1x1x128xf32>
    %1240 = vector.broadcast %1239 : vector<1x1x128xf32> to vector<8x16x128xf32>
    %1241 = arith.mulf %1240, %1238 : vector<8x16x128xf32>
    %1242 = arith.addf %1235, %1241 : vector<8x16x128xf32>
    %c4_625 = arith.constant 4 : index
    %c0_626 = arith.constant 0 : index
    %c0_627 = arith.constant 0 : index
    %1243 = vector.load %arg8[%c4_625, %c0_626, %c0_627] : memref<49x1x128xf32, #tpu.memory_space<vmem>>, vector<1x1x128xf32>
    %1244 = vector.shape_cast %1243 : vector<1x1x128xf32> to vector<1x128xf32>
    %1245 = vector.extract_strided_slice %1214 {offsets = [0, 4, 0], sizes = [8, 16, 128], strides = [1, 1, 1]} : vector<8x22x128xf32> to vector<8x16x128xf32>
    %1246 = vector.shape_cast %1244 : vector<1x128xf32> to vector<1x1x128xf32>
    %1247 = vector.broadcast %1246 : vector<1x1x128xf32> to vector<8x16x128xf32>
    %1248 = arith.mulf %1247, %1245 : vector<8x16x128xf32>
    %1249 = arith.addf %1242, %1248 : vector<8x16x128xf32>
    %c5_628 = arith.constant 5 : index
    %c0_629 = arith.constant 0 : index
    %c0_630 = arith.constant 0 : index
    %1250 = vector.load %arg8[%c5_628, %c0_629, %c0_630] : memref<49x1x128xf32, #tpu.memory_space<vmem>>, vector<1x1x128xf32>
    %1251 = vector.shape_cast %1250 : vector<1x1x128xf32> to vector<1x128xf32>
    %1252 = vector.extract_strided_slice %1214 {offsets = [0, 5, 0], sizes = [8, 16, 128], strides = [1, 1, 1]} : vector<8x22x128xf32> to vector<8x16x128xf32>
    %1253 = vector.shape_cast %1251 : vector<1x128xf32> to vector<1x1x128xf32>
    %1254 = vector.broadcast %1253 : vector<1x1x128xf32> to vector<8x16x128xf32>
    %1255 = arith.mulf %1254, %1252 : vector<8x16x128xf32>
    %1256 = arith.addf %1249, %1255 : vector<8x16x128xf32>
    %c6_631 = arith.constant 6 : index
    %c0_632 = arith.constant 0 : index
    %c0_633 = arith.constant 0 : index
    %1257 = vector.load %arg8[%c6_631, %c0_632, %c0_633] : memref<49x1x128xf32, #tpu.memory_space<vmem>>, vector<1x1x128xf32>
    %1258 = vector.shape_cast %1257 : vector<1x1x128xf32> to vector<1x128xf32>
    %1259 = vector.extract_strided_slice %1214 {offsets = [0, 6, 0], sizes = [8, 16, 128], strides = [1, 1, 1]} : vector<8x22x128xf32> to vector<8x16x128xf32>
    %1260 = vector.shape_cast %1258 : vector<1x128xf32> to vector<1x1x128xf32>
    %1261 = vector.broadcast %1260 : vector<1x1x128xf32> to vector<8x16x128xf32>
    %1262 = arith.mulf %1261, %1259 : vector<8x16x128xf32>
    %1263 = arith.addf %1256, %1262 : vector<8x16x128xf32>
    %c9_634 = arith.constant 9 : index
    %c0_635 = arith.constant 0 : index
    %c0_636 = arith.constant 0 : index
    %1264 = vector.load %arg14[%c9_634, %c0_635, %c0_636] : memref<22x22x128xf32, #tpu.memory_space<vmem>>, vector<8x22x128xf32>
    %c7_637 = arith.constant 7 : index
    %c0_638 = arith.constant 0 : index
    %c0_639 = arith.constant 0 : index
    %1265 = vector.load %arg8[%c7_637, %c0_638, %c0_639] : memref<49x1x128xf32, #tpu.memory_space<vmem>>, vector<1x1x128xf32>
    %1266 = vector.shape_cast %1265 : vector<1x1x128xf32> to vector<1x128xf32>
    %1267 = vector.extract_strided_slice %1264 {offsets = [0, 0, 0], sizes = [8, 16, 128], strides = [1, 1, 1]} : vector<8x22x128xf32> to vector<8x16x128xf32>
    %1268 = vector.shape_cast %1266 : vector<1x128xf32> to vector<1x1x128xf32>
    %1269 = vector.broadcast %1268 : vector<1x1x128xf32> to vector<8x16x128xf32>
    %1270 = arith.mulf %1269, %1267 : vector<8x16x128xf32>
    %1271 = arith.addf %1263, %1270 : vector<8x16x128xf32>
    %c8_640 = arith.constant 8 : index
    %c0_641 = arith.constant 0 : index
    %c0_642 = arith.constant 0 : index
    %1272 = vector.load %arg8[%c8_640, %c0_641, %c0_642] : memref<49x1x128xf32, #tpu.memory_space<vmem>>, vector<1x1x128xf32>
    %1273 = vector.shape_cast %1272 : vector<1x1x128xf32> to vector<1x128xf32>
    %1274 = vector.extract_strided_slice %1264 {offsets = [0, 1, 0], sizes = [8, 16, 128], strides = [1, 1, 1]} : vector<8x22x128xf32> to vector<8x16x128xf32>
    %1275 = vector.shape_cast %1273 : vector<1x128xf32> to vector<1x1x128xf32>
    %1276 = vector.broadcast %1275 : vector<1x1x128xf32> to vector<8x16x128xf32>
    %1277 = arith.mulf %1276, %1274 : vector<8x16x128xf32>
    %1278 = arith.addf %1271, %1277 : vector<8x16x128xf32>
    %c9_643 = arith.constant 9 : index
    %c0_644 = arith.constant 0 : index
    %c0_645 = arith.constant 0 : index
    %1279 = vector.load %arg8[%c9_643, %c0_644, %c0_645] : memref<49x1x128xf32, #tpu.memory_space<vmem>>, vector<1x1x128xf32>
    %1280 = vector.shape_cast %1279 : vector<1x1x128xf32> to vector<1x128xf32>
    %1281 = vector.extract_strided_slice %1264 {offsets = [0, 2, 0], sizes = [8, 16, 128], strides = [1, 1, 1]} : vector<8x22x128xf32> to vector<8x16x128xf32>
    %1282 = vector.shape_cast %1280 : vector<1x128xf32> to vector<1x1x128xf32>
    %1283 = vector.broadcast %1282 : vector<1x1x128xf32> to vector<8x16x128xf32>
    %1284 = arith.mulf %1283, %1281 : vector<8x16x128xf32>
    %1285 = arith.addf %1278, %1284 : vector<8x16x128xf32>
    %c10_646 = arith.constant 10 : index
    %c0_647 = arith.constant 0 : index
    %c0_648 = arith.constant 0 : index
    %1286 = vector.load %arg8[%c10_646, %c0_647, %c0_648] : memref<49x1x128xf32, #tpu.memory_space<vmem>>, vector<1x1x128xf32>
    %1287 = vector.shape_cast %1286 : vector<1x1x128xf32> to vector<1x128xf32>
    %1288 = vector.extract_strided_slice %1264 {offsets = [0, 3, 0], sizes = [8, 16, 128], strides = [1, 1, 1]} : vector<8x22x128xf32> to vector<8x16x128xf32>
    %1289 = vector.shape_cast %1287 : vector<1x128xf32> to vector<1x1x128xf32>
    %1290 = vector.broadcast %1289 : vector<1x1x128xf32> to vector<8x16x128xf32>
    %1291 = arith.mulf %1290, %1288 : vector<8x16x128xf32>
    %1292 = arith.addf %1285, %1291 : vector<8x16x128xf32>
    %c11_649 = arith.constant 11 : index
    %c0_650 = arith.constant 0 : index
    %c0_651 = arith.constant 0 : index
    %1293 = vector.load %arg8[%c11_649, %c0_650, %c0_651] : memref<49x1x128xf32, #tpu.memory_space<vmem>>, vector<1x1x128xf32>
    %1294 = vector.shape_cast %1293 : vector<1x1x128xf32> to vector<1x128xf32>
    %1295 = vector.extract_strided_slice %1264 {offsets = [0, 4, 0], sizes = [8, 16, 128], strides = [1, 1, 1]} : vector<8x22x128xf32> to vector<8x16x128xf32>
    %1296 = vector.shape_cast %1294 : vector<1x128xf32> to vector<1x1x128xf32>
    %1297 = vector.broadcast %1296 : vector<1x1x128xf32> to vector<8x16x128xf32>
    %1298 = arith.mulf %1297, %1295 : vector<8x16x128xf32>
    %1299 = arith.addf %1292, %1298 : vector<8x16x128xf32>
    %c12_652 = arith.constant 12 : index
    %c0_653 = arith.constant 0 : index
    %c0_654 = arith.constant 0 : index
    %1300 = vector.load %arg8[%c12_652, %c0_653, %c0_654] : memref<49x1x128xf32, #tpu.memory_space<vmem>>, vector<1x1x128xf32>
    %1301 = vector.shape_cast %1300 : vector<1x1x128xf32> to vector<1x128xf32>
    %1302 = vector.extract_strided_slice %1264 {offsets = [0, 5, 0], sizes = [8, 16, 128], strides = [1, 1, 1]} : vector<8x22x128xf32> to vector<8x16x128xf32>
    %1303 = vector.shape_cast %1301 : vector<1x128xf32> to vector<1x1x128xf32>
    %1304 = vector.broadcast %1303 : vector<1x1x128xf32> to vector<8x16x128xf32>
    %1305 = arith.mulf %1304, %1302 : vector<8x16x128xf32>
    %1306 = arith.addf %1299, %1305 : vector<8x16x128xf32>
    %c13_655 = arith.constant 13 : index
    %c0_656 = arith.constant 0 : index
    %c0_657 = arith.constant 0 : index
    %1307 = vector.load %arg8[%c13_655, %c0_656, %c0_657] : memref<49x1x128xf32, #tpu.memory_space<vmem>>, vector<1x1x128xf32>
    %1308 = vector.shape_cast %1307 : vector<1x1x128xf32> to vector<1x128xf32>
    %1309 = vector.extract_strided_slice %1264 {offsets = [0, 6, 0], sizes = [8, 16, 128], strides = [1, 1, 1]} : vector<8x22x128xf32> to vector<8x16x128xf32>
    %1310 = vector.shape_cast %1308 : vector<1x128xf32> to vector<1x1x128xf32>
    %1311 = vector.broadcast %1310 : vector<1x1x128xf32> to vector<8x16x128xf32>
    %1312 = arith.mulf %1311, %1309 : vector<8x16x128xf32>
    %1313 = arith.addf %1306, %1312 : vector<8x16x128xf32>
    %c10_658 = arith.constant 10 : index
    %c0_659 = arith.constant 0 : index
    %c0_660 = arith.constant 0 : index
    %1314 = vector.load %arg14[%c10_658, %c0_659, %c0_660] : memref<22x22x128xf32, #tpu.memory_space<vmem>>, vector<8x22x128xf32>
    %c14_661 = arith.constant 14 : index
    %c0_662 = arith.constant 0 : index
    %c0_663 = arith.constant 0 : index
    %1315 = vector.load %arg8[%c14_661, %c0_662, %c0_663] : memref<49x1x128xf32, #tpu.memory_space<vmem>>, vector<1x1x128xf32>
    %1316 = vector.shape_cast %1315 : vector<1x1x128xf32> to vector<1x128xf32>
    %1317 = vector.extract_strided_slice %1314 {offsets = [0, 0, 0], sizes = [8, 16, 128], strides = [1, 1, 1]} : vector<8x22x128xf32> to vector<8x16x128xf32>
    %1318 = vector.shape_cast %1316 : vector<1x128xf32> to vector<1x1x128xf32>
    %1319 = vector.broadcast %1318 : vector<1x1x128xf32> to vector<8x16x128xf32>
    %1320 = arith.mulf %1319, %1317 : vector<8x16x128xf32>
    %1321 = arith.addf %1313, %1320 : vector<8x16x128xf32>
    %c15_664 = arith.constant 15 : index
    %c0_665 = arith.constant 0 : index
    %c0_666 = arith.constant 0 : index
    %1322 = vector.load %arg8[%c15_664, %c0_665, %c0_666] : memref<49x1x128xf32, #tpu.memory_space<vmem>>, vector<1x1x128xf32>
    %1323 = vector.shape_cast %1322 : vector<1x1x128xf32> to vector<1x128xf32>
    %1324 = vector.extract_strided_slice %1314 {offsets = [0, 1, 0], sizes = [8, 16, 128], strides = [1, 1, 1]} : vector<8x22x128xf32> to vector<8x16x128xf32>
    %1325 = vector.shape_cast %1323 : vector<1x128xf32> to vector<1x1x128xf32>
    %1326 = vector.broadcast %1325 : vector<1x1x128xf32> to vector<8x16x128xf32>
    %1327 = arith.mulf %1326, %1324 : vector<8x16x128xf32>
    %1328 = arith.addf %1321, %1327 : vector<8x16x128xf32>
    %c16_667 = arith.constant 16 : index
    %c0_668 = arith.constant 0 : index
    %c0_669 = arith.constant 0 : index
    %1329 = vector.load %arg8[%c16_667, %c0_668, %c0_669] : memref<49x1x128xf32, #tpu.memory_space<vmem>>, vector<1x1x128xf32>
    %1330 = vector.shape_cast %1329 : vector<1x1x128xf32> to vector<1x128xf32>
    %1331 = vector.extract_strided_slice %1314 {offsets = [0, 2, 0], sizes = [8, 16, 128], strides = [1, 1, 1]} : vector<8x22x128xf32> to vector<8x16x128xf32>
    %1332 = vector.shape_cast %1330 : vector<1x128xf32> to vector<1x1x128xf32>
    %1333 = vector.broadcast %1332 : vector<1x1x128xf32> to vector<8x16x128xf32>
    %1334 = arith.mulf %1333, %1331 : vector<8x16x128xf32>
    %1335 = arith.addf %1328, %1334 : vector<8x16x128xf32>
    %c17_670 = arith.constant 17 : index
    %c0_671 = arith.constant 0 : index
    %c0_672 = arith.constant 0 : index
    %1336 = vector.load %arg8[%c17_670, %c0_671, %c0_672] : memref<49x1x128xf32, #tpu.memory_space<vmem>>, vector<1x1x128xf32>
    %1337 = vector.shape_cast %1336 : vector<1x1x128xf32> to vector<1x128xf32>
    %1338 = vector.extract_strided_slice %1314 {offsets = [0, 3, 0], sizes = [8, 16, 128], strides = [1, 1, 1]} : vector<8x22x128xf32> to vector<8x16x128xf32>
    %1339 = vector.shape_cast %1337 : vector<1x128xf32> to vector<1x1x128xf32>
    %1340 = vector.broadcast %1339 : vector<1x1x128xf32> to vector<8x16x128xf32>
    %1341 = arith.mulf %1340, %1338 : vector<8x16x128xf32>
    %1342 = arith.addf %1335, %1341 : vector<8x16x128xf32>
    %c18_673 = arith.constant 18 : index
    %c0_674 = arith.constant 0 : index
    %c0_675 = arith.constant 0 : index
    %1343 = vector.load %arg8[%c18_673, %c0_674, %c0_675] : memref<49x1x128xf32, #tpu.memory_space<vmem>>, vector<1x1x128xf32>
    %1344 = vector.shape_cast %1343 : vector<1x1x128xf32> to vector<1x128xf32>
    %1345 = vector.extract_strided_slice %1314 {offsets = [0, 4, 0], sizes = [8, 16, 128], strides = [1, 1, 1]} : vector<8x22x128xf32> to vector<8x16x128xf32>
    %1346 = vector.shape_cast %1344 : vector<1x128xf32> to vector<1x1x128xf32>
    %1347 = vector.broadcast %1346 : vector<1x1x128xf32> to vector<8x16x128xf32>
    %1348 = arith.mulf %1347, %1345 : vector<8x16x128xf32>
    %1349 = arith.addf %1342, %1348 : vector<8x16x128xf32>
    %c19_676 = arith.constant 19 : index
    %c0_677 = arith.constant 0 : index
    %c0_678 = arith.constant 0 : index
    %1350 = vector.load %arg8[%c19_676, %c0_677, %c0_678] : memref<49x1x128xf32, #tpu.memory_space<vmem>>, vector<1x1x128xf32>
    %1351 = vector.shape_cast %1350 : vector<1x1x128xf32> to vector<1x128xf32>
    %1352 = vector.extract_strided_slice %1314 {offsets = [0, 5, 0], sizes = [8, 16, 128], strides = [1, 1, 1]} : vector<8x22x128xf32> to vector<8x16x128xf32>
    %1353 = vector.shape_cast %1351 : vector<1x128xf32> to vector<1x1x128xf32>
    %1354 = vector.broadcast %1353 : vector<1x1x128xf32> to vector<8x16x128xf32>
    %1355 = arith.mulf %1354, %1352 : vector<8x16x128xf32>
    %1356 = arith.addf %1349, %1355 : vector<8x16x128xf32>
    %c20_679 = arith.constant 20 : index
    %c0_680 = arith.constant 0 : index
    %c0_681 = arith.constant 0 : index
    %1357 = vector.load %arg8[%c20_679, %c0_680, %c0_681] : memref<49x1x128xf32, #tpu.memory_space<vmem>>, vector<1x1x128xf32>
    %1358 = vector.shape_cast %1357 : vector<1x1x128xf32> to vector<1x128xf32>
    %1359 = vector.extract_strided_slice %1314 {offsets = [0, 6, 0], sizes = [8, 16, 128], strides = [1, 1, 1]} : vector<8x22x128xf32> to vector<8x16x128xf32>
    %1360 = vector.shape_cast %1358 : vector<1x128xf32> to vector<1x1x128xf32>
    %1361 = vector.broadcast %1360 : vector<1x1x128xf32> to vector<8x16x128xf32>
    %1362 = arith.mulf %1361, %1359 : vector<8x16x128xf32>
    %1363 = arith.addf %1356, %1362 : vector<8x16x128xf32>
    %c11_682 = arith.constant 11 : index
    %c0_683 = arith.constant 0 : index
    %c0_684 = arith.constant 0 : index
    %1364 = vector.load %arg14[%c11_682, %c0_683, %c0_684] : memref<22x22x128xf32, #tpu.memory_space<vmem>>, vector<8x22x128xf32>
    %c21_685 = arith.constant 21 : index
    %c0_686 = arith.constant 0 : index
    %c0_687 = arith.constant 0 : index
    %1365 = vector.load %arg8[%c21_685, %c0_686, %c0_687] : memref<49x1x128xf32, #tpu.memory_space<vmem>>, vector<1x1x128xf32>
    %1366 = vector.shape_cast %1365 : vector<1x1x128xf32> to vector<1x128xf32>
    %1367 = vector.extract_strided_slice %1364 {offsets = [0, 0, 0], sizes = [8, 16, 128], strides = [1, 1, 1]} : vector<8x22x128xf32> to vector<8x16x128xf32>
    %1368 = vector.shape_cast %1366 : vector<1x128xf32> to vector<1x1x128xf32>
    %1369 = vector.broadcast %1368 : vector<1x1x128xf32> to vector<8x16x128xf32>
    %1370 = arith.mulf %1369, %1367 : vector<8x16x128xf32>
    %1371 = arith.addf %1363, %1370 : vector<8x16x128xf32>
    %c22_688 = arith.constant 22 : index
    %c0_689 = arith.constant 0 : index
    %c0_690 = arith.constant 0 : index
    %1372 = vector.load %arg8[%c22_688, %c0_689, %c0_690] : memref<49x1x128xf32, #tpu.memory_space<vmem>>, vector<1x1x128xf32>
    %1373 = vector.shape_cast %1372 : vector<1x1x128xf32> to vector<1x128xf32>
    %1374 = vector.extract_strided_slice %1364 {offsets = [0, 1, 0], sizes = [8, 16, 128], strides = [1, 1, 1]} : vector<8x22x128xf32> to vector<8x16x128xf32>
    %1375 = vector.shape_cast %1373 : vector<1x128xf32> to vector<1x1x128xf32>
    %1376 = vector.broadcast %1375 : vector<1x1x128xf32> to vector<8x16x128xf32>
    %1377 = arith.mulf %1376, %1374 : vector<8x16x128xf32>
    %1378 = arith.addf %1371, %1377 : vector<8x16x128xf32>
    %c23_691 = arith.constant 23 : index
    %c0_692 = arith.constant 0 : index
    %c0_693 = arith.constant 0 : index
    %1379 = vector.load %arg8[%c23_691, %c0_692, %c0_693] : memref<49x1x128xf32, #tpu.memory_space<vmem>>, vector<1x1x128xf32>
    %1380 = vector.shape_cast %1379 : vector<1x1x128xf32> to vector<1x128xf32>
    %1381 = vector.extract_strided_slice %1364 {offsets = [0, 2, 0], sizes = [8, 16, 128], strides = [1, 1, 1]} : vector<8x22x128xf32> to vector<8x16x128xf32>
    %1382 = vector.shape_cast %1380 : vector<1x128xf32> to vector<1x1x128xf32>
    %1383 = vector.broadcast %1382 : vector<1x1x128xf32> to vector<8x16x128xf32>
    %1384 = arith.mulf %1383, %1381 : vector<8x16x128xf32>
    %1385 = arith.addf %1378, %1384 : vector<8x16x128xf32>
    %c24_694 = arith.constant 24 : index
    %c0_695 = arith.constant 0 : index
    %c0_696 = arith.constant 0 : index
    %1386 = vector.load %arg8[%c24_694, %c0_695, %c0_696] : memref<49x1x128xf32, #tpu.memory_space<vmem>>, vector<1x1x128xf32>
    %1387 = vector.shape_cast %1386 : vector<1x1x128xf32> to vector<1x128xf32>
    %1388 = vector.extract_strided_slice %1364 {offsets = [0, 3, 0], sizes = [8, 16, 128], strides = [1, 1, 1]} : vector<8x22x128xf32> to vector<8x16x128xf32>
    %1389 = vector.shape_cast %1387 : vector<1x128xf32> to vector<1x1x128xf32>
    %1390 = vector.broadcast %1389 : vector<1x1x128xf32> to vector<8x16x128xf32>
    %1391 = arith.mulf %1390, %1388 : vector<8x16x128xf32>
    %1392 = arith.addf %1385, %1391 : vector<8x16x128xf32>
    %c25_697 = arith.constant 25 : index
    %c0_698 = arith.constant 0 : index
    %c0_699 = arith.constant 0 : index
    %1393 = vector.load %arg8[%c25_697, %c0_698, %c0_699] : memref<49x1x128xf32, #tpu.memory_space<vmem>>, vector<1x1x128xf32>
    %1394 = vector.shape_cast %1393 : vector<1x1x128xf32> to vector<1x128xf32>
    %1395 = vector.extract_strided_slice %1364 {offsets = [0, 4, 0], sizes = [8, 16, 128], strides = [1, 1, 1]} : vector<8x22x128xf32> to vector<8x16x128xf32>
    %1396 = vector.shape_cast %1394 : vector<1x128xf32> to vector<1x1x128xf32>
    %1397 = vector.broadcast %1396 : vector<1x1x128xf32> to vector<8x16x128xf32>
    %1398 = arith.mulf %1397, %1395 : vector<8x16x128xf32>
    %1399 = arith.addf %1392, %1398 : vector<8x16x128xf32>
    %c26_700 = arith.constant 26 : index
    %c0_701 = arith.constant 0 : index
    %c0_702 = arith.constant 0 : index
    %1400 = vector.load %arg8[%c26_700, %c0_701, %c0_702] : memref<49x1x128xf32, #tpu.memory_space<vmem>>, vector<1x1x128xf32>
    %1401 = vector.shape_cast %1400 : vector<1x1x128xf32> to vector<1x128xf32>
    %1402 = vector.extract_strided_slice %1364 {offsets = [0, 5, 0], sizes = [8, 16, 128], strides = [1, 1, 1]} : vector<8x22x128xf32> to vector<8x16x128xf32>
    %1403 = vector.shape_cast %1401 : vector<1x128xf32> to vector<1x1x128xf32>
    %1404 = vector.broadcast %1403 : vector<1x1x128xf32> to vector<8x16x128xf32>
    %1405 = arith.mulf %1404, %1402 : vector<8x16x128xf32>
    %1406 = arith.addf %1399, %1405 : vector<8x16x128xf32>
    %c27_703 = arith.constant 27 : index
    %c0_704 = arith.constant 0 : index
    %c0_705 = arith.constant 0 : index
    %1407 = vector.load %arg8[%c27_703, %c0_704, %c0_705] : memref<49x1x128xf32, #tpu.memory_space<vmem>>, vector<1x1x128xf32>
    %1408 = vector.shape_cast %1407 : vector<1x1x128xf32> to vector<1x128xf32>
    %1409 = vector.extract_strided_slice %1364 {offsets = [0, 6, 0], sizes = [8, 16, 128], strides = [1, 1, 1]} : vector<8x22x128xf32> to vector<8x16x128xf32>
    %1410 = vector.shape_cast %1408 : vector<1x128xf32> to vector<1x1x128xf32>
    %1411 = vector.broadcast %1410 : vector<1x1x128xf32> to vector<8x16x128xf32>
    %1412 = arith.mulf %1411, %1409 : vector<8x16x128xf32>
    %1413 = arith.addf %1406, %1412 : vector<8x16x128xf32>
    %c12_706 = arith.constant 12 : index
    %c0_707 = arith.constant 0 : index
    %c0_708 = arith.constant 0 : index
    %1414 = vector.load %arg14[%c12_706, %c0_707, %c0_708] : memref<22x22x128xf32, #tpu.memory_space<vmem>>, vector<8x22x128xf32>
    %c28_709 = arith.constant 28 : index
    %c0_710 = arith.constant 0 : index
    %c0_711 = arith.constant 0 : index
    %1415 = vector.load %arg8[%c28_709, %c0_710, %c0_711] : memref<49x1x128xf32, #tpu.memory_space<vmem>>, vector<1x1x128xf32>
    %1416 = vector.shape_cast %1415 : vector<1x1x128xf32> to vector<1x128xf32>
    %1417 = vector.extract_strided_slice %1414 {offsets = [0, 0, 0], sizes = [8, 16, 128], strides = [1, 1, 1]} : vector<8x22x128xf32> to vector<8x16x128xf32>
    %1418 = vector.shape_cast %1416 : vector<1x128xf32> to vector<1x1x128xf32>
    %1419 = vector.broadcast %1418 : vector<1x1x128xf32> to vector<8x16x128xf32>
    %1420 = arith.mulf %1419, %1417 : vector<8x16x128xf32>
    %1421 = arith.addf %1413, %1420 : vector<8x16x128xf32>
    %c29_712 = arith.constant 29 : index
    %c0_713 = arith.constant 0 : index
    %c0_714 = arith.constant 0 : index
    %1422 = vector.load %arg8[%c29_712, %c0_713, %c0_714] : memref<49x1x128xf32, #tpu.memory_space<vmem>>, vector<1x1x128xf32>
    %1423 = vector.shape_cast %1422 : vector<1x1x128xf32> to vector<1x128xf32>
    %1424 = vector.extract_strided_slice %1414 {offsets = [0, 1, 0], sizes = [8, 16, 128], strides = [1, 1, 1]} : vector<8x22x128xf32> to vector<8x16x128xf32>
    %1425 = vector.shape_cast %1423 : vector<1x128xf32> to vector<1x1x128xf32>
    %1426 = vector.broadcast %1425 : vector<1x1x128xf32> to vector<8x16x128xf32>
    %1427 = arith.mulf %1426, %1424 : vector<8x16x128xf32>
    %1428 = arith.addf %1421, %1427 : vector<8x16x128xf32>
    %c30_715 = arith.constant 30 : index
    %c0_716 = arith.constant 0 : index
    %c0_717 = arith.constant 0 : index
    %1429 = vector.load %arg8[%c30_715, %c0_716, %c0_717] : memref<49x1x128xf32, #tpu.memory_space<vmem>>, vector<1x1x128xf32>
    %1430 = vector.shape_cast %1429 : vector<1x1x128xf32> to vector<1x128xf32>
    %1431 = vector.extract_strided_slice %1414 {offsets = [0, 2, 0], sizes = [8, 16, 128], strides = [1, 1, 1]} : vector<8x22x128xf32> to vector<8x16x128xf32>
    %1432 = vector.shape_cast %1430 : vector<1x128xf32> to vector<1x1x128xf32>
    %1433 = vector.broadcast %1432 : vector<1x1x128xf32> to vector<8x16x128xf32>
    %1434 = arith.mulf %1433, %1431 : vector<8x16x128xf32>
    %1435 = arith.addf %1428, %1434 : vector<8x16x128xf32>
    %c31_718 = arith.constant 31 : index
    %c0_719 = arith.constant 0 : index
    %c0_720 = arith.constant 0 : index
    %1436 = vector.load %arg8[%c31_718, %c0_719, %c0_720] : memref<49x1x128xf32, #tpu.memory_space<vmem>>, vector<1x1x128xf32>
    %1437 = vector.shape_cast %1436 : vector<1x1x128xf32> to vector<1x128xf32>
    %1438 = vector.extract_strided_slice %1414 {offsets = [0, 3, 0], sizes = [8, 16, 128], strides = [1, 1, 1]} : vector<8x22x128xf32> to vector<8x16x128xf32>
    %1439 = vector.shape_cast %1437 : vector<1x128xf32> to vector<1x1x128xf32>
    %1440 = vector.broadcast %1439 : vector<1x1x128xf32> to vector<8x16x128xf32>
    %1441 = arith.mulf %1440, %1438 : vector<8x16x128xf32>
    %1442 = arith.addf %1435, %1441 : vector<8x16x128xf32>
    %c32_721 = arith.constant 32 : index
    %c0_722 = arith.constant 0 : index
    %c0_723 = arith.constant 0 : index
    %1443 = vector.load %arg8[%c32_721, %c0_722, %c0_723] : memref<49x1x128xf32, #tpu.memory_space<vmem>>, vector<1x1x128xf32>
    %1444 = vector.shape_cast %1443 : vector<1x1x128xf32> to vector<1x128xf32>
    %1445 = vector.extract_strided_slice %1414 {offsets = [0, 4, 0], sizes = [8, 16, 128], strides = [1, 1, 1]} : vector<8x22x128xf32> to vector<8x16x128xf32>
    %1446 = vector.shape_cast %1444 : vector<1x128xf32> to vector<1x1x128xf32>
    %1447 = vector.broadcast %1446 : vector<1x1x128xf32> to vector<8x16x128xf32>
    %1448 = arith.mulf %1447, %1445 : vector<8x16x128xf32>
    %1449 = arith.addf %1442, %1448 : vector<8x16x128xf32>
    %c33_724 = arith.constant 33 : index
    %c0_725 = arith.constant 0 : index
    %c0_726 = arith.constant 0 : index
    %1450 = vector.load %arg8[%c33_724, %c0_725, %c0_726] : memref<49x1x128xf32, #tpu.memory_space<vmem>>, vector<1x1x128xf32>
    %1451 = vector.shape_cast %1450 : vector<1x1x128xf32> to vector<1x128xf32>
    %1452 = vector.extract_strided_slice %1414 {offsets = [0, 5, 0], sizes = [8, 16, 128], strides = [1, 1, 1]} : vector<8x22x128xf32> to vector<8x16x128xf32>
    %1453 = vector.shape_cast %1451 : vector<1x128xf32> to vector<1x1x128xf32>
    %1454 = vector.broadcast %1453 : vector<1x1x128xf32> to vector<8x16x128xf32>
    %1455 = arith.mulf %1454, %1452 : vector<8x16x128xf32>
    %1456 = arith.addf %1449, %1455 : vector<8x16x128xf32>
    %c34_727 = arith.constant 34 : index
    %c0_728 = arith.constant 0 : index
    %c0_729 = arith.constant 0 : index
    %1457 = vector.load %arg8[%c34_727, %c0_728, %c0_729] : memref<49x1x128xf32, #tpu.memory_space<vmem>>, vector<1x1x128xf32>
    %1458 = vector.shape_cast %1457 : vector<1x1x128xf32> to vector<1x128xf32>
    %1459 = vector.extract_strided_slice %1414 {offsets = [0, 6, 0], sizes = [8, 16, 128], strides = [1, 1, 1]} : vector<8x22x128xf32> to vector<8x16x128xf32>
    %1460 = vector.shape_cast %1458 : vector<1x128xf32> to vector<1x1x128xf32>
    %1461 = vector.broadcast %1460 : vector<1x1x128xf32> to vector<8x16x128xf32>
    %1462 = arith.mulf %1461, %1459 : vector<8x16x128xf32>
    %1463 = arith.addf %1456, %1462 : vector<8x16x128xf32>
    %c13_730 = arith.constant 13 : index
    %c0_731 = arith.constant 0 : index
    %c0_732 = arith.constant 0 : index
    %1464 = vector.load %arg14[%c13_730, %c0_731, %c0_732] : memref<22x22x128xf32, #tpu.memory_space<vmem>>, vector<8x22x128xf32>
    %c35_733 = arith.constant 35 : index
    %c0_734 = arith.constant 0 : index
    %c0_735 = arith.constant 0 : index
    %1465 = vector.load %arg8[%c35_733, %c0_734, %c0_735] : memref<49x1x128xf32, #tpu.memory_space<vmem>>, vector<1x1x128xf32>
    %1466 = vector.shape_cast %1465 : vector<1x1x128xf32> to vector<1x128xf32>
    %1467 = vector.extract_strided_slice %1464 {offsets = [0, 0, 0], sizes = [8, 16, 128], strides = [1, 1, 1]} : vector<8x22x128xf32> to vector<8x16x128xf32>
    %1468 = vector.shape_cast %1466 : vector<1x128xf32> to vector<1x1x128xf32>
    %1469 = vector.broadcast %1468 : vector<1x1x128xf32> to vector<8x16x128xf32>
    %1470 = arith.mulf %1469, %1467 : vector<8x16x128xf32>
    %1471 = arith.addf %1463, %1470 : vector<8x16x128xf32>
    %c36_736 = arith.constant 36 : index
    %c0_737 = arith.constant 0 : index
    %c0_738 = arith.constant 0 : index
    %1472 = vector.load %arg8[%c36_736, %c0_737, %c0_738] : memref<49x1x128xf32, #tpu.memory_space<vmem>>, vector<1x1x128xf32>
    %1473 = vector.shape_cast %1472 : vector<1x1x128xf32> to vector<1x128xf32>
    %1474 = vector.extract_strided_slice %1464 {offsets = [0, 1, 0], sizes = [8, 16, 128], strides = [1, 1, 1]} : vector<8x22x128xf32> to vector<8x16x128xf32>
    %1475 = vector.shape_cast %1473 : vector<1x128xf32> to vector<1x1x128xf32>
    %1476 = vector.broadcast %1475 : vector<1x1x128xf32> to vector<8x16x128xf32>
    %1477 = arith.mulf %1476, %1474 : vector<8x16x128xf32>
    %1478 = arith.addf %1471, %1477 : vector<8x16x128xf32>
    %c37_739 = arith.constant 37 : index
    %c0_740 = arith.constant 0 : index
    %c0_741 = arith.constant 0 : index
    %1479 = vector.load %arg8[%c37_739, %c0_740, %c0_741] : memref<49x1x128xf32, #tpu.memory_space<vmem>>, vector<1x1x128xf32>
    %1480 = vector.shape_cast %1479 : vector<1x1x128xf32> to vector<1x128xf32>
    %1481 = vector.extract_strided_slice %1464 {offsets = [0, 2, 0], sizes = [8, 16, 128], strides = [1, 1, 1]} : vector<8x22x128xf32> to vector<8x16x128xf32>
    %1482 = vector.shape_cast %1480 : vector<1x128xf32> to vector<1x1x128xf32>
    %1483 = vector.broadcast %1482 : vector<1x1x128xf32> to vector<8x16x128xf32>
    %1484 = arith.mulf %1483, %1481 : vector<8x16x128xf32>
    %1485 = arith.addf %1478, %1484 : vector<8x16x128xf32>
    %c38_742 = arith.constant 38 : index
    %c0_743 = arith.constant 0 : index
    %c0_744 = arith.constant 0 : index
    %1486 = vector.load %arg8[%c38_742, %c0_743, %c0_744] : memref<49x1x128xf32, #tpu.memory_space<vmem>>, vector<1x1x128xf32>
    %1487 = vector.shape_cast %1486 : vector<1x1x128xf32> to vector<1x128xf32>
    %1488 = vector.extract_strided_slice %1464 {offsets = [0, 3, 0], sizes = [8, 16, 128], strides = [1, 1, 1]} : vector<8x22x128xf32> to vector<8x16x128xf32>
    %1489 = vector.shape_cast %1487 : vector<1x128xf32> to vector<1x1x128xf32>
    %1490 = vector.broadcast %1489 : vector<1x1x128xf32> to vector<8x16x128xf32>
    %1491 = arith.mulf %1490, %1488 : vector<8x16x128xf32>
    %1492 = arith.addf %1485, %1491 : vector<8x16x128xf32>
    %c39_745 = arith.constant 39 : index
    %c0_746 = arith.constant 0 : index
    %c0_747 = arith.constant 0 : index
    %1493 = vector.load %arg8[%c39_745, %c0_746, %c0_747] : memref<49x1x128xf32, #tpu.memory_space<vmem>>, vector<1x1x128xf32>
    %1494 = vector.shape_cast %1493 : vector<1x1x128xf32> to vector<1x128xf32>
    %1495 = vector.extract_strided_slice %1464 {offsets = [0, 4, 0], sizes = [8, 16, 128], strides = [1, 1, 1]} : vector<8x22x128xf32> to vector<8x16x128xf32>
    %1496 = vector.shape_cast %1494 : vector<1x128xf32> to vector<1x1x128xf32>
    %1497 = vector.broadcast %1496 : vector<1x1x128xf32> to vector<8x16x128xf32>
    %1498 = arith.mulf %1497, %1495 : vector<8x16x128xf32>
    %1499 = arith.addf %1492, %1498 : vector<8x16x128xf32>
    %c40_748 = arith.constant 40 : index
    %c0_749 = arith.constant 0 : index
    %c0_750 = arith.constant 0 : index
    %1500 = vector.load %arg8[%c40_748, %c0_749, %c0_750] : memref<49x1x128xf32, #tpu.memory_space<vmem>>, vector<1x1x128xf32>
    %1501 = vector.shape_cast %1500 : vector<1x1x128xf32> to vector<1x128xf32>
    %1502 = vector.extract_strided_slice %1464 {offsets = [0, 5, 0], sizes = [8, 16, 128], strides = [1, 1, 1]} : vector<8x22x128xf32> to vector<8x16x128xf32>
    %1503 = vector.shape_cast %1501 : vector<1x128xf32> to vector<1x1x128xf32>
    %1504 = vector.broadcast %1503 : vector<1x1x128xf32> to vector<8x16x128xf32>
    %1505 = arith.mulf %1504, %1502 : vector<8x16x128xf32>
    %1506 = arith.addf %1499, %1505 : vector<8x16x128xf32>
    %c41_751 = arith.constant 41 : index
    %c0_752 = arith.constant 0 : index
    %c0_753 = arith.constant 0 : index
    %1507 = vector.load %arg8[%c41_751, %c0_752, %c0_753] : memref<49x1x128xf32, #tpu.memory_space<vmem>>, vector<1x1x128xf32>
    %1508 = vector.shape_cast %1507 : vector<1x1x128xf32> to vector<1x128xf32>
    %1509 = vector.extract_strided_slice %1464 {offsets = [0, 6, 0], sizes = [8, 16, 128], strides = [1, 1, 1]} : vector<8x22x128xf32> to vector<8x16x128xf32>
    %1510 = vector.shape_cast %1508 : vector<1x128xf32> to vector<1x1x128xf32>
    %1511 = vector.broadcast %1510 : vector<1x1x128xf32> to vector<8x16x128xf32>
    %1512 = arith.mulf %1511, %1509 : vector<8x16x128xf32>
    %1513 = arith.addf %1506, %1512 : vector<8x16x128xf32>
    %c14_754 = arith.constant 14 : index
    %c0_755 = arith.constant 0 : index
    %c0_756 = arith.constant 0 : index
    %1514 = vector.load %arg14[%c14_754, %c0_755, %c0_756] : memref<22x22x128xf32, #tpu.memory_space<vmem>>, vector<8x22x128xf32>
    %c42_757 = arith.constant 42 : index
    %c0_758 = arith.constant 0 : index
    %c0_759 = arith.constant 0 : index
    %1515 = vector.load %arg8[%c42_757, %c0_758, %c0_759] : memref<49x1x128xf32, #tpu.memory_space<vmem>>, vector<1x1x128xf32>
    %1516 = vector.shape_cast %1515 : vector<1x1x128xf32> to vector<1x128xf32>
    %1517 = vector.extract_strided_slice %1514 {offsets = [0, 0, 0], sizes = [8, 16, 128], strides = [1, 1, 1]} : vector<8x22x128xf32> to vector<8x16x128xf32>
    %1518 = vector.shape_cast %1516 : vector<1x128xf32> to vector<1x1x128xf32>
    %1519 = vector.broadcast %1518 : vector<1x1x128xf32> to vector<8x16x128xf32>
    %1520 = arith.mulf %1519, %1517 : vector<8x16x128xf32>
    %1521 = arith.addf %1513, %1520 : vector<8x16x128xf32>
    %c43_760 = arith.constant 43 : index
    %c0_761 = arith.constant 0 : index
    %c0_762 = arith.constant 0 : index
    %1522 = vector.load %arg8[%c43_760, %c0_761, %c0_762] : memref<49x1x128xf32, #tpu.memory_space<vmem>>, vector<1x1x128xf32>
    %1523 = vector.shape_cast %1522 : vector<1x1x128xf32> to vector<1x128xf32>
    %1524 = vector.extract_strided_slice %1514 {offsets = [0, 1, 0], sizes = [8, 16, 128], strides = [1, 1, 1]} : vector<8x22x128xf32> to vector<8x16x128xf32>
    %1525 = vector.shape_cast %1523 : vector<1x128xf32> to vector<1x1x128xf32>
    %1526 = vector.broadcast %1525 : vector<1x1x128xf32> to vector<8x16x128xf32>
    %1527 = arith.mulf %1526, %1524 : vector<8x16x128xf32>
    %1528 = arith.addf %1521, %1527 : vector<8x16x128xf32>
    %c44_763 = arith.constant 44 : index
    %c0_764 = arith.constant 0 : index
    %c0_765 = arith.constant 0 : index
    %1529 = vector.load %arg8[%c44_763, %c0_764, %c0_765] : memref<49x1x128xf32, #tpu.memory_space<vmem>>, vector<1x1x128xf32>
    %1530 = vector.shape_cast %1529 : vector<1x1x128xf32> to vector<1x128xf32>
    %1531 = vector.extract_strided_slice %1514 {offsets = [0, 2, 0], sizes = [8, 16, 128], strides = [1, 1, 1]} : vector<8x22x128xf32> to vector<8x16x128xf32>
    %1532 = vector.shape_cast %1530 : vector<1x128xf32> to vector<1x1x128xf32>
    %1533 = vector.broadcast %1532 : vector<1x1x128xf32> to vector<8x16x128xf32>
    %1534 = arith.mulf %1533, %1531 : vector<8x16x128xf32>
    %1535 = arith.addf %1528, %1534 : vector<8x16x128xf32>
    %c45_766 = arith.constant 45 : index
    %c0_767 = arith.constant 0 : index
    %c0_768 = arith.constant 0 : index
    %1536 = vector.load %arg8[%c45_766, %c0_767, %c0_768] : memref<49x1x128xf32, #tpu.memory_space<vmem>>, vector<1x1x128xf32>
    %1537 = vector.shape_cast %1536 : vector<1x1x128xf32> to vector<1x128xf32>
    %1538 = vector.extract_strided_slice %1514 {offsets = [0, 3, 0], sizes = [8, 16, 128], strides = [1, 1, 1]} : vector<8x22x128xf32> to vector<8x16x128xf32>
    %1539 = vector.shape_cast %1537 : vector<1x128xf32> to vector<1x1x128xf32>
    %1540 = vector.broadcast %1539 : vector<1x1x128xf32> to vector<8x16x128xf32>
    %1541 = arith.mulf %1540, %1538 : vector<8x16x128xf32>
    %1542 = arith.addf %1535, %1541 : vector<8x16x128xf32>
    %c46_769 = arith.constant 46 : index
    %c0_770 = arith.constant 0 : index
    %c0_771 = arith.constant 0 : index
    %1543 = vector.load %arg8[%c46_769, %c0_770, %c0_771] : memref<49x1x128xf32, #tpu.memory_space<vmem>>, vector<1x1x128xf32>
    %1544 = vector.shape_cast %1543 : vector<1x1x128xf32> to vector<1x128xf32>
    %1545 = vector.extract_strided_slice %1514 {offsets = [0, 4, 0], sizes = [8, 16, 128], strides = [1, 1, 1]} : vector<8x22x128xf32> to vector<8x16x128xf32>
    %1546 = vector.shape_cast %1544 : vector<1x128xf32> to vector<1x1x128xf32>
    %1547 = vector.broadcast %1546 : vector<1x1x128xf32> to vector<8x16x128xf32>
    %1548 = arith.mulf %1547, %1545 : vector<8x16x128xf32>
    %1549 = arith.addf %1542, %1548 : vector<8x16x128xf32>
    %c47_772 = arith.constant 47 : index
    %c0_773 = arith.constant 0 : index
    %c0_774 = arith.constant 0 : index
    %1550 = vector.load %arg8[%c47_772, %c0_773, %c0_774] : memref<49x1x128xf32, #tpu.memory_space<vmem>>, vector<1x1x128xf32>
    %1551 = vector.shape_cast %1550 : vector<1x1x128xf32> to vector<1x128xf32>
    %1552 = vector.extract_strided_slice %1514 {offsets = [0, 5, 0], sizes = [8, 16, 128], strides = [1, 1, 1]} : vector<8x22x128xf32> to vector<8x16x128xf32>
    %1553 = vector.shape_cast %1551 : vector<1x128xf32> to vector<1x1x128xf32>
    %1554 = vector.broadcast %1553 : vector<1x1x128xf32> to vector<8x16x128xf32>
    %1555 = arith.mulf %1554, %1552 : vector<8x16x128xf32>
    %1556 = arith.addf %1549, %1555 : vector<8x16x128xf32>
    %c48_775 = arith.constant 48 : index
    %c0_776 = arith.constant 0 : index
    %c0_777 = arith.constant 0 : index
    %1557 = vector.load %arg8[%c48_775, %c0_776, %c0_777] : memref<49x1x128xf32, #tpu.memory_space<vmem>>, vector<1x1x128xf32>
    %1558 = vector.shape_cast %1557 : vector<1x1x128xf32> to vector<1x128xf32>
    %1559 = vector.extract_strided_slice %1514 {offsets = [0, 6, 0], sizes = [8, 16, 128], strides = [1, 1, 1]} : vector<8x22x128xf32> to vector<8x16x128xf32>
    %1560 = vector.shape_cast %1558 : vector<1x128xf32> to vector<1x1x128xf32>
    %1561 = vector.broadcast %1560 : vector<1x1x128xf32> to vector<8x16x128xf32>
    %1562 = arith.mulf %1561, %1559 : vector<8x16x128xf32>
    %1563 = arith.addf %1556, %1562 : vector<8x16x128xf32>
    %c8_778 = arith.constant 8 : index
    %c0_779 = arith.constant 0 : index
    %c0_780 = arith.constant 0 : index
    %1564 = vector.load %arg15[%c8_778, %c0_779, %c0_780] : memref<16x16x128xf32, #tpu.memory_space<vmem>>, vector<8x16x128xf32>
    %1565 = arith.addf %1564, %1563 : vector<8x16x128xf32>
    %c0_781 = arith.constant 0 : index
    %c0_782 = arith.constant 0 : index
    %1566 = vector.load %arg9[%c0_781, %c0_782] : memref<1x128xf32, #tpu.memory_space<vmem>>, vector<1x128xf32>
    %1567 = vector.shape_cast %1566 : vector<1x128xf32> to vector<1x1x128xf32>
    %1568 = vector.broadcast %1567 : vector<1x1x128xf32> to vector<8x16x128xf32>
    %1569 = arith.addf %1565, %1568 : vector<8x16x128xf32>
    %cst_783 = arith.constant 5.000000e-01 : f32
    %1570 = vector.broadcast %cst_783 : f32 to vector<8x16x128xf32>
    %1571 = arith.mulf %1570, %1569 : vector<8x16x128xf32>
    %1572 = math.tanh %1571 : vector<8x16x128xf32>
    %cst_784 = arith.constant 1.000000e+00 : f32
    %1573 = vector.broadcast %cst_784 : f32 to vector<8x16x128xf32>
    %1574 = arith.addf %1572, %1573 : vector<8x16x128xf32>
    %cst_785 = arith.constant 5.000000e-01 : f32
    %1575 = vector.broadcast %cst_785 : f32 to vector<8x16x128xf32>
    %1576 = arith.mulf %1575, %1574 : vector<8x16x128xf32>
    %cst_786 = arith.constant 5.000000e-01 : f32
    %1577 = vector.broadcast %cst_786 : f32 to vector<8x16x128xf32>
    %1578 = arith.mulf %1577, %1576 : vector<8x16x128xf32>
    %1579 = math.tanh %1578 : vector<8x16x128xf32>
    %cst_787 = arith.constant 1.000000e+00 : f32
    %1580 = vector.broadcast %cst_787 : f32 to vector<8x16x128xf32>
    %1581 = arith.addf %1579, %1580 : vector<8x16x128xf32>
    %cst_788 = arith.constant 5.000000e-01 : f32
    %1582 = vector.broadcast %cst_788 : f32 to vector<8x16x128xf32>
    %1583 = arith.mulf %1582, %1581 : vector<8x16x128xf32>
    %c8_789 = arith.constant 8 : index
    %c0_790 = arith.constant 0 : index
    %c0_791 = arith.constant 0 : index
    %1584 = vector.load %arg15[%c8_789, %c0_790, %c0_791] : memref<16x16x128xf32, #tpu.memory_space<vmem>>, vector<8x16x128xf32>
    tpu.vector_store %arg15[%c8_789, %c0_790, %c0_791], %1583 {strides = array<i32>} : memref<16x16x128xf32, #tpu.memory_space<vmem>>, vector<8x16x128xf32>,
    %c0_792 = arith.constant 0 : index
    %c0_793 = arith.constant 0 : index
    %c0_794 = arith.constant 0 : index
    %1585 = vector.load %arg15[%c0_792, %c0_793, %c0_794] : memref<16x16x128xf32, #tpu.memory_space<vmem>>, vector<16x16x128xf32>
    %1586 = vector.shape_cast %1585 : vector<16x16x128xf32> to vector<256x128xf32>
    %1587 = tpu.transpose %1586, [1, 0] : vector<256x128xf32> -> vector<128x256xf32>
    %c0_795 = arith.constant 0 : index
    %c0_796 = arith.constant 0 : index
    %c0_797 = arith.constant 0 : index
    %1588 = vector.load %arg1[%c0_795, %c0_796, %c0_797] : memref<4x32x256xf32, #tpu.memory_space<vmem>>, vector<1x32x256xf32>
    %1589 = vector.shape_cast %1588 : vector<1x32x256xf32> to vector<32x256xf32>
    %c0_798 = arith.constant 0 : index
    %c0_799 = arith.constant 0 : index
    %c0_800 = arith.constant 0 : index
    %1590 = vector.load %arg2[%c0_798, %c0_799, %c0_800] : memref<4x32x256xf32, #tpu.memory_space<vmem>>, vector<1x32x256xf32>
    %1591 = vector.shape_cast %1590 : vector<1x32x256xf32> to vector<32x256xf32>
    %1592 = vector.extract_strided_slice %1587 {offsets = [0, 0], sizes = [32, 256], strides = [1, 1]} : vector<128x256xf32> to vector<32x256xf32>
    %1593 = arith.addf %1589, %1591 : vector<32x256xf32>
    %1594 = arith.mulf %1592, %1589 : vector<32x256xf32>
    %1595 = arith.addf %1593, %1594 : vector<32x256xf32>
    %cst_801 = arith.constant 1.000000e+00 : f32
    %1596 = vector.broadcast %cst_801 : f32 to vector<32x256xf32>
    %1597 = arith.subf %1596, %1592 : vector<32x256xf32>
    %1598 = arith.mulf %1597, %1591 : vector<32x256xf32>
    %1599 = arith.addf %1595, %1598 : vector<32x256xf32>
    %c0_802 = arith.constant 0 : index
    %c0_803 = arith.constant 0 : index
    %1600 = vector.load %arg10[%c0_802, %c0_803] : memref<32x32xf32, #tpu.memory_space<vmem>>, vector<32x32xf32>
    %cst_804 = arith.constant dense<0.000000e+00> : vector<32x256xf32>
    %1601 = tpu.matmul %1600, %1599, %cst_804 {dimension_numbers = #tpu.dot_dimension_numbers<[1], [0], [0], [1], [0, 0, 1, 1], [], []>} : vector<32x32xf32>, vector<32x256xf32>, vector<32x256xf32> -> vector<32x256xf32>
    %c0_805 = arith.constant 0 : index
    %c0_806 = arith.constant 0 : index
    %1602 = vector.load %arg11[%c0_805, %c0_806] : memref<32x1xf32, #tpu.memory_space<vmem>>, vector<32x1xf32>
    %1603 = vector.broadcast %1602 : vector<32x1xf32> to vector<32x256xf32>
    %1604 = arith.addf %1601, %1603 : vector<32x256xf32>
    %c0_807 = arith.constant 0 : index
    %c0_808 = arith.constant 0 : index
    %c0_809 = arith.constant 0 : index
    %1605 = vector.load %arg12[%c0_807, %c0_808, %c0_809] : memref<4x32x256xf32, #tpu.memory_space<vmem>>, vector<1x32x256xf32>
    %1606 = vector.shape_cast %1605 : vector<1x32x256xf32> to vector<32x256xf32>
    %1607 = vector.shape_cast %1604 : vector<32x256xf32> to vector<1x32x256xf32>
    tpu.vector_store %arg12[%c0_807, %c0_808, %c0_809], %1607 {strides = array<i32>} : memref<4x32x256xf32, #tpu.memory_space<vmem>>, vector<1x32x256xf32>,
    %c1_810 = arith.constant 1 : index
    %c0_811 = arith.constant 0 : index
    %c0_812 = arith.constant 0 : index
    %1608 = vector.load %arg1[%c1_810, %c0_811, %c0_812] : memref<4x32x256xf32, #tpu.memory_space<vmem>>, vector<1x32x256xf32>
    %1609 = vector.shape_cast %1608 : vector<1x32x256xf32> to vector<32x256xf32>
    %c1_813 = arith.constant 1 : index
    %c0_814 = arith.constant 0 : index
    %c0_815 = arith.constant 0 : index
    %1610 = vector.load %arg2[%c1_813, %c0_814, %c0_815] : memref<4x32x256xf32, #tpu.memory_space<vmem>>, vector<1x32x256xf32>
    %1611 = vector.shape_cast %1610 : vector<1x32x256xf32> to vector<32x256xf32>
    %1612 = vector.extract_strided_slice %1587 {offsets = [32, 0], sizes = [32, 256], strides = [1, 1]} : vector<128x256xf32> to vector<32x256xf32>
    %1613 = arith.addf %1609, %1611 : vector<32x256xf32>
    %1614 = arith.mulf %1612, %1609 : vector<32x256xf32>
    %1615 = arith.addf %1613, %1614 : vector<32x256xf32>
    %cst_816 = arith.constant 1.000000e+00 : f32
    %1616 = vector.broadcast %cst_816 : f32 to vector<32x256xf32>
    %1617 = arith.subf %1616, %1612 : vector<32x256xf32>
    %1618 = arith.mulf %1617, %1611 : vector<32x256xf32>
    %1619 = arith.addf %1615, %1618 : vector<32x256xf32>
    %c0_817 = arith.constant 0 : index
    %c0_818 = arith.constant 0 : index
    %1620 = vector.load %arg10[%c0_817, %c0_818] : memref<32x32xf32, #tpu.memory_space<vmem>>, vector<32x32xf32>
    %cst_819 = arith.constant dense<0.000000e+00> : vector<32x256xf32>
    %1621 = tpu.matmul %1620, %1619, %cst_819 {dimension_numbers = #tpu.dot_dimension_numbers<[1], [0], [0], [1], [0, 0, 1, 1], [], []>} : vector<32x32xf32>, vector<32x256xf32>, vector<32x256xf32> -> vector<32x256xf32>
    %c0_820 = arith.constant 0 : index
    %c0_821 = arith.constant 0 : index
    %1622 = vector.load %arg11[%c0_820, %c0_821] : memref<32x1xf32, #tpu.memory_space<vmem>>, vector<32x1xf32>
    %1623 = vector.broadcast %1622 : vector<32x1xf32> to vector<32x256xf32>
    %1624 = arith.addf %1621, %1623 : vector<32x256xf32>
    %c1_822 = arith.constant 1 : index
    %c0_823 = arith.constant 0 : index
    %c0_824 = arith.constant 0 : index
    %1625 = vector.load %arg12[%c1_822, %c0_823, %c0_824] : memref<4x32x256xf32, #tpu.memory_space<vmem>>, vector<1x32x256xf32>
    %1626 = vector.shape_cast %1625 : vector<1x32x256xf32> to vector<32x256xf32>
    %1627 = vector.shape_cast %1624 : vector<32x256xf32> to vector<1x32x256xf32>
    tpu.vector_store %arg12[%c1_822, %c0_823, %c0_824], %1627 {strides = array<i32>} : memref<4x32x256xf32, #tpu.memory_space<vmem>>, vector<1x32x256xf32>,
    %c2_825 = arith.constant 2 : index
    %c0_826 = arith.constant 0 : index
    %c0_827 = arith.constant 0 : index
    %1628 = vector.load %arg1[%c2_825, %c0_826, %c0_827] : memref<4x32x256xf32, #tpu.memory_space<vmem>>, vector<1x32x256xf32>
    %1629 = vector.shape_cast %1628 : vector<1x32x256xf32> to vector<32x256xf32>
    %c2_828 = arith.constant 2 : index
    %c0_829 = arith.constant 0 : index
    %c0_830 = arith.constant 0 : index
    %1630 = vector.load %arg2[%c2_828, %c0_829, %c0_830] : memref<4x32x256xf32, #tpu.memory_space<vmem>>, vector<1x32x256xf32>
    %1631 = vector.shape_cast %1630 : vector<1x32x256xf32> to vector<32x256xf32>
    %1632 = vector.extract_strided_slice %1587 {offsets = [64, 0], sizes = [32, 256], strides = [1, 1]} : vector<128x256xf32> to vector<32x256xf32>
    %1633 = arith.addf %1629, %1631 : vector<32x256xf32>
    %1634 = arith.mulf %1632, %1629 : vector<32x256xf32>
    %1635 = arith.addf %1633, %1634 : vector<32x256xf32>
    %cst_831 = arith.constant 1.000000e+00 : f32
    %1636 = vector.broadcast %cst_831 : f32 to vector<32x256xf32>
    %1637 = arith.subf %1636, %1632 : vector<32x256xf32>
    %1638 = arith.mulf %1637, %1631 : vector<32x256xf32>
    %1639 = arith.addf %1635, %1638 : vector<32x256xf32>
    %c0_832 = arith.constant 0 : index
    %c0_833 = arith.constant 0 : index
    %1640 = vector.load %arg10[%c0_832, %c0_833] : memref<32x32xf32, #tpu.memory_space<vmem>>, vector<32x32xf32>
    %cst_834 = arith.constant dense<0.000000e+00> : vector<32x256xf32>
    %1641 = tpu.matmul %1640, %1639, %cst_834 {dimension_numbers = #tpu.dot_dimension_numbers<[1], [0], [0], [1], [0, 0, 1, 1], [], []>} : vector<32x32xf32>, vector<32x256xf32>, vector<32x256xf32> -> vector<32x256xf32>
    %c0_835 = arith.constant 0 : index
    %c0_836 = arith.constant 0 : index
    %1642 = vector.load %arg11[%c0_835, %c0_836] : memref<32x1xf32, #tpu.memory_space<vmem>>, vector<32x1xf32>
    %1643 = vector.broadcast %1642 : vector<32x1xf32> to vector<32x256xf32>
    %1644 = arith.addf %1641, %1643 : vector<32x256xf32>
    %c2_837 = arith.constant 2 : index
    %c0_838 = arith.constant 0 : index
    %c0_839 = arith.constant 0 : index
    %1645 = vector.load %arg12[%c2_837, %c0_838, %c0_839] : memref<4x32x256xf32, #tpu.memory_space<vmem>>, vector<1x32x256xf32>
    %1646 = vector.shape_cast %1645 : vector<1x32x256xf32> to vector<32x256xf32>
    %1647 = vector.shape_cast %1644 : vector<32x256xf32> to vector<1x32x256xf32>
    tpu.vector_store %arg12[%c2_837, %c0_838, %c0_839], %1647 {strides = array<i32>} : memref<4x32x256xf32, #tpu.memory_space<vmem>>, vector<1x32x256xf32>,
    %c3_840 = arith.constant 3 : index
    %c0_841 = arith.constant 0 : index
    %c0_842 = arith.constant 0 : index
    %1648 = vector.load %arg1[%c3_840, %c0_841, %c0_842] : memref<4x32x256xf32, #tpu.memory_space<vmem>>, vector<1x32x256xf32>
    %1649 = vector.shape_cast %1648 : vector<1x32x256xf32> to vector<32x256xf32>
    %c3_843 = arith.constant 3 : index
    %c0_844 = arith.constant 0 : index
    %c0_845 = arith.constant 0 : index
    %1650 = vector.load %arg2[%c3_843, %c0_844, %c0_845] : memref<4x32x256xf32, #tpu.memory_space<vmem>>, vector<1x32x256xf32>
    %1651 = vector.shape_cast %1650 : vector<1x32x256xf32> to vector<32x256xf32>
    %1652 = vector.extract_strided_slice %1587 {offsets = [96, 0], sizes = [32, 256], strides = [1, 1]} : vector<128x256xf32> to vector<32x256xf32>
    %1653 = arith.addf %1649, %1651 : vector<32x256xf32>
    %1654 = arith.mulf %1652, %1649 : vector<32x256xf32>
    %1655 = arith.addf %1653, %1654 : vector<32x256xf32>
    %cst_846 = arith.constant 1.000000e+00 : f32
    %1656 = vector.broadcast %cst_846 : f32 to vector<32x256xf32>
    %1657 = arith.subf %1656, %1652 : vector<32x256xf32>
    %1658 = arith.mulf %1657, %1651 : vector<32x256xf32>
    %1659 = arith.addf %1655, %1658 : vector<32x256xf32>
    %c0_847 = arith.constant 0 : index
    %c0_848 = arith.constant 0 : index
    %1660 = vector.load %arg10[%c0_847, %c0_848] : memref<32x32xf32, #tpu.memory_space<vmem>>, vector<32x32xf32>
    %cst_849 = arith.constant dense<0.000000e+00> : vector<32x256xf32>
    %1661 = tpu.matmul %1660, %1659, %cst_849 {dimension_numbers = #tpu.dot_dimension_numbers<[1], [0], [0], [1], [0, 0, 1, 1], [], []>} : vector<32x32xf32>, vector<32x256xf32>, vector<32x256xf32> -> vector<32x256xf32>
    %c0_850 = arith.constant 0 : index
    %c0_851 = arith.constant 0 : index
    %1662 = vector.load %arg11[%c0_850, %c0_851] : memref<32x1xf32, #tpu.memory_space<vmem>>, vector<32x1xf32>
    %1663 = vector.broadcast %1662 : vector<32x1xf32> to vector<32x256xf32>
    %1664 = arith.addf %1661, %1663 : vector<32x256xf32>
    %c3_852 = arith.constant 3 : index
    %c0_853 = arith.constant 0 : index
    %c0_854 = arith.constant 0 : index
    %1665 = vector.load %arg12[%c3_852, %c0_853, %c0_854] : memref<4x32x256xf32, #tpu.memory_space<vmem>>, vector<1x32x256xf32>
    %1666 = vector.shape_cast %1665 : vector<1x32x256xf32> to vector<32x256xf32>
    %1667 = vector.shape_cast %1664 : vector<32x256xf32> to vector<1x32x256xf32>
    tpu.vector_store %arg12[%c3_852, %c0_853, %c0_854], %1667 {strides = array<i32>} : memref<4x32x256xf32, #tpu.memory_space<vmem>>, vector<1x32x256xf32>,
    return
  }
  func.func @transform_0(%arg0: i32) -> (i32, i32, i32) {
    %c0_i32 = arith.constant 0 : i32
    %c0_i32_0 = arith.constant 0 : i32
    %c0_i32_1 = arith.constant 0 : i32
    return %arg0, %c0_i32, %c0_i32_0 : i32, i32, i32
  }
  func.func @transform_1(%arg0: i32) -> (i32, i32, i32) {
    %c0_i32 = arith.constant 0 : i32
    %c0_i32_0 = arith.constant 0 : i32
    %c0_i32_1 = arith.constant 0 : i32
    return %arg0, %c0_i32, %c0_i32_0 : i32, i32, i32
  }
  func.func @transform_2(%arg0: i32) -> (i32, i32) {
    %c0_i32 = arith.constant 0 : i32
    %c0_i32_0 = arith.constant 0 : i32
    %c0_i32_1 = arith.constant 0 : i32
    return %c0_i32, %c0_i32_0 : i32, i32
  }
  func.func @transform_3(%arg0: i32) -> (i32, i32) {
    %c0_i32 = arith.constant 0 : i32
    %c0_i32_0 = arith.constant 0 : i32
    %c0_i32_1 = arith.constant 0 : i32
    return %c0_i32, %c0_i32_0 : i32, i32
  }
  func.func @transform_4(%arg0: i32) -> (i32, i32) {
    %c0_i32 = arith.constant 0 : i32
    %c0_i32_0 = arith.constant 0 : i32
    %c0_i32_1 = arith.constant 0 : i32
    return %c0_i32, %c0_i32_0 : i32, i32
  }
  func.func @transform_5(%arg0: i32) -> (i32, i32) {
    %c0_i32 = arith.constant 0 : i32
    %c0_i32_0 = arith.constant 0 : i32
    %c0_i32_1 = arith.constant 0 : i32
    return %c0_i32, %c0_i32_0 : i32, i32
  }
  func.func @transform_6(%arg0: i32) -> (i32, i32, i32) {
    %c0_i32 = arith.constant 0 : i32
    %c0_i32_0 = arith.constant 0 : i32
    %c0_i32_1 = arith.constant 0 : i32
    %c0_i32_2 = arith.constant 0 : i32
    return %c0_i32, %c0_i32_0, %c0_i32_1 : i32, i32, i32
  }
  func.func @transform_7(%arg0: i32) -> (i32, i32, i32) {
    %c0_i32 = arith.constant 0 : i32
    %c0_i32_0 = arith.constant 0 : i32
    %c0_i32_1 = arith.constant 0 : i32
    %c0_i32_2 = arith.constant 0 : i32
    return %c0_i32, %c0_i32_0, %c0_i32_1 : i32, i32, i32
  }
  func.func @transform_8(%arg0: i32) -> (i32, i32) {
    %c0_i32 = arith.constant 0 : i32
    %c0_i32_0 = arith.constant 0 : i32
    %c0_i32_1 = arith.constant 0 : i32
    return %c0_i32, %c0_i32_0 : i32, i32
  }
  func.func @transform_9(%arg0: i32) -> (i32, i32) {
    %c0_i32 = arith.constant 0 : i32
    %c0_i32_0 = arith.constant 0 : i32
    %c0_i32_1 = arith.constant 0 : i32
    return %c0_i32, %c0_i32_0 : i32, i32
  }
  func.func @transform_10(%arg0: i32) -> (i32, i32) {
    %c0_i32 = arith.constant 0 : i32
    %c0_i32_0 = arith.constant 0 : i32
    %c0_i32_1 = arith.constant 0 : i32
    return %c0_i32, %c0_i32_0 : i32, i32
  }
  func.func @transform_11(%arg0: i32) -> (i32, i32, i32) {
    %c0_i32 = arith.constant 0 : i32
    %c0_i32_0 = arith.constant 0 : i32
    %c0_i32_1 = arith.constant 0 : i32
    return %arg0, %c0_i32, %c0_i32_0 : i32, i32, i32
  }
}

</mosaic_0001>

<llo_original>
// kernel: squeeze.12
$region0: #{squeeze.12}
  %s0 = inlined_call_operand.vmem [shape: f32[32,7,7], index: 0, kind: input, shape index: {}]
  %s1 = inlined_call_operand.vmem [shape: f32[32,49], index: 1, kind: output, shape index: {}]
  %v2 = vld [vmem:[%s0] sm:$0x7f]
  %vm3 = vcmask 261120
  %4 = vst.msk [vmem:[%s1] sm:$0x7f] %vm3, %v2
  %s5 = scalar_lea.vmem %s0, 8
  %v6 = vld [vmem:[%s5] sm:$0x7f]
  %vm7 = vcmask 261120
  %s8 = scalar_lea.vmem %s1, 7
  %9 = vst.msk [vmem:[%s8] sm:$0x7f] %vm7, %v6
  %s10 = scalar_lea.vmem %s0, 16
  %v11 = vld [vmem:[%s10] sm:$0x7f]
  %vm12 = vcmask 261120
  %s13 = scalar_lea.vmem %s1, 14
  %14 = vst.msk [vmem:[%s13] sm:$0x7f] %vm12, %v11
  %s15 = scalar_lea.vmem %s0, 24
  %v16 = vld [vmem:[%s15] sm:$0x7f]
  %vm17 = vcmask 261120
  %s18 = scalar_lea.vmem %s1, 21
  %19 = vst.msk [vmem:[%s18] sm:$0x7f] %vm17, %v16
  %s20 = scalar_lea.vmem %s0, 32
  %v21 = vld [vmem:[%s20] sm:$0x7f]
  %vm22 = vcmask 261120
  %s23 = scalar_lea.vmem %s1, 28
  %24 = vst.msk [vmem:[%s23] sm:$0x7f] %vm22, %v21
  %s25 = scalar_lea.vmem %s0, 40
  %v26 = vld [vmem:[%s25] sm:$0x7f]
  %vm27 = vcmask 261120
  %s28 = scalar_lea.vmem %s1, 35
  %29 = vst.msk [vmem:[%s28] sm:$0x7f] %vm27, %v26
  %s30 = scalar_lea.vmem %s0, 48
  %v31 = vld [vmem:[%s30] sm:$0x7f]
  %vm32 = vcmask 261120
  %s33 = scalar_lea.vmem %s1, 42
  %34 = vst.msk [vmem:[%s33] sm:$0x7f] %vm32, %v31

</llo_original>
